<compile_context>
chip_gen: v5e
topology: v5e:2x2
jax: 0.10.0
libtpu: 0.0.40
codegen_flags: <defaults>
</compile_context>

<pallas_src>
import math
import functools

import numpy as np
import jax
import jax.numpy as jnp
from jax import lax
from jax.experimental import pallas as pl
from jax.experimental.pallas import tpu as pltpu

D = 264                 # descriptor_dim
ROW = 12                # row_num
P = ROW * ROW           # point_num = 144
N = P + 1               # points + dustbin column
SINKHORN_ITERS = 100
LOG256 = math.log(256.0)


def _build_tap_masks():
    """mask[t, p] = 1 iff destination p=i*12+j has a valid (in-bounds) source for
    3x3-conv tap t=(ky*3+kx), i.e. 0 <= i+ky-1 < 12 and 0 <= j+kx-1 < 12."""
    m = np.zeros((9, P), np.float32)
    for t in range(9):
        oy, ox = t // 3 - 1, t % 3 - 1
        for i in range(ROW):
            for j in range(ROW):
                if 0 <= i + oy < ROW and 0 <= j + ox < ROW:
                    m[t, i * ROW + j] = 1.0
    return jnp.asarray(m)


# ----------------------------- fused per-batch kernel -----------------------------------
def _head_kernel(d0_ref, d1_ref, wfp_ref, bfp_ref, wc_ref, bc_ref, msk_ref,
                 scores_ref, feats_ref, scales_ref, *, iters, bump, norm):
    # ---- final_proj (Conv1d k=1) for both descriptor sets: bf16 MXU, f32 accumulate ----
    w = wfp_ref[...]                                       # (D, D) bf16 (pre-cast in wrapper)
    b = bfp_ref[...]                                       # (D, 1) f32
    md0 = jnp.dot(w, d0_ref[0], preferred_element_type=jnp.float32) + b   # (D, N) f32
    md1 = jnp.dot(w, d1_ref[0], preferred_element_type=jnp.float32) + b   # (D, N) f32
    feats_ref[0, 0] = md0
    feats_ref[1, 0] = md1

    # ---- scalex/scaley: 3x3 conv (pad=1) on the 12x12 grid, fully in VMEM -------------
    # Channel contraction first: g[t*2 + o, p] = sum_c w[o,c,ky,kx] * feat[c,p],
    # then the 9 spatial taps are cheap static lane shifts + boundary masks.
    feat = md1[:, :P]                                      # (D, 144) f32
    g = jnp.dot(wc_ref[...], feat, preferred_element_type=jnp.float32)    # (18, 144)
    acc = jnp.zeros((2, P), jnp.float32)
    for t in range(9):
        oy, ox = t // 3 - 1, t % 3 - 1
        off = oy * ROW + ox                                # source = dest + off (flat index)
        gt = g[2 * t:2 * t + 2, :]                         # (2, 144)
        if off > 0:
            sh = jnp.concatenate([gt[:, off:], jnp.zeros((2, off), jnp.float32)], axis=1)
        elif off < 0:
            sh = jnp.concatenate([jnp.zeros((2, -off), jnp.float32), gt[:, :P + off]], axis=1)
        else:
            sh = gt
        acc = acc + msk_ref[t:t + 1, :] * sh               # mask kills row-boundary wraps
    zc = acc + bc_ref[...]                                 # (2, 144) conv output + bias
    sc = jnp.exp(jax.nn.sigmoid(zc) * LOG256 - 0.5 * LOG256)             # (2, 144)
    scales_ref[0] = jnp.concatenate([sc, sc[0:1, :] * sc[1:2, :]], axis=0)  # [sx, sy, sx*sy]

    # ---- scores z = 0.1 * (mdesc0^T mdesc1) / sqrt(D) ----------------------------------
    z = lax.dot_general(md0, md1, (((0,), (0,)), ((), ())),
                        preferred_element_type=jnp.float32) * (0.1 / math.sqrt(D))  # (N,N)

    # ---- log-space Sinkhorn with dustbin marginals, exp(z) hoisted out of the loop -----
    row1 = lax.broadcasted_iota(jnp.int32, (N, 1), 0)
    col1 = lax.broadcasted_iota(jnp.int32, (1, N), 1)
    log_mu = jnp.where(row1 == N - 1, math.log(P) + norm, norm).astype(jnp.float32)  # (N,1)
    log_nu = jnp.where(col1 == N - 1, math.log(P) + norm, norm).astype(jnp.float32)  # (1,N)

    # lse_j(z[i,j] + v[j]) = rowmax_i(z) + max(v) + log(sum_j E_row[i,j] * exp(v[j]-max(v)))
    # (mathematically identical, still overflow-safe: every exponent <= 0).
    zr_max = jnp.max(z, axis=1, keepdims=True)             # (N, 1)
    zc_max = jnp.max(z, axis=0, keepdims=True)             # (1, N)
    e_row = jnp.exp(z - zr_max)                            # (N, N), computed once
    e_col = jnp.exp(z - zc_max)                            # (N, N), computed once

    def one_iter(u, v):
        vmax = jnp.max(v, axis=1, keepdims=True)                              # (1, 1)
        ev = jnp.exp(v - vmax)                                                # (1, N)
        srow = jnp.sum(e_row * ev, axis=1, keepdims=True)                     # (N, 1)
        u = log_mu - (zr_max + vmax + jnp.log(srow))                          # (N, 1)
        umax = jnp.max(u, axis=0, keepdims=True)                              # (1, 1)
        eu = jnp.exp(u - umax)                                                # (N, 1)
        scol = jnp.sum(e_col * eu, axis=0, keepdims=True)                     # (1, N)
        v = log_nu - (zc_max + umax + jnp.log(scol))                          # (1, N)
        return u, v

    def body(_, carry):                                    # manual unroll x2
        u, v = one_iter(*carry)
        return one_iter(u, v)

    u0 = jnp.zeros((N, 1), jnp.float32)
    v0 = jnp.zeros((1, N), jnp.float32)
    u, v = lax.fori_loop(0, iters // 2, body, (u0, v0))
    if iters % 2:
        u, v = one_iter(u, v)

    # ---- epilogue: fold -norm and the dustbin bump into the u/v vectors ----------------
    u_fin = u - norm + bump * (row1 == N - 1).astype(jnp.float32)   # (N, 1)
    v_fin = v + bump * (col1 == N - 1).astype(jnp.float32)          # (1, N)
    scores_ref[0] = z + u_fin + v_fin


# ---------------------------------- module head ------------------------------------------
@functools.partial(jax.jit, static_argnames=("outdoor", "iters"))
def second_layer_head(desc0, desc1, params, outdoor=True, iters=SINKHORN_ITERS):
    """SecondLayer.forward from the GNN outputs (desc0/desc1, (B, 264, 145)) through
    final_proj, scale projections, score matrix, Sinkhorn and dustbin bump."""
    B = desc0.shape[0]
    bump = math.log(2.0) if outdoor else math.log(3.0)
    norm = -math.log(P + P)

    # conv weights in tap-major rows: wall[(ky*3+kx)*2 + o, c] = w_o[c, ky, kx]
    wall = jnp.transpose(jnp.stack([params["w_sx"], params["w_sy"]], axis=0),
                         (2, 3, 0, 1)).reshape(18, D).astype(jnp.float32)
    bconv = jnp.stack([params["b_sx"], params["b_sy"]]).reshape(2, 1).astype(jnp.float32)
    masks = _build_tap_masks()                             # (9, 144) 0/1 boundary masks

    # pre-cast MXU operands to bf16 (halved DMA/VMEM, no per-step in-kernel cast)
    wfp = params["w_fp"].astype(jnp.bfloat16)
    d0 = desc0.astype(jnp.bfloat16)
    d1 = desc1.astype(jnp.bfloat16)

    kernel = functools.partial(_head_kernel, iters=iters, bump=bump, norm=norm)
    scores, feats, scales3 = pl.pallas_call(
        kernel,
        out_shape=(jax.ShapeDtypeStruct((B, N, N), jnp.float32),
                   jax.ShapeDtypeStruct((2, B, D, N), jnp.float32),
                   jax.ShapeDtypeStruct((B, 3, P), jnp.float32)),
        grid_spec=pltpu.PrefetchScalarGridSpec(
            num_scalar_prefetch=0,
            grid=(B,),
            in_specs=[pl.BlockSpec((1, D, N), lambda b_: (b_, 0, 0)),   # desc0 (bf16)
                      pl.BlockSpec((1, D, N), lambda b_: (b_, 0, 0)),   # desc1 (bf16)
                      pl.BlockSpec((D, D), lambda b_: (0, 0)),          # final_proj W (bf16)
                      pl.BlockSpec((D, 1), lambda b_: (0, 0)),          # final_proj b
                      pl.BlockSpec((18, D), lambda b_: (0, 0)),         # conv taps
                      pl.BlockSpec((2, 1), lambda b_: (0, 0)),          # conv bias
                      pl.BlockSpec((9, P), lambda b_: (0, 0))],         # tap boundary masks
            out_specs=[pl.BlockSpec((1, N, N), lambda b_: (b_, 0, 0)),        # scores
                       pl.BlockSpec((2, 1, D, N), lambda b_: (0, b_, 0, 0)),  # features
                       pl.BlockSpec((1, 3, P), lambda b_: (b_, 0, 0))]),      # scales
        compiler_params=pltpu.CompilerParams(
            dimension_semantics=("parallel",)),
    )(d0, d1, wfp, params["b_fp"].reshape(D, 1), wall, bconv, masks)

    scale_x = scales3[:, 0:1, :]
    scale_y = scales3[:, 1:2, :]
    scale = scales3[:, 2:3, :]      # consumed by Iterative_expand_matrix (TODO(synk): undefined)
    features = feats.reshape(2 * B, D, N)   # == cat([mdesc0, mdesc1], dim=0)
    return {"scales": [scale_x, scale_y], "scale": scale,
            "scores": scores, "features": features}


def init_params(key):
    k1, k2, k3, k4, k5, k6 = jax.random.split(key, 6)
    return {
        "w_fp": (jax.random.normal(k1, (D, D), jnp.float32) / math.sqrt(D)),
        "b_fp": jax.random.normal(k2, (D,), jnp.float32) * 0.01,
        "w_sx": jax.random.normal(k3, (D, 3, 3), jnp.float32) / math.sqrt(9 * D),
        "b_sx": jnp.float32(0.01),
        "w_sy": jax.random.normal(k4, (D, 3, 3), jnp.float32) / math.sqrt(9 * D),
        "b_sy": jnp.float32(-0.01),
        "_unused": (k5, k6),
    }


if __name__ == "__main__":
    key = jax.random.PRNGKey(0)
    kp, kd0, kd1 = jax.random.split(key, 3)

    B = 2  # number of patches (left.shape[0]); keep even so v7x megacore stays balanced
    params = init_params(kp)
    # Synthetic GNN-output descriptors (B, 264, 145): 144 grid points + rubbish column.
    desc0 = jax.random.normal(kd0, (B, D, N), jnp.float32) * 0.5
    desc1 = jax.random.normal(kd1, (B, D, N), jnp.float32) * 0.5

    out = second_layer_head(desc0, desc1, params, outdoor=True)
    jax.block_until_ready(out["scores"])
    jax.block_until_ready(out["scales"][0])
    jax.block_until_ready(out["features"])

    assert out["scores"].shape == (B, N, N)
    assert out["scales"][0].shape == (B, 1, P)
    assert out["scale"].shape == (B, 1, P)
    assert out["features"].shape == (2 * B, D, N)
    assert bool(jnp.all(jnp.isfinite(out["scores"])))
    assert bool(jnp.all(jnp.isfinite(out["scales"][0])))
    assert bool(jnp.all(jnp.isfinite(out["features"])))
    print("KERNEL_OK")
</pallas_src>

<mosaic_0001>
module attributes {stable_mosaic.version = 11 : i64} {
  func.func @_head_kernel(%arg0: i32, %arg1: memref<1x264x145xbf16, #tpu.memory_space<vmem>>, %arg2: memref<1x264x145xbf16, #tpu.memory_space<vmem>>, %arg3: memref<264x264xbf16, #tpu.memory_space<vmem>>, %arg4: memref<264x1xf32, #tpu.memory_space<vmem>>, %arg5: memref<18x264xf32, #tpu.memory_space<vmem>>, %arg6: memref<2x1xf32, #tpu.memory_space<vmem>>, %arg7: memref<9x144xf32, #tpu.memory_space<vmem>>, %arg8: memref<1x145x145xf32, #tpu.memory_space<vmem>>, %arg9: memref<2x1x264x145xf32, #tpu.memory_space<vmem>>, %arg10: memref<1x3x144xf32, #tpu.memory_space<vmem>>) attributes {dimension_semantics = [#tpu.dimension_semantics<parallel>], iteration_bounds = array<i64: 2>, scalar_prefetch = 0 : i64, scratch_operands = 0 : i64, tpu.core_type = #tpu.core_type<tc>, window_params = [{transform_indices = @transform_0, window_bounds = array<i64: 1, 264, 145>}, {transform_indices = @transform_1, window_bounds = array<i64: 1, 264, 145>}, {pipeline_mode = #tpu.pipeline_mode<synchronous>, transform_indices = @transform_2, window_bounds = array<i64: 264, 264>}, {pipeline_mode = #tpu.pipeline_mode<synchronous>, transform_indices = @transform_3, window_bounds = array<i64: 264, 1>}, {pipeline_mode = #tpu.pipeline_mode<synchronous>, transform_indices = @transform_4, window_bounds = array<i64: 18, 264>}, {pipeline_mode = #tpu.pipeline_mode<synchronous>, transform_indices = @transform_5, window_bounds = array<i64: 2, 1>}, {pipeline_mode = #tpu.pipeline_mode<synchronous>, transform_indices = @transform_6, window_bounds = array<i64: 9, 144>}, {transform_indices = @transform_7, window_bounds = array<i64: 1, 145, 145>}, {transform_indices = @transform_8, window_bounds = array<i64: 2, 1, 264, 145>}, {transform_indices = @transform_9, window_bounds = array<i64: 1, 3, 144>}]} {
    %c0 = arith.constant 0 : index
    %c0_0 = arith.constant 0 : index
    %0 = vector.load %arg3[%c0, %c0_0] : memref<264x264xbf16, #tpu.memory_space<vmem>>, vector<264x264xbf16>
    %c0_1 = arith.constant 0 : index
    %c0_2 = arith.constant 0 : index
    %1 = vector.load %arg4[%c0_1, %c0_2] : memref<264x1xf32, #tpu.memory_space<vmem>>, vector<264x1xf32>
    %c0_3 = arith.constant 0 : index
    %c0_4 = arith.constant 0 : index
    %c0_5 = arith.constant 0 : index
    %2 = vector.load %arg1[%c0_3, %c0_4, %c0_5] : memref<1x264x145xbf16, #tpu.memory_space<vmem>>, vector<1x264x145xbf16>
    %3 = vector.shape_cast %2 : vector<1x264x145xbf16> to vector<264x145xbf16>
    %cst = arith.constant dense<0.000000e+00> : vector<264x145xf32>
    %4 = tpu.matmul %0, %3, %cst {dimension_numbers = #tpu.dot_dimension_numbers<[1], [0], [0], [1], [0, 0, 1, 1], [], []>} : vector<264x264xbf16>, vector<264x145xbf16>, vector<264x145xf32> -> vector<264x145xf32>
    %5 = vector.broadcast %1 : vector<264x1xf32> to vector<264x145xf32>
    %6 = arith.addf %4, %5 : vector<264x145xf32>
    %c0_6 = arith.constant 0 : index
    %c0_7 = arith.constant 0 : index
    %c0_8 = arith.constant 0 : index
    %7 = vector.load %arg2[%c0_6, %c0_7, %c0_8] : memref<1x264x145xbf16, #tpu.memory_space<vmem>>, vector<1x264x145xbf16>
    %8 = vector.shape_cast %7 : vector<1x264x145xbf16> to vector<264x145xbf16>
    %cst_9 = arith.constant dense<0.000000e+00> : vector<264x145xf32>
    %9 = tpu.matmul %0, %8, %cst_9 {dimension_numbers = #tpu.dot_dimension_numbers<[1], [0], [0], [1], [0, 0, 1, 1], [], []>} : vector<264x264xbf16>, vector<264x145xbf16>, vector<264x145xf32> -> vector<264x145xf32>
    %10 = vector.broadcast %1 : vector<264x1xf32> to vector<264x145xf32>
    %11 = arith.addf %9, %10 : vector<264x145xf32>
    %c0_10 = arith.constant 0 : index
    %c0_11 = arith.constant 0 : index
    %c0_12 = arith.constant 0 : index
    %c0_13 = arith.constant 0 : index
    %12 = vector.load %arg9[%c0_10, %c0_11, %c0_12, %c0_13] : memref<2x1x264x145xf32, #tpu.memory_space<vmem>>, vector<1x1x264x145xf32>
    %13 = vector.shape_cast %12 : vector<1x1x264x145xf32> to vector<264x145xf32>
    %14 = vector.shape_cast %6 : vector<264x145xf32> to vector<1x1x264x145xf32>
    tpu.vector_store %arg9[%c0_10, %c0_11, %c0_12, %c0_13], %14 {strides = array<i32>} : memref<2x1x264x145xf32, #tpu.memory_space<vmem>>, vector<1x1x264x145xf32>,
    %c1 = arith.constant 1 : index
    %c0_14 = arith.constant 0 : index
    %c0_15 = arith.constant 0 : index
    %c0_16 = arith.constant 0 : index
    %15 = vector.load %arg9[%c1, %c0_14, %c0_15, %c0_16] : memref<2x1x264x145xf32, #tpu.memory_space<vmem>>, vector<1x1x264x145xf32>
    %16 = vector.shape_cast %15 : vector<1x1x264x145xf32> to vector<264x145xf32>
    %17 = vector.shape_cast %11 : vector<264x145xf32> to vector<1x1x264x145xf32>
    tpu.vector_store %arg9[%c1, %c0_14, %c0_15, %c0_16], %17 {strides = array<i32>} : memref<2x1x264x145xf32, #tpu.memory_space<vmem>>, vector<1x1x264x145xf32>,
    %18 = vector.extract_strided_slice %11 {offsets = [0, 0], sizes = [264, 144], strides = [1, 1]} : vector<264x145xf32> to vector<264x144xf32>
    %c0_17 = arith.constant 0 : index
    %c0_18 = arith.constant 0 : index
    %19 = vector.load %arg5[%c0_17, %c0_18] : memref<18x264xf32, #tpu.memory_space<vmem>>, vector<18x264xf32>
    %cst_19 = arith.constant dense<0.000000e+00> : vector<18x144xf32>
    %20 = tpu.matmul %19, %18, %cst_19 {dimension_numbers = #tpu.dot_dimension_numbers<[1], [0], [0], [1], [0, 0, 1, 1], [], []>} : vector<18x264xf32>, vector<264x144xf32>, vector<18x144xf32> -> vector<18x144xf32>
    %cst_20 = arith.constant 0.000000e+00 : f32
    %21 = vector.broadcast %cst_20 : f32 to vector<2x144xf32>
    %22 = vector.extract_strided_slice %20 {offsets = [0, 0], sizes = [2, 144], strides = [1, 1]} : vector<18x144xf32> to vector<2x144xf32>
    %cst_21 = arith.constant 0.000000e+00 : f32
    %23 = vector.broadcast %cst_21 : f32 to vector<2x13xf32>
    %24 = vector.extract_strided_slice %22 {offsets = [0, 0], sizes = [2, 131], strides = [1, 1]} : vector<2x144xf32> to vector<2x131xf32>
    %25 = tpu.concatenate %23, %24 in 1 : vector<2x13xf32>, vector<2x131xf32> -> vector<2x144xf32>
    %c0_22 = arith.constant 0 : index
    %c0_23 = arith.constant 0 : index
    %26 = vector.load %arg7[%c0_22, %c0_23] : memref<9x144xf32, #tpu.memory_space<vmem>>, vector<1x144xf32>
    %27 = vector.broadcast %26 : vector<1x144xf32> to vector<2x144xf32>
    %28 = arith.mulf %27, %25 : vector<2x144xf32>
    %29 = arith.addf %21, %28 : vector<2x144xf32>
    %30 = vector.extract_strided_slice %20 {offsets = [2, 0], sizes = [2, 144], strides = [1, 1]} : vector<18x144xf32> to vector<2x144xf32>
    %cst_24 = arith.constant 0.000000e+00 : f32
    %31 = vector.broadcast %cst_24 : f32 to vector<2x12xf32>
    %32 = vector.extract_strided_slice %30 {offsets = [0, 0], sizes = [2, 132], strides = [1, 1]} : vector<2x144xf32> to vector<2x132xf32>
    %33 = tpu.concatenate %31, %32 in 1 : vector<2x12xf32>, vector<2x132xf32> -> vector<2x144xf32>
    %c1_25 = arith.constant 1 : index
    %c0_26 = arith.constant 0 : index
    %34 = vector.load %arg7[%c1_25, %c0_26] : memref<9x144xf32, #tpu.memory_space<vmem>>, vector<1x144xf32>
    %35 = vector.broadcast %34 : vector<1x144xf32> to vector<2x144xf32>
    %36 = arith.mulf %35, %33 : vector<2x144xf32>
    %37 = arith.addf %29, %36 : vector<2x144xf32>
    %38 = vector.extract_strided_slice %20 {offsets = [4, 0], sizes = [2, 144], strides = [1, 1]} : vector<18x144xf32> to vector<2x144xf32>
    %cst_27 = arith.constant 0.000000e+00 : f32
    %39 = vector.broadcast %cst_27 : f32 to vector<2x11xf32>
    %40 = vector.extract_strided_slice %38 {offsets = [0, 0], sizes = [2, 133], strides = [1, 1]} : vector<2x144xf32> to vector<2x133xf32>
    %41 = tpu.concatenate %39, %40 in 1 : vector<2x11xf32>, vector<2x133xf32> -> vector<2x144xf32>
    %c2 = arith.constant 2 : index
    %c0_28 = arith.constant 0 : index
    %42 = vector.load %arg7[%c2, %c0_28] : memref<9x144xf32, #tpu.memory_space<vmem>>, vector<1x144xf32>
    %43 = vector.broadcast %42 : vector<1x144xf32> to vector<2x144xf32>
    %44 = arith.mulf %43, %41 : vector<2x144xf32>
    %45 = arith.addf %37, %44 : vector<2x144xf32>
    %46 = vector.extract_strided_slice %20 {offsets = [6, 0], sizes = [2, 144], strides = [1, 1]} : vector<18x144xf32> to vector<2x144xf32>
    %cst_29 = arith.constant 0.000000e+00 : f32
    %47 = vector.broadcast %cst_29 : f32 to vector<2x1xf32>
    %48 = vector.extract_strided_slice %46 {offsets = [0, 0], sizes = [2, 143], strides = [1, 1]} : vector<2x144xf32> to vector<2x143xf32>
    %49 = tpu.concatenate %47, %48 in 1 : vector<2x1xf32>, vector<2x143xf32> -> vector<2x144xf32>
    %c3 = arith.constant 3 : index
    %c0_30 = arith.constant 0 : index
    %50 = vector.load %arg7[%c3, %c0_30] : memref<9x144xf32, #tpu.memory_space<vmem>>, vector<1x144xf32>
    %51 = vector.broadcast %50 : vector<1x144xf32> to vector<2x144xf32>
    %52 = arith.mulf %51, %49 : vector<2x144xf32>
    %53 = arith.addf %45, %52 : vector<2x144xf32>
    %54 = vector.extract_strided_slice %20 {offsets = [8, 0], sizes = [2, 144], strides = [1, 1]} : vector<18x144xf32> to vector<2x144xf32>
    %c4 = arith.constant 4 : index
    %c0_31 = arith.constant 0 : index
    %55 = vector.load %arg7[%c4, %c0_31] : memref<9x144xf32, #tpu.memory_space<vmem>>, vector<1x144xf32>
    %56 = vector.broadcast %55 : vector<1x144xf32> to vector<2x144xf32>
    %57 = arith.mulf %56, %54 : vector<2x144xf32>
    %58 = arith.addf %53, %57 : vector<2x144xf32>
    %59 = vector.extract_strided_slice %20 {offsets = [10, 0], sizes = [2, 144], strides = [1, 1]} : vector<18x144xf32> to vector<2x144xf32>
    %60 = vector.extract_strided_slice %59 {offsets = [0, 1], sizes = [2, 143], strides = [1, 1]} : vector<2x144xf32> to vector<2x143xf32>
    %cst_32 = arith.constant 0.000000e+00 : f32
    %61 = vector.broadcast %cst_32 : f32 to vector<2x1xf32>
    %62 = tpu.concatenate %60, %61 in 1 : vector<2x143xf32>, vector<2x1xf32> -> vector<2x144xf32>
    %c5 = arith.constant 5 : index
    %c0_33 = arith.constant 0 : index
    %63 = vector.load %arg7[%c5, %c0_33] : memref<9x144xf32, #tpu.memory_space<vmem>>, vector<1x144xf32>
    %64 = vector.broadcast %63 : vector<1x144xf32> to vector<2x144xf32>
    %65 = arith.mulf %64, %62 : vector<2x144xf32>
    %66 = arith.addf %58, %65 : vector<2x144xf32>
    %67 = vector.extract_strided_slice %20 {offsets = [12, 0], sizes = [2, 144], strides = [1, 1]} : vector<18x144xf32> to vector<2x144xf32>
    %68 = vector.extract_strided_slice %67 {offsets = [0, 11], sizes = [2, 133], strides = [1, 1]} : vector<2x144xf32> to vector<2x133xf32>
    %cst_34 = arith.constant 0.000000e+00 : f32
    %69 = vector.broadcast %cst_34 : f32 to vector<2x11xf32>
    %70 = tpu.concatenate %68, %69 in 1 : vector<2x133xf32>, vector<2x11xf32> -> vector<2x144xf32>
    %c6 = arith.constant 6 : index
    %c0_35 = arith.constant 0 : index
    %71 = vector.load %arg7[%c6, %c0_35] : memref<9x144xf32, #tpu.memory_space<vmem>>, vector<1x144xf32>
    %72 = vector.broadcast %71 : vector<1x144xf32> to vector<2x144xf32>
    %73 = arith.mulf %72, %70 : vector<2x144xf32>
    %74 = arith.addf %66, %73 : vector<2x144xf32>
    %75 = vector.extract_strided_slice %20 {offsets = [14, 0], sizes = [2, 144], strides = [1, 1]} : vector<18x144xf32> to vector<2x144xf32>
    %76 = vector.extract_strided_slice %75 {offsets = [0, 12], sizes = [2, 132], strides = [1, 1]} : vector<2x144xf32> to vector<2x132xf32>
    %cst_36 = arith.constant 0.000000e+00 : f32
    %77 = vector.broadcast %cst_36 : f32 to vector<2x12xf32>
    %78 = tpu.concatenate %76, %77 in 1 : vector<2x132xf32>, vector<2x12xf32> -> vector<2x144xf32>
    %c7 = arith.constant 7 : index
    %c0_37 = arith.constant 0 : index
    %79 = vector.load %arg7[%c7, %c0_37] : memref<9x144xf32, #tpu.memory_space<vmem>>, vector<1x144xf32>
    %80 = vector.broadcast %79 : vector<1x144xf32> to vector<2x144xf32>
    %81 = arith.mulf %80, %78 : vector<2x144xf32>
    %82 = arith.addf %74, %81 : vector<2x144xf32>
    %83 = vector.extract_strided_slice %20 {offsets = [16, 0], sizes = [2, 144], strides = [1, 1]} : vector<18x144xf32> to vector<2x144xf32>
    %84 = vector.extract_strided_slice %83 {offsets = [0, 13], sizes = [2, 131], strides = [1, 1]} : vector<2x144xf32> to vector<2x131xf32>
    %cst_38 = arith.constant 0.000000e+00 : f32
    %85 = vector.broadcast %cst_38 : f32 to vector<2x13xf32>
    %86 = tpu.concatenate %84, %85 in 1 : vector<2x131xf32>, vector<2x13xf32> -> vector<2x144xf32>
    %c8 = arith.constant 8 : index
    %c0_39 = arith.constant 0 : index
    %87 = vector.load %arg7[%c8, %c0_39] : memref<9x144xf32, #tpu.memory_space<vmem>>, vector<1x144xf32>
    %88 = vector.broadcast %87 : vector<1x144xf32> to vector<2x144xf32>
    %89 = arith.mulf %88, %86 : vector<2x144xf32>
    %90 = arith.addf %82, %89 : vector<2x144xf32>
    %c0_40 = arith.constant 0 : index
    %c0_41 = arith.constant 0 : index
    %91 = vector.load %arg6[%c0_40, %c0_41] : memref<2x1xf32, #tpu.memory_space<vmem>>, vector<2x1xf32>
    %92 = vector.broadcast %91 : vector<2x1xf32> to vector<2x144xf32>
    %93 = arith.addf %90, %92 : vector<2x144xf32>
    %94 = arith.negf %93 : vector<2x144xf32>
    %95 = math.exp %94 : vector<2x144xf32>
    %cst_42 = arith.constant 1.000000e+00 : f32
    %96 = vector.broadcast %cst_42 : f32 to vector<2x144xf32>
    %97 = arith.addf %96, %95 : vector<2x144xf32>
    %98 = arith.divf %96, %97 : vector<2x144xf32>
    %cst_43 = arith.constant 5.54517746 : f32
    %99 = vector.broadcast %cst_43 : f32 to vector<2x144xf32>
    %100 = arith.mulf %98, %99 : vector<2x144xf32>
    %cst_44 = arith.constant 2.77258873 : f32
    %101 = vector.broadcast %cst_44 : f32 to vector<2x144xf32>
    %102 = arith.subf %100, %101 : vector<2x144xf32>
    %103 = math.exp %102 : vector<2x144xf32>
    %104 = vector.extract_strided_slice %103 {offsets = [0, 0], sizes = [1, 144], strides = [1, 1]} : vector<2x144xf32> to vector<1x144xf32>
    %105 = vector.extract_strided_slice %103 {offsets = [1, 0], sizes = [1, 144], strides = [1, 1]} : vector<2x144xf32> to vector<1x144xf32>
    %106 = arith.mulf %104, %105 : vector<1x144xf32>
    %107 = tpu.concatenate %103, %106 in 0 : vector<2x144xf32>, vector<1x144xf32> -> vector<3x144xf32>
    %c0_45 = arith.constant 0 : index
    %c0_46 = arith.constant 0 : index
    %c0_47 = arith.constant 0 : index
    %108 = vector.load %arg10[%c0_45, %c0_46, %c0_47] : memref<1x3x144xf32, #tpu.memory_space<vmem>>, vector<1x3x144xf32>
    %109 = vector.shape_cast %108 : vector<1x3x144xf32> to vector<3x144xf32>
    %110 = vector.shape_cast %107 : vector<3x144xf32> to vector<1x3x144xf32>
    tpu.vector_store %arg10[%c0_45, %c0_46, %c0_47], %110 {strides = array<i32>} : memref<1x3x144xf32, #tpu.memory_space<vmem>>, vector<1x3x144xf32>,
    %cst_48 = arith.constant dense<0.000000e+00> : vector<145x145xf32>
    %111 = tpu.matmul %6, %11, %cst_48 {dimension_numbers = #tpu.dot_dimension_numbers<[0], [0], [1], [1], [0, 1, 1, 1], [], []>} : vector<264x145xf32>, vector<264x145xf32>, vector<145x145xf32> -> vector<145x145xf32>
    %cst_49 = arith.constant 0.00615457445 : f32
    %112 = vector.broadcast %cst_49 : f32 to vector<145x145xf32>
    %113 = arith.mulf %111, %112 : vector<145x145xf32>
    %114 = tpu.iota {dimensions = array<i32: 0>} : vector<145x1xi32>
    %115 = tpu.iota {dimensions = array<i32: 1>} : vector<1x145xi32>
    %c144_i32 = arith.constant 144 : i32
    %116 = vector.broadcast %c144_i32 : i32 to vector<145x1xi32>
    %117 = arith.cmpi eq, %114, %116 : vector<145x1xi32>
    %cst_50 = arith.constant -0.693147182 : f32
    %cst_51 = arith.constant -5.66296053 : f32
    %118 = vector.broadcast %cst_50 : f32 to vector<145x1xf32>
    %119 = vector.broadcast %cst_51 : f32 to vector<145x1xf32>
    %120 = arith.select %117, %118, %119 : vector<145x1xi1>, vector<145x1xf32>
    %c144_i32_52 = arith.constant 144 : i32
    %121 = vector.broadcast %c144_i32_52 : i32 to vector<1x145xi32>
    %122 = arith.cmpi eq, %115, %121 : vector<1x145xi32>
    %cst_53 = arith.constant -0.693147182 : f32
    %cst_54 = arith.constant -5.66296053 : f32
    %123 = vector.broadcast %cst_53 : f32 to vector<1x145xf32>
    %124 = vector.broadcast %cst_54 : f32 to vector<1x145xf32>
    %125 = arith.select %122, %123, %124 : vector<1x145xi1>, vector<1x145xf32>
    %cst_55 = arith.constant dense<0xFF800000> : vector<145xf32>
    %126 = vector.multi_reduction <maximumf>, %113, %cst_55 [1] : vector<145x145xf32> to vector<145xf32>
    %127 = vector.shape_cast %126 : vector<145xf32> to vector<145x1xf32>
    %cst_56 = arith.constant dense<0xFF800000> : vector<145xf32>
    %128 = vector.multi_reduction <maximumf>, %113, %cst_56 [0] : vector<145x145xf32> to vector<145xf32>
    %129 = vector.shape_cast %128 : vector<145xf32> to vector<1x145xf32>
    %130 = vector.broadcast %127 : vector<145x1xf32> to vector<145x145xf32>
    %131 = arith.subf %113, %130 : vector<145x145xf32>
    %132 = math.exp %131 : vector<145x145xf32>
    %133 = vector.broadcast %129 : vector<1x145xf32> to vector<145x145xf32>
    %134 = arith.subf %113, %133 : vector<145x145xf32>
    %135 = math.exp %134 : vector<145x145xf32>
    %cst_57 = arith.constant 0.000000e+00 : f32
    %136 = vector.broadcast %cst_57 : f32 to vector<145x1xf32>
    %cst_58 = arith.constant 0.000000e+00 : f32
    %137 = vector.broadcast %cst_58 : f32 to vector<1x145xf32>
    %c0_i32 = arith.constant 0 : i32
    %c50_i32 = arith.constant 50 : i32
    %138 = arith.addi %c0_i32, %c50_i32 : i32
    %c1_i32 = arith.constant 1 : i32
    %139:2 = scf.for %arg11 = %c0_i32 to %138 step %c1_i32 iter_args(%arg12 = %136, %arg13 = %137) -> (vector<145x1xf32>, vector<1x145xf32>)  : i32 {
      %cst_67 = arith.constant dense<0xFF800000> : vector<1xf32>
      %163 = vector.multi_reduction <maximumf>, %arg13, %cst_67 [1] : vector<1x145xf32> to vector<1xf32>
      %164 = vector.shape_cast %163 : vector<1xf32> to vector<1x1xf32>
      %165 = vector.broadcast %164 : vector<1x1xf32> to vector<1x145xf32>
      %166 = arith.subf %arg13, %165 : vector<1x145xf32>
      %167 = math.exp %166 : vector<1x145xf32>
      %168 = vector.broadcast %167 : vector<1x145xf32> to vector<145x145xf32>
      %169 = arith.mulf %132, %168 : vector<145x145xf32>
      %cst_68 = arith.constant dense<0.000000e+00> : vector<145xf32>
      %170 = vector.multi_reduction <add>, %169, %cst_68 [1] : vector<145x145xf32> to vector<145xf32>
      %171 = vector.shape_cast %170 : vector<145xf32> to vector<145x1xf32>
      %172 = vector.broadcast %164 : vector<1x1xf32> to vector<145x1xf32>
      %173 = arith.addf %127, %172 : vector<145x1xf32>
      %174 = math.log %171 : vector<145x1xf32>
      %175 = arith.addf %173, %174 : vector<145x1xf32>
      %176 = arith.subf %120, %175 : vector<145x1xf32>
      %cst_69 = arith.constant dense<0xFF800000> : vector<1xf32>
      %177 = vector.multi_reduction <maximumf>, %176, %cst_69 [0] : vector<145x1xf32> to vector<1xf32>
      %178 = vector.shape_cast %177 : vector<1xf32> to vector<1x1xf32>
      %179 = vector.broadcast %178 : vector<1x1xf32> to vector<145x1xf32>
      %180 = arith.subf %176, %179 : vector<145x1xf32>
      %181 = math.exp %180 : vector<145x1xf32>
      %182 = vector.broadcast %181 : vector<145x1xf32> to vector<145x145xf32>
      %183 = arith.mulf %135, %182 : vector<145x145xf32>
      %cst_70 = arith.constant dense<0.000000e+00> : vector<145xf32>
      %184 = vector.multi_reduction <add>, %183, %cst_70 [0] : vector<145x145xf32> to vector<145xf32>
      %185 = vector.shape_cast %184 : vector<145xf32> to vector<1x145xf32>
      %186 = vector.broadcast %178 : vector<1x1xf32> to vector<1x145xf32>
      %187 = arith.addf %129, %186 : vector<1x145xf32>
      %188 = math.log %185 : vector<1x145xf32>
      %189 = arith.addf %187, %188 : vector<1x145xf32>
      %190 = arith.subf %125, %189 : vector<1x145xf32>
      %cst_71 = arith.constant dense<0xFF800000> : vector<1xf32>
      %191 = vector.multi_reduction <maximumf>, %190, %cst_71 [1] : vector<1x145xf32> to vector<1xf32>
      %192 = vector.shape_cast %191 : vector<1xf32> to vector<1x1xf32>
      %193 = vector.broadcast %192 : vector<1x1xf32> to vector<1x145xf32>
      %194 = arith.subf %190, %193 : vector<1x145xf32>
      %195 = math.exp %194 : vector<1x145xf32>
      %196 = vector.broadcast %195 : vector<1x145xf32> to vector<145x145xf32>
      %197 = arith.mulf %132, %196 : vector<145x145xf32>
      %cst_72 = arith.constant dense<0.000000e+00> : vector<145xf32>
      %198 = vector.multi_reduction <add>, %197, %cst_72 [1] : vector<145x145xf32> to vector<145xf32>
      %199 = vector.shape_cast %198 : vector<145xf32> to vector<145x1xf32>
      %200 = vector.broadcast %192 : vector<1x1xf32> to vector<145x1xf32>
      %201 = arith.addf %127, %200 : vector<145x1xf32>
      %202 = math.log %199 : vector<145x1xf32>
      %203 = arith.addf %201, %202 : vector<145x1xf32>
      %204 = arith.subf %120, %203 : vector<145x1xf32>
      %cst_73 = arith.constant dense<0xFF800000> : vector<1xf32>
      %205 = vector.multi_reduction <maximumf>, %204, %cst_73 [0] : vector<145x1xf32> to vector<1xf32>
      %206 = vector.shape_cast %205 : vector<1xf32> to vector<1x1xf32>
      %207 = vector.broadcast %206 : vector<1x1xf32> to vector<145x1xf32>
      %208 = arith.subf %204, %207 : vector<145x1xf32>
      %209 = math.exp %208 : vector<145x1xf32>
      %210 = vector.broadcast %209 : vector<145x1xf32> to vector<145x145xf32>
      %211 = arith.mulf %135, %210 : vector<145x145xf32>
      %cst_74 = arith.constant dense<0.000000e+00> : vector<145xf32>
      %212 = vector.multi_reduction <add>, %211, %cst_74 [0] : vector<145x145xf32> to vector<145xf32>
      %213 = vector.shape_cast %212 : vector<145xf32> to vector<1x145xf32>
      %214 = vector.broadcast %206 : vector<1x1xf32> to vector<1x145xf32>
      %215 = arith.addf %129, %214 : vector<1x145xf32>
      %216 = math.log %213 : vector<1x145xf32>
      %217 = arith.addf %215, %216 : vector<1x145xf32>
      %218 = arith.subf %125, %217 : vector<1x145xf32>
      scf.yield %204, %218 : vector<145x1xf32>, vector<1x145xf32>
    }
    %cst_59 = arith.constant -5.66296053 : f32
    %140 = vector.broadcast %cst_59 : f32 to vector<145x1xf32>
    %141 = arith.subf %139#0, %140 : vector<145x1xf32>
    %c144_i32_60 = arith.constant 144 : i32
    %142 = vector.broadcast %c144_i32_60 : i32 to vector<145x1xi32>
    %143 = arith.cmpi eq, %114, %142 : vector<145x1xi32>
    %144 = arith.extui %143 : vector<145x1xi1> to vector<145x1xi32>
    %145 = arith.sitofp %144 : vector<145x1xi32> to vector<145x1xf32>
    %cst_61 = arith.constant 0.693147182 : f32
    %146 = vector.broadcast %cst_61 : f32 to vector<145x1xf32>
    %147 = arith.mulf %146, %145 : vector<145x1xf32>
    %148 = arith.addf %141, %147 : vector<145x1xf32>
    %c144_i32_62 = arith.constant 144 : i32
    %149 = vector.broadcast %c144_i32_62 : i32 to vector<1x145xi32>
    %150 = arith.cmpi eq, %115, %149 : vector<1x145xi32>
    %151 = arith.extui %150 : vector<1x145xi1> to vector<1x145xi32>
    %152 = arith.sitofp %151 : vector<1x145xi32> to vector<1x145xf32>
    %cst_63 = arith.constant 0.693147182 : f32
    %153 = vector.broadcast %cst_63 : f32 to vector<1x145xf32>
    %154 = arith.mulf %153, %152 : vector<1x145xf32>
    %155 = arith.addf %139#1, %154 : vector<1x145xf32>
    %156 = vector.broadcast %148 : vector<145x1xf32> to vector<145x145xf32>
    %157 = arith.addf %113, %156 : vector<145x145xf32>
    %158 = vector.broadcast %155 : vector<1x145xf32> to vector<145x145xf32>
    %159 = arith.addf %157, %158 : vector<145x145xf32>
    %c0_64 = arith.constant 0 : index
    %c0_65 = arith.constant 0 : index
    %c0_66 = arith.constant 0 : index
    %160 = vector.load %arg8[%c0_64, %c0_65, %c0_66] : memref<1x145x145xf32, #tpu.memory_space<vmem>>, vector<1x145x145xf32>
    %161 = vector.shape_cast %160 : vector<1x145x145xf32> to vector<145x145xf32>
    %162 = vector.shape_cast %159 : vector<145x145xf32> to vector<1x145x145xf32>
    tpu.vector_store %arg8[%c0_64, %c0_65, %c0_66], %162 {strides = array<i32>} : memref<1x145x145xf32, #tpu.memory_space<vmem>>, vector<1x145x145xf32>,
    return
  }
  func.func @transform_0(%arg0: i32) -> (i32, i32, i32) {
    %c0_i32 = arith.constant 0 : i32
    %c0_i32_0 = arith.constant 0 : i32
    %c0_i32_1 = arith.constant 0 : i32
    return %arg0, %c0_i32, %c0_i32_0 : i32, i32, i32
  }
  func.func @transform_1(%arg0: i32) -> (i32, i32, i32) {
    %c0_i32 = arith.constant 0 : i32
    %c0_i32_0 = arith.constant 0 : i32
    %c0_i32_1 = arith.constant 0 : i32
    return %arg0, %c0_i32, %c0_i32_0 : i32, i32, i32
  }
  func.func @transform_2(%arg0: i32) -> (i32, i32) {
    %c0_i32 = arith.constant 0 : i32
    %c0_i32_0 = arith.constant 0 : i32
    %c0_i32_1 = arith.constant 0 : i32
    return %c0_i32, %c0_i32_0 : i32, i32
  }
  func.func @transform_3(%arg0: i32) -> (i32, i32) {
    %c0_i32 = arith.constant 0 : i32
    %c0_i32_0 = arith.constant 0 : i32
    %c0_i32_1 = arith.constant 0 : i32
    return %c0_i32, %c0_i32_0 : i32, i32
  }
  func.func @transform_4(%arg0: i32) -> (i32, i32) {
    %c0_i32 = arith.constant 0 : i32
    %c0_i32_0 = arith.constant 0 : i32
    %c0_i32_1 = arith.constant 0 : i32
    return %c0_i32, %c0_i32_0 : i32, i32
  }
  func.func @transform_5(%arg0: i32) -> (i32, i32) {
    %c0_i32 = arith.constant 0 : i32
    %c0_i32_0 = arith.constant 0 : i32
    %c0_i32_1 = arith.constant 0 : i32
    return %c0_i32, %c0_i32_0 : i32, i32
  }
  func.func @transform_6(%arg0: i32) -> (i32, i32) {
    %c0_i32 = arith.constant 0 : i32
    %c0_i32_0 = arith.constant 0 : i32
    %c0_i32_1 = arith.constant 0 : i32
    return %c0_i32, %c0_i32_0 : i32, i32
  }
  func.func @transform_7(%arg0: i32) -> (i32, i32, i32) {
    %c0_i32 = arith.constant 0 : i32
    %c0_i32_0 = arith.constant 0 : i32
    %c0_i32_1 = arith.constant 0 : i32
    return %arg0, %c0_i32, %c0_i32_0 : i32, i32, i32
  }
  func.func @transform_8(%arg0: i32) -> (i32, i32, i32, i32) {
    %c0_i32 = arith.constant 0 : i32
    %c0_i32_0 = arith.constant 0 : i32
    %c0_i32_1 = arith.constant 0 : i32
    %c0_i32_2 = arith.constant 0 : i32
    return %c0_i32, %arg0, %c0_i32_0, %c0_i32_1 : i32, i32, i32, i32
  }
  func.func @transform_9(%arg0: i32) -> (i32, i32, i32) {
    %c0_i32 = arith.constant 0 : i32
    %c0_i32_0 = arith.constant 0 : i32
    %c0_i32_1 = arith.constant 0 : i32
    return %arg0, %c0_i32, %c0_i32_0 : i32, i32, i32
  }
}

</mosaic_0001>

<llo_original>
// kernel: second_layer_head.1
$region0: #{second_layer_head.1}
  #allocation0 [shape = 'u32[]', space=smem, size = 0x4, offset = 0x4, fixed_abs, tag = 'smem constant byte address 0x4 - core index']
  #allocation1 [shape = 'u32[72,128]{1,0:T(1,128)}', space=vmem, size = 0x9000, scoped, tag = 'internal scratch']
  %s0 = inlined_call_operand.vmem [shape: bf16[2,264,145], index: 0, kind: input, shape index: {}]
  %s1 = inlined_call_operand.vmem [shape: bf16[2,264,145], index: 1, kind: input, shape index: {}]
  %s2 = inlined_call_operand.vmem [shape: bf16[264,264], index: 2, kind: input, shape index: {}]
  %s3 = inlined_call_operand.vmem [shape: f32[264,1], index: 3, kind: input, shape index: {}]
  %s4 = inlined_call_operand.vmem [shape: f32[18,264], index: 4, kind: input, shape index: {}]
  %s5 = inlined_call_operand.vmem [shape: f32[2,1], index: 5, kind: input, shape index: {}]
  %s6 = inlined_call_operand.vmem [shape: f32[9,144], index: 6, kind: input, shape index: {}]
  %s7 = inlined_call_operand.vmem [shape: f32[2,145,145], index: 7, kind: output, shape index: {0}]
  %s8 = inlined_call_operand.vmem [shape: f32[2,2,264,145], index: 8, kind: output, shape index: {1}]
  %s9 = inlined_call_operand.vmem [shape: f32[2,3,144], index: 9, kind: output, shape index: {2}]
  %10 = xla_tuple %s7, %s8, %s9
  %s11 = sld [smem:[#allocation0]]
  $region103: #{second_layer_head.1} parent=0
    _
  %s13 = ssub.s32 1, %s11
  %s14 = scalar_select 0, %s13, %s11
  $region1: #{second_layer_head.1} parent=0
    #allocation2 [shape = 'u8[1081344]{0}', space=vmem, size = 0x108000, scoped, tag = 'output window, operand 1']
    loop: start=0, step=1, limit=4
    $region2: #{second_layer_head.1} parent=1 // loop_pre_header
      _
    $region3: #{second_layer_head.1} parent=1 // loop_header
      %s16 = sphi 0, %s20
      %p17 = scmp.ge.s32.totalorder %s16, 4
      %s26 = sphi 0, %s28
      %s29 = sphi 0, %s26
      %s30 = sphi 0, %s29
      %s46 = sphi 0, %s30
      %s52 = sphi 0, %s54
      %s55 = sphi 0, %s52
      %s56 = sphi 0, %s55
      %s72 = sphi 0, %s56
      %s76 = sphi 0, %s76
      %s78 = sphi 0, %s76
      %s79 = sphi 0, %s78
      %s93 = sphi 0, %s79
      %s97 = sphi 0, %s97
      %s99 = sphi 0, %s97
      %s100 = sphi 0, %s99
      %s114 = sphi 0, %s100
      %s118 = sphi 0, %s118
      %s120 = sphi 0, %s118
      %s121 = sphi 0, %s120
      %s135 = sphi 0, %s121
      %s139 = sphi 0, %s139
      %s141 = sphi 0, %s139
      %s142 = sphi 0, %s141
      %s156 = sphi 0, %s142
      %s160 = sphi 0, %s160
      %s162 = sphi 0, %s160
      %s163 = sphi 0, %s162
      %s177 = sphi 0, %s163
      %s183 = sphi 0, %s185
      %s186 = sphi 0, %s183
      %s187 = sphi 0, %s186
      %s203 = sphi 0, %s187
      %s209 = sphi 0, %s211
      %s212 = sphi 0, %s209
      %s213 = sphi 0, %s212
      %s229 = sphi 0, %s213
      %s235 = sphi 0, %s237
      %s238 = sphi 0, %s235
      %s239 = sphi 0, %s238
      %s255 = sphi 0, %s239
    $region4: #{second_layer_head.1} parent=1 // loop_header_branch
      %19 = sbr.rel (%p17) target = $region8
    $region5: #{second_layer_head.1} parent=1 // loop_body
      %s21 = ssub.s32 %s16, 1
      %s22 = ssub.s32 %s16, 2
      %s23 = sadd.s32 %s16, 1
      %s24 = ssub.s32 %s16, %s23
      %p25 = scmp.eq.s32.totalorder %s24, 0
      %s27 = sadd.s32 %s26, 1
      %s28 = scalar_select %p25, %s26, %s27
      %p31 = pneg %p25
      %p32 = scmp.eq.s32.totalorder %s16, 1
      %p33 = por %p31, %p32
      %p34 = scmp.ne.s32.totalorder %s26, %s29
      %p35 = scmp.eq.s32.totalorder %s16, 0
      %p36 = por %p34, %p35
      %p37 = scmp.ne.s32.totalorder %s26, %s29
      %p38 = scmp.eq.s32.totalorder %s21, 1
      %p39 = por %p37, %p38
      %p40 = scmp.ne.s32.totalorder %s29, %s30
      %p41 = scmp.eq.s32.totalorder %s21, 0
      %p42 = por %p40, %p41
      %p43 = scmp.ne.s32.totalorder %s29, %s30
      %p44 = scmp.eq.s32.totalorder %s22, 1
      %p45 = por %p43, %p44
      %p47 = scmp.ne.s32.totalorder %s30, %s46
      %p48 = scmp.eq.s32.totalorder %s22, 0
      %p49 = por %p47, %p48
      %s50 = ssub.s32 %s16, %s23
      %p51 = scmp.eq.s32.totalorder %s50, 0
      %s53 = sadd.s32 %s52, 1
      %s54 = scalar_select %p51, %s52, %s53
      %p57 = pneg %p51
      %p58 = scmp.eq.s32.totalorder %s16, 1
      %p59 = por %p57, %p58
      %p60 = scmp.ne.s32.totalorder %s52, %s55
      %p61 = scmp.eq.s32.totalorder %s16, 0
      %p62 = por %p60, %p61
      %p63 = scmp.ne.s32.totalorder %s52, %s55
      %p64 = scmp.eq.s32.totalorder %s21, 1
      %p65 = por %p63, %p64
      %p66 = scmp.ne.s32.totalorder %s55, %s56
      %p67 = scmp.eq.s32.totalorder %s21, 0
      %p68 = por %p66, %p67
      %p69 = scmp.ne.s32.totalorder %s55, %s56
      %p70 = scmp.eq.s32.totalorder %s22, 1
      %p71 = por %p69, %p70
      %p73 = scmp.ne.s32.totalorder %s56, %s72
      %p74 = scmp.eq.s32.totalorder %s22, 0
      %p75 = por %p73, %p74
      %s77 = sadd.s32 %s76, 1
      %p80 = scmp.eq.s32.totalorder %s16, 1
      %p81 = scmp.ne.s32.totalorder %s76, %s78
      %p82 = scmp.eq.s32.totalorder %s16, 0
      %p83 = por %p81, %p82
      %p84 = scmp.ne.s32.totalorder %s76, %s78
      %p85 = scmp.eq.s32.totalorder %s21, 1
      %p86 = por %p84, %p85
      %p87 = scmp.ne.s32.totalorder %s78, %s79
      %p88 = scmp.eq.s32.totalorder %s21, 0
      %p89 = por %p87, %p88
      %p90 = scmp.ne.s32.totalorder %s78, %s79
      %p91 = scmp.eq.s32.totalorder %s22, 1
      %p92 = por %p90, %p91
      %p94 = scmp.ne.s32.totalorder %s79, %s93
      %p95 = scmp.eq.s32.totalorder %s22, 0
      %p96 = por %p94, %p95
      %s98 = sadd.s32 %s97, 1
      %p101 = scmp.eq.s32.totalorder %s16, 1
      %p102 = scmp.ne.s32.totalorder %s97, %s99
      %p103 = scmp.eq.s32.totalorder %s16, 0
      %p104 = por %p102, %p103
      %p105 = scmp.ne.s32.totalorder %s97, %s99
      %p106 = scmp.eq.s32.totalorder %s21, 1
      %p107 = por %p105, %p106
      %p108 = scmp.ne.s32.totalorder %s99, %s100
      %p109 = scmp.eq.s32.totalorder %s21, 0
      %p110 = por %p108, %p109
      %p111 = scmp.ne.s32.totalorder %s99, %s100
      %p112 = scmp.eq.s32.totalorder %s22, 1
      %p113 = por %p111, %p112
      %p115 = scmp.ne.s32.totalorder %s100, %s114
      %p116 = scmp.eq.s32.totalorder %s22, 0
      %p117 = por %p115, %p116
      %s119 = sadd.s32 %s118, 1
      %p122 = scmp.eq.s32.totalorder %s16, 1
      %p123 = scmp.ne.s32.totalorder %s118, %s120
      %p124 = scmp.eq.s32.totalorder %s16, 0
      %p125 = por %p123, %p124
      %p126 = scmp.ne.s32.totalorder %s118, %s120
      %p127 = scmp.eq.s32.totalorder %s21, 1
      %p128 = por %p126, %p127
      %p129 = scmp.ne.s32.totalorder %s120, %s121
      %p130 = scmp.eq.s32.totalorder %s21, 0
      %p131 = por %p129, %p130
      %p132 = scmp.ne.s32.totalorder %s120, %s121
      %p133 = scmp.eq.s32.totalorder %s22, 1
      %p134 = por %p132, %p133
      %p136 = scmp.ne.s32.totalorder %s121, %s135
      %p137 = scmp.eq.s32.totalorder %s22, 0
      %p138 = por %p136, %p137
      %s140 = sadd.s32 %s139, 1
      %p143 = scmp.eq.s32.totalorder %s16, 1
      %p144 = scmp.ne.s32.totalorder %s139, %s141
      %p145 = scmp.eq.s32.totalorder %s16, 0
      %p146 = por %p144, %p145
      %p147 = scmp.ne.s32.totalorder %s139, %s141
      %p148 = scmp.eq.s32.totalorder %s21, 1
      %p149 = por %p147, %p148
      %p150 = scmp.ne.s32.totalorder %s141, %s142
      %p151 = scmp.eq.s32.totalorder %s21, 0
      %p152 = por %p150, %p151
      %p153 = scmp.ne.s32.totalorder %s141, %s142
      %p154 = scmp.eq.s32.totalorder %s22, 1
      %p155 = por %p153, %p154
      %p157 = scmp.ne.s32.totalorder %s142, %s156
      %p158 = scmp.eq.s32.totalorder %s22, 0
      %p159 = por %p157, %p158
      %s161 = sadd.s32 %s160, 1
      %p164 = scmp.eq.s32.totalorder %s16, 1
      %p165 = scmp.ne.s32.totalorder %s160, %s162
      %p166 = scmp.eq.s32.totalorder %s16, 0
      %p167 = por %p165, %p166
      %p168 = scmp.ne.s32.totalorder %s160, %s162
      %p169 = scmp.eq.s32.totalorder %s21, 1
      %p170 = por %p168, %p169
      %p171 = scmp.ne.s32.totalorder %s162, %s163
      %p172 = scmp.eq.s32.totalorder %s21, 0
      %p173 = por %p171, %p172
      %p174 = scmp.ne.s32.totalorder %s162, %s163
      %p175 = scmp.eq.s32.totalorder %s22, 1
      %p176 = por %p174, %p175
      %p178 = scmp.ne.s32.totalorder %s163, %s177
      %p179 = scmp.eq.s32.totalorder %s22, 0
      %p180 = por %p178, %p179
      %s181 = ssub.s32 %s16, %s23
      %p182 = scmp.eq.s32.totalorder %s181, 0
      %s184 = sadd.s32 %s183, 1
      %s185 = scalar_select %p182, %s183, %s184
      %p188 = pneg %p182
      %p189 = scmp.eq.s32.totalorder %s16, 1
      %p190 = por %p188, %p189
      %p191 = scmp.ne.s32.totalorder %s183, %s186
      %p192 = scmp.eq.s32.totalorder %s16, 0
      %p193 = por %p191, %p192
      %p194 = scmp.ne.s32.totalorder %s183, %s186
      %p195 = scmp.eq.s32.totalorder %s21, 1
      %p196 = por %p194, %p195
      %p197 = scmp.ne.s32.totalorder %s186, %s187
      %p198 = scmp.eq.s32.totalorder %s21, 0
      %p199 = por %p197, %p198
      %p200 = scmp.ne.s32.totalorder %s186, %s187
      %p201 = scmp.eq.s32.totalorder %s22, 1
      %p202 = por %p200, %p201
      %p204 = scmp.ne.s32.totalorder %s187, %s203
      %p205 = scmp.eq.s32.totalorder %s22, 0
      %p206 = por %p204, %p205
      %s207 = ssub.s32 %s16, %s23
      %p208 = scmp.eq.s32.totalorder %s207, 0
      %s210 = sadd.s32 %s209, 1
      %s211 = scalar_select %p208, %s209, %s210
      %p214 = pneg %p208
      %p215 = scmp.eq.s32.totalorder %s16, 1
      %p216 = por %p214, %p215
      %p217 = scmp.ne.s32.totalorder %s209, %s212
      %p218 = scmp.eq.s32.totalorder %s16, 0
      %p219 = por %p217, %p218
      %p220 = scmp.ne.s32.totalorder %s209, %s212
      %p221 = scmp.eq.s32.totalorder %s21, 1
      %p222 = por %p220, %p221
      %p223 = scmp.ne.s32.totalorder %s212, %s213
      %p224 = scmp.eq.s32.totalorder %s21, 0
      %p225 = por %p223, %p224
      %p226 = scmp.ne.s32.totalorder %s212, %s213
      %p227 = scmp.eq.s32.totalorder %s22, 1
      %p228 = por %p226, %p227
      %p230 = scmp.ne.s32.totalorder %s213, %s229
      %p231 = scmp.eq.s32.totalorder %s22, 0
      %p232 = por %p230, %p231
      %s233 = ssub.s32 %s16, %s23
      %p234 = scmp.eq.s32.totalorder %s233, 0
      %s236 = sadd.s32 %s235, 1
      %s237 = scalar_select %p234, %s235, %s236
      %p240 = pneg %p234
      %p241 = scmp.eq.s32.totalorder %s16, 1
      %p242 = por %p240, %p241
      %p243 = scmp.ne.s32.totalorder %s235, %s238
      %p244 = scmp.eq.s32.totalorder %s16, 0
      %p245 = por %p243, %p244
      %p246 = scmp.ne.s32.totalorder %s235, %s238
      %p247 = scmp.eq.s32.totalorder %s21, 1
      %p248 = por %p246, %p247
      %p249 = scmp.ne.s32.totalorder %s238, %s239
      %p250 = scmp.eq.s32.totalorder %s21, 0
      %p251 = por %p249, %p250
      %p252 = scmp.ne.s32.totalorder %s238, %s239
      %p253 = scmp.eq.s32.totalorder %s22, 1
      %p254 = por %p252, %p253
      %p256 = scmp.ne.s32.totalorder %s239, %s255
      %p257 = scmp.eq.s32.totalorder %s22, 0
      %p258 = por %p256, %p257
      %p259 = scmp.le.s32.totalorder 1, %s16
      %p260 = scmp.lt.s32.totalorder %s16, 3
      %p261 = pnand %p259, %p260
      %p262 = pneg %p261
      // Predicated region
      $region9: #{second_layer_head.1} parent=5 // pred_check
        _
      $region10: #{second_layer_head.1} parent=5 // pred_check_branch
        %264 = sbr.rel (%p261) target = $region12
      $region11: #{second_layer_head.1} parent=5 // pred_region
        %s265 = ssub.s32 %s16, 1
        // Predicated region
        $region13: #{second_layer_head.1} parent=11 // pred_check
          %p266 = pneg %p89
        $region14: #{second_layer_head.1} parent=11 // pred_check_branch
          %268 = sbr.rel (%p266) target = $region16
        $region15: #{second_layer_head.1} parent=11 // pred_region
          _
        $region16: #{second_layer_head.1} parent=11 // pred_fallthru
          _
        // Predicated region
        $region17: #{second_layer_head.1} parent=11 // pred_check
          %p269 = pneg %p110
        $region18: #{second_layer_head.1} parent=11 // pred_check_branch
          %271 = sbr.rel (%p269) target = $region20
        $region19: #{second_layer_head.1} parent=11 // pred_region
          _
        $region20: #{second_layer_head.1} parent=11 // pred_fallthru
          _
        // Predicated region
        $region21: #{second_layer_head.1} parent=11 // pred_check
          %p272 = pneg %p131
        $region22: #{second_layer_head.1} parent=11 // pred_check_branch
          %274 = sbr.rel (%p272) target = $region24
        $region23: #{second_layer_head.1} parent=11 // pred_region
          _
        $region24: #{second_layer_head.1} parent=11 // pred_fallthru
          _
        // Predicated region
        $region25: #{second_layer_head.1} parent=11 // pred_check
          %p275 = pneg %p152
        $region26: #{second_layer_head.1} parent=11 // pred_check_branch
          %277 = sbr.rel (%p275) target = $region28
        $region27: #{second_layer_head.1} parent=11 // pred_region
          _
        $region28: #{second_layer_head.1} parent=11 // pred_fallthru
          _
        // Predicated region
        $region29: #{second_layer_head.1} parent=11 // pred_check
          %p278 = pneg %p173
        $region30: #{second_layer_head.1} parent=11 // pred_check_branch
          %280 = sbr.rel (%p278) target = $region32
        $region31: #{second_layer_head.1} parent=11 // pred_region
          _
        $region32: #{second_layer_head.1} parent=11 // pred_fallthru
          _
      $region12: #{second_layer_head.1} parent=5 // pred_fallthru
        _
      %p281 = scmp.lt.s32.totalorder %s16, 2
      // Predicated region
      $region33: #{second_layer_head.1} parent=5 // pred_check
        %p282 = pneg %p281
      $region34: #{second_layer_head.1} parent=5 // pred_check_branch
        %284 = sbr.rel (%p282) target = $region36
      $region35: #{second_layer_head.1} parent=5 // pred_region
        // Predicated region
        $region37: #{second_layer_head.1} parent=35 // pred_check
          %p285 = pneg %p36
        $region38: #{second_layer_head.1} parent=35 // pred_check_branch
          %287 = sbr.rel (%p285) target = $region40
        $region39: #{second_layer_head.1} parent=35 // pred_region
          %p288 = scmp.lt.s32.totalorder %s16, 1
          %s289 = scalar_select %p288, %s16, 1
          %s290 = smul.addr %s289, 66
          %s291 = smul.addr %s290, 4
          %s292 = scalar_lea.vmem %s0, %s291
        $region40: #{second_layer_head.1} parent=35 // pred_fallthru
          _
        // Predicated region
        $region41: #{second_layer_head.1} parent=35 // pred_check
          %p293 = pneg %p62
        $region42: #{second_layer_head.1} parent=35 // pred_check_branch
          %295 = sbr.rel (%p293) target = $region44
        $region43: #{second_layer_head.1} parent=35 // pred_region
          %p296 = scmp.lt.s32.totalorder %s16, 1
          %s297 = scalar_select %p296, %s16, 1
          %s298 = smul.addr %s297, 66
          %s299 = smul.addr %s298, 4
          %s300 = scalar_lea.vmem %s1, %s299
        $region44: #{second_layer_head.1} parent=35 // pred_fallthru
          _
      $region36: #{second_layer_head.1} parent=5 // pred_fallthru
        _
      %p301 = scmp.le.s32.totalorder 1, %s16
      %p302 = scmp.lt.s32.totalorder %s16, 3
      %p303 = pnand %p301, %p302
      %p304 = pneg %p303
      // Predicated region
      $region45: #{second_layer_head.1} parent=5 // pred_check
        _
      $region46: #{second_layer_head.1} parent=5 // pred_check_branch
        %306 = sbr.rel (%p303) target = $region48
      $region47: #{second_layer_head.1} parent=5 // pred_region
        %s307 = ssub.s32 %s16, 1
        %p308 = scmp.lt.s32.totalorder %s21, 1
        %s309 = scalar_select %p308, %s21, 1
        %s310 = smul.addr %s309, 66
        %s311 = smul.addr %s310, 4
        %s312 = scalar_lea.vmem %s0, %s311
        %p313 = pneg %p42
        %p314 = pneg %p39
        %p315 = scmp.lt.s32.totalorder %s21, 1
        %s316 = scalar_select %p315, %s21, 1
        %s317 = smul.addr %s316, 66
        %s318 = smul.addr %s317, 4
        %s319 = scalar_lea.vmem %s1, %s318
        %p320 = pneg %p68
        %p321 = pneg %p65
        %p322 = pneg %p89
        %p323 = pneg %p86
        %p324 = pneg %p110
        %p325 = pneg %p107
        %p326 = pneg %p131
        %p327 = pneg %p128
        %p328 = pneg %p152
        %p329 = pneg %p149
        %p330 = pneg %p173
        %p331 = pneg %p170
        %p332 = pneg %p199
        %p333 = pneg %p196
        %p334 = scmp.lt.s32.totalorder %s21, 1
        %s335 = scalar_select %p334, %s21, 1
        %s336 = smul.addr %s335, 38
        %s337 = smul.addr %s336, 8
        %s338 = scalar_lea.vmem %s7, %s337
        %p339 = pneg %p225
        %p340 = pneg %p222
        %s341 = sand.u32 %s212, 1
        %s342 = sand.u32 %s212, 1
        %s343 = smul.addr %s342, 1056
        %s344 = scalar_lea.vmem [#allocation2], %s343
        %p345 = pneg %p251
        %p346 = pneg %p248
        %p347 = scmp.lt.s32.totalorder %s21, 1
        %s348 = scalar_select %p347, %s21, 1
        %s349 = smul.addr %s348, 2
        %s350 = smul.addr %s349, 4
        %s351 = scalar_lea.vmem %s9, %s350
        %p352 = scmp.lt.s32.totalorder %s21, 1
        %s353 = scalar_select %p352, %s21, 1
        %s354 = smul.addr %s353, 66
        %s355 = smul.addr %s354, 4
        %s356 = scalar_lea.vmem %s0, %s355
        %p357 = scmp.lt.s32.totalorder %s21, 1
        %s358 = scalar_select %p357, %s21, 1
        %s359 = smul.addr %s358, 66
        %s360 = smul.addr %s359, 4
        %s361 = scalar_lea.vmem %s1, %s360
        %p362 = scmp.lt.s32.totalorder %s21, 1
        %s363 = scalar_select %p362, %s21, 1
        %s364 = smul.addr %s363, 38
        %s365 = smul.addr %s364, 8
        %s366 = scalar_lea.vmem %s7, %s365
        %p367 = scmp.lt.s32.totalorder %s21, 1
        %s368 = scalar_select %p367, %s21, 1
        %s369 = smul.addr %s368, 2
        %s370 = smul.addr %s369, 4
        %s371 = scalar_lea.vmem %s9, %s370
        %v373 = vld [vmem:[%s2] sm:$0xff]
        %v374 = vld [vmem:[%s2 + $0x8] sm:$0xf]
        %v375 = vld [vmem:[%s2 + $0xc] sm:$0xff]
        %v376 = vld [vmem:[%s2 + $0x14] sm:$0xf]
        %v377 = vld [vmem:[%s2 + $0x18] sm:$0xff]
        %v378 = vld [vmem:[%s2 + $0x20] sm:$0xf]
        %v379 = vld [vmem:[%s2 + $0x24] sm:$0xff]
        %v380 = vld [vmem:[%s2 + $0x2c] sm:$0xf]
        %v381 = vld [vmem:[%s2 + $0x30] sm:$0xff]
        %v382 = vld [vmem:[%s2 + $0x38] sm:$0xf]
        %v383 = vld [vmem:[%s2 + $0x3c] sm:$0xff]
        %v384 = vld [vmem:[%s2 + $0x44] sm:$0xf]
        %v385 = vld [vmem:[%s2 + $0x48] sm:$0xff]
        %v386 = vld [vmem:[%s2 + $0x50] sm:$0xf]
        %v387 = vld [vmem:[%s2 + $0x54] sm:$0xff]
        %v388 = vld [vmem:[%s2 + $0x5c] sm:$0xf]
        %v389 = vld [vmem:[%s2 + $0x60] sm:$0xff]
        %v390 = vld [vmem:[%s2 + $0x68] sm:$0xf]
        %v391 = vld [vmem:[%s2 + $0x6c] sm:$0xff]
        %v392 = vld [vmem:[%s2 + $0x74] sm:$0xf]
        %v393 = vld [vmem:[%s2 + $0x78] sm:$0xff]
        %v394 = vld [vmem:[%s2 + $0x80] sm:$0xf]
        %v395 = vld [vmem:[%s2 + $0x84] sm:$0xff]
        %v396 = vld [vmem:[%s2 + $0x8c] sm:$0xf]
        %v397 = vld [vmem:[%s2 + $0x90] sm:$0xff]
        %v398 = vld [vmem:[%s2 + $0x98] sm:$0xf]
        %v399 = vld [vmem:[%s2 + $0x9c] sm:$0xff]
        %v400 = vld [vmem:[%s2 + $0xa4] sm:$0xf]
        %v401 = vld [vmem:[%s2 + $0xa8] sm:$0xff]
        %v402 = vld [vmem:[%s2 + $0xb0] sm:$0xf]
        %v403 = vld [vmem:[%s2 + $0xb4] sm:$0xff]
        %v404 = vld [vmem:[%s2 + $0xbc] sm:$0xf]
        %v405 = vld [vmem:[%s2 + $0xc0] sm:$0xff]
        %v406 = vld [vmem:[%s2 + $0xc8] sm:$0xf]
        %v407 = vld [vmem:[%s2 + $0xcc] sm:$0xff]
        %v408 = vld [vmem:[%s2 + $0xd4] sm:$0xf]
        %v409 = vld [vmem:[%s2 + $0xd8] sm:$0xff]
        %v410 = vld [vmem:[%s2 + $0xe0] sm:$0xf]
        %v411 = vld [vmem:[%s2 + $0xe4] sm:$0xff]
        %v412 = vld [vmem:[%s2 + $0xec] sm:$0xf]
        %v413 = vld [vmem:[%s2 + $0xf0] sm:$0xff]
        %v414 = vld [vmem:[%s2 + $0xf8] sm:$0xf]
        %v415 = vld [vmem:[%s2 + $0xfc] sm:$0xff]
        %v416 = vld [vmem:[%s2 + $0x104] sm:$0xf]
        %v417 = vld [vmem:[%s2 + $0x108] sm:$0xff]
        %v418 = vld [vmem:[%s2 + $0x110] sm:$0xf]
        %v419 = vld [vmem:[%s2 + $0x114] sm:$0xff]
        %v420 = vld [vmem:[%s2 + $0x11c] sm:$0xf]
        %v421 = vld [vmem:[%s2 + $0x120] sm:$0xff]
        %v422 = vld [vmem:[%s2 + $0x128] sm:$0xf]
        %v423 = vld [vmem:[%s2 + $0x12c] sm:$0xff]
        %v424 = vld [vmem:[%s2 + $0x134] sm:$0xf]
        %v425 = vld [vmem:[%s2 + $0x138] sm:$0xff]
        %v426 = vld [vmem:[%s2 + $0x140] sm:$0xf]
        %v427 = vld [vmem:[%s2 + $0x144] sm:$0xff]
        %v428 = vld [vmem:[%s2 + $0x14c] sm:$0xf]
        %v429 = vld [vmem:[%s2 + $0x150] sm:$0xff]
        %v430 = vld [vmem:[%s2 + $0x158] sm:$0xf]
        %v431 = vld [vmem:[%s2 + $0x15c] sm:$0xff]
        %v432 = vld [vmem:[%s2 + $0x164] sm:$0xf]
        %v433 = vld [vmem:[%s2 + $0x168] sm:$0xff]
        %v434 = vld [vmem:[%s2 + $0x170] sm:$0xf]
        %v435 = vld [vmem:[%s2 + $0x174] sm:$0xff]
        %v436 = vld [vmem:[%s2 + $0x17c] sm:$0xf]
        %v437 = vld [vmem:[%s2 + $0x180] sm:$0xff]
        %v438 = vld [vmem:[%s2 + $0x188] sm:$0xf]
        %v439 = vld [vmem:[%s3] sm:$0xff]
        %v440 = vld [vmem:[%s3 + $0x8] sm:$0xff]
        %v441 = vld [vmem:[%s3 + $0x10] sm:$0xff]
        %v442 = vld [vmem:[%s3 + $0x18] sm:$0xff]
        %v443 = vld [vmem:[%s3 + $0x20] sm:$0xff]
        %v444 = vld [vmem:[%s3 + $0x28] sm:$0xff]
        %v445 = vld [vmem:[%s3 + $0x30] sm:$0xff]
        %v446 = vld [vmem:[%s3 + $0x38] sm:$0xff]
        %v447 = vld [vmem:[%s3 + $0x40] sm:$0xff]
        %v448 = vld [vmem:[%s3 + $0x48] sm:$0xff]
        %v449 = vld [vmem:[%s3 + $0x50] sm:$0xff]
        %v450 = vld [vmem:[%s3 + $0x58] sm:$0xff]
        %v451 = vld [vmem:[%s3 + $0x60] sm:$0xff]
        %v452 = vld [vmem:[%s3 + $0x68] sm:$0xff]
        %v453 = vld [vmem:[%s3 + $0x70] sm:$0xff]
        %v454 = vld [vmem:[%s3 + $0x78] sm:$0xff]
        %v455 = vld [vmem:[%s3 + $0x80] sm:$0xff]
        %v456 = vld [vmem:[%s3 + $0x88] sm:$0xff]
        %v457 = vld [vmem:[%s3 + $0x90] sm:$0xff]
        %v458 = vld [vmem:[%s3 + $0x98] sm:$0xff]
        %v459 = vld [vmem:[%s3 + $0xa0] sm:$0xff]
        %v460 = vld [vmem:[%s3 + $0xa8] sm:$0xff]
        %v461 = vld [vmem:[%s3 + $0xb0] sm:$0xff]
        %v462 = vld [vmem:[%s3 + $0xb8] sm:$0xff]
        %v463 = vld [vmem:[%s3 + $0xc0] sm:$0xff]
        %v464 = vld [vmem:[%s3 + $0xc8] sm:$0xff]
        %v465 = vld [vmem:[%s3 + $0xd0] sm:$0xff]
        %v466 = vld [vmem:[%s3 + $0xd8] sm:$0xff]
        %v467 = vld [vmem:[%s3 + $0xe0] sm:$0xff]
        %v468 = vld [vmem:[%s3 + $0xe8] sm:$0xff]
        %v469 = vld [vmem:[%s3 + $0xf0] sm:$0xff]
        %v470 = vld [vmem:[%s3 + $0xf8] sm:$0xff]
        %v471 = vld [vmem:[%s3 + $0x100] sm:$0xff]
        %v472 = vld [vmem:[%s356] sm:$0xff]
        %v473 = vld [vmem:[%s356 + $0x8] sm:$0xff]
        %v474 = vld [vmem:[%s356 + $0x10] sm:$0xff]
        %v475 = vld [vmem:[%s356 + $0x18] sm:$0xff]
        %v476 = vld [vmem:[%s356 + $0x20] sm:$0xff]
        %v477 = vld [vmem:[%s356 + $0x28] sm:$0xff]
        %v478 = vld [vmem:[%s356 + $0x30] sm:$0xff]
        %v479 = vld [vmem:[%s356 + $0x38] sm:$0xff]
        %v480 = vld [vmem:[%s356 + $0x40] sm:$0xff]
        %v481 = vld [vmem:[%s356 + $0x48] sm:$0xff]
        %v482 = vld [vmem:[%s356 + $0x50] sm:$0xff]
        %v483 = vld [vmem:[%s356 + $0x58] sm:$0xff]
        %v484 = vld [vmem:[%s356 + $0x60] sm:$0xff]
        %v485 = vld [vmem:[%s356 + $0x68] sm:$0xff]
        %v486 = vld [vmem:[%s356 + $0x70] sm:$0xff]
        %v487 = vld [vmem:[%s356 + $0x78] sm:$0xff]
        %v488 = vld [vmem:[%s356 + $0x80] sm:$0xff]
        %v489 = vld [vmem:[%s356 + $0x88] sm:$0xff]
        %v490 = vld [vmem:[%s356 + $0x90] sm:$0xff]
        %v491 = vld [vmem:[%s356 + $0x98] sm:$0xff]
        %v492 = vld [vmem:[%s356 + $0xa0] sm:$0xff]
        %v493 = vld [vmem:[%s356 + $0xa8] sm:$0xff]
        %v494 = vld [vmem:[%s356 + $0xb0] sm:$0xff]
        %v495 = vld [vmem:[%s356 + $0xb8] sm:$0xff]
        %v496 = vld [vmem:[%s356 + $0xc0] sm:$0xff]
        %v497 = vld [vmem:[%s356 + $0xc8] sm:$0xff]
        %v498 = vld [vmem:[%s356 + $0xd0] sm:$0xff]
        %v499 = vld [vmem:[%s356 + $0xd8] sm:$0xff]
        %v500 = vld [vmem:[%s356 + $0xe0] sm:$0xff]
        %v501 = vld [vmem:[%s356 + $0xe8] sm:$0xff]
        %v502 = vld [vmem:[%s356 + $0xf0] sm:$0xff]
        %v503 = vld [vmem:[%s356 + $0xf8] sm:$0xff]
        %v504 = vld [vmem:[%s356 + $0x100] sm:$0xff]
        %506 = vset.pattern.permute.xlu0 0
        %507 = vperm.xlu0 %506, %v439
        %v508 = vpop.permute.xlu0 %507
        %511 = vset.pattern.permute.xlu0 0
        %512 = vperm.xlu0 %511, %v440
        %v513 = vpop.permute.xlu0 %512
        %516 = vset.pattern.permute.xlu0 0
        %517 = vperm.xlu0 %516, %v441
        %v518 = vpop.permute.xlu0 %517
        %521 = vset.pattern.permute.xlu0 0
        %522 = vperm.xlu0 %521, %v442
        %v523 = vpop.permute.xlu0 %522
        %526 = vset.pattern.permute.xlu0 0
        %527 = vperm.xlu0 %526, %v443
        %v528 = vpop.permute.xlu0 %527
        %531 = vset.pattern.permute.xlu0 0
        %532 = vperm.xlu0 %531, %v444
        %v533 = vpop.permute.xlu0 %532
        %536 = vset.pattern.permute.xlu0 0
        %537 = vperm.xlu0 %536, %v445
        %v538 = vpop.permute.xlu0 %537
        %541 = vset.pattern.permute.xlu0 0
        %542 = vperm.xlu0 %541, %v446
        %v543 = vpop.permute.xlu0 %542
        %546 = vset.pattern.permute.xlu0 0
        %547 = vperm.xlu0 %546, %v447
        %v548 = vpop.permute.xlu0 %547
        %551 = vset.pattern.permute.xlu0 0
        %552 = vperm.xlu0 %551, %v448
        %v553 = vpop.permute.xlu0 %552
        %556 = vset.pattern.permute.xlu0 0
        %557 = vperm.xlu0 %556, %v449
        %v558 = vpop.permute.xlu0 %557
        %561 = vset.pattern.permute.xlu0 0
        %562 = vperm.xlu0 %561, %v450
        %v563 = vpop.permute.xlu0 %562
        %566 = vset.pattern.permute.xlu0 0
        %567 = vperm.xlu0 %566, %v451
        %v568 = vpop.permute.xlu0 %567
        %571 = vset.pattern.permute.xlu0 0
        %572 = vperm.xlu0 %571, %v452
        %v573 = vpop.permute.xlu0 %572
        %576 = vset.pattern.permute.xlu0 0
        %577 = vperm.xlu0 %576, %v453
        %v578 = vpop.permute.xlu0 %577
        %581 = vset.pattern.permute.xlu0 0
        %582 = vperm.xlu0 %581, %v454
        %v583 = vpop.permute.xlu0 %582
        %586 = vset.pattern.permute.xlu0 0
        %587 = vperm.xlu0 %586, %v455
        %v588 = vpop.permute.xlu0 %587
        %591 = vset.pattern.permute.xlu0 0
        %592 = vperm.xlu0 %591, %v456
        %v593 = vpop.permute.xlu0 %592
        %596 = vset.pattern.permute.xlu0 0
        %597 = vperm.xlu0 %596, %v457
        %v598 = vpop.permute.xlu0 %597
        %601 = vset.pattern.permute.xlu0 0
        %602 = vperm.xlu0 %601, %v458
        %v603 = vpop.permute.xlu0 %602
        %606 = vset.pattern.permute.xlu0 0
        %607 = vperm.xlu0 %606, %v459
        %v608 = vpop.permute.xlu0 %607
        %611 = vset.pattern.permute.xlu0 0
        %612 = vperm.xlu0 %611, %v460
        %v613 = vpop.permute.xlu0 %612
        %616 = vset.pattern.permute.xlu0 0
        %617 = vperm.xlu0 %616, %v461
        %v618 = vpop.permute.xlu0 %617
        %621 = vset.pattern.permute.xlu0 0
        %622 = vperm.xlu0 %621, %v462
        %v623 = vpop.permute.xlu0 %622
        %626 = vset.pattern.permute.xlu0 0
        %627 = vperm.xlu0 %626, %v463
        %v628 = vpop.permute.xlu0 %627
        %631 = vset.pattern.permute.xlu0 0
        %632 = vperm.xlu0 %631, %v464
        %v633 = vpop.permute.xlu0 %632
        %636 = vset.pattern.permute.xlu0 0
        %637 = vperm.xlu0 %636, %v465
        %v638 = vpop.permute.xlu0 %637
        %641 = vset.pattern.permute.xlu0 0
        %642 = vperm.xlu0 %641, %v466
        %v643 = vpop.permute.xlu0 %642
        %646 = vset.pattern.permute.xlu0 0
        %647 = vperm.xlu0 %646, %v467
        %v648 = vpop.permute.xlu0 %647
        %651 = vset.pattern.permute.xlu0 0
        %652 = vperm.xlu0 %651, %v468
        %v653 = vpop.permute.xlu0 %652
        %656 = vset.pattern.permute.xlu0 0
        %657 = vperm.xlu0 %656, %v469
        %v658 = vpop.permute.xlu0 %657
        %661 = vset.pattern.permute.xlu0 0
        %662 = vperm.xlu0 %661, %v470
        %v663 = vpop.permute.xlu0 %662
        %666 = vset.pattern.permute.xlu0 0
        %667 = vperm.xlu0 %666, %v471
        %v668 = vpop.permute.xlu0 %667
        %v736 = vunpack.c.l.b16 %v373
        %v737 = vunpack.c.h.b16 %v373
        %v738 = vunpack.c.l.b16 %v374
        %v739 = vunpack.c.l.b16 %v375
        %v740 = vunpack.c.h.b16 %v375
        %v741 = vunpack.c.l.b16 %v376
        %v742 = vunpack.c.l.b16 %v377
        %v743 = vunpack.c.h.b16 %v377
        %v744 = vunpack.c.l.b16 %v378
        %v745 = vunpack.c.l.b16 %v379
        %v746 = vunpack.c.h.b16 %v379
        %v747 = vunpack.c.l.b16 %v380
        %v748 = vunpack.c.l.b16 %v381
        %v749 = vunpack.c.h.b16 %v381
        %v750 = vunpack.c.l.b16 %v382
        %v751 = vunpack.c.l.b16 %v383
        %v752 = vunpack.c.h.b16 %v383
        %v753 = vunpack.c.l.b16 %v384
        %v754 = vunpack.c.l.b16 %v385
        %v755 = vunpack.c.h.b16 %v385
        %v756 = vunpack.c.l.b16 %v386
        %v757 = vunpack.c.l.b16 %v387
        %v758 = vunpack.c.h.b16 %v387
        %v759 = vunpack.c.l.b16 %v388
        %v760 = vunpack.c.l.b16 %v389
        %v761 = vunpack.c.h.b16 %v389
        %v762 = vunpack.c.l.b16 %v390
        %v763 = vunpack.c.l.b16 %v391
        %v764 = vunpack.c.h.b16 %v391
        %v765 = vunpack.c.l.b16 %v392
        %v766 = vunpack.c.l.b16 %v393
        %v767 = vunpack.c.h.b16 %v393
        %v768 = vunpack.c.l.b16 %v394
        %v769 = vunpack.c.l.b16 %v395
        %v770 = vunpack.c.h.b16 %v395
        %v771 = vunpack.c.l.b16 %v396
        %v772 = vunpack.c.l.b16 %v397
        %v773 = vunpack.c.h.b16 %v397
        %v774 = vunpack.c.l.b16 %v398
        %v775 = vunpack.c.l.b16 %v399
        %v776 = vunpack.c.h.b16 %v399
        %v777 = vunpack.c.l.b16 %v400
        %v778 = vunpack.c.l.b16 %v401
        %v779 = vunpack.c.h.b16 %v401
        %v780 = vunpack.c.l.b16 %v402
        %v781 = vunpack.c.l.b16 %v403
        %v782 = vunpack.c.h.b16 %v403
        %v783 = vunpack.c.l.b16 %v404
        %v784 = vunpack.c.l.b16 %v405
        %v785 = vunpack.c.h.b16 %v405
        %v786 = vunpack.c.l.b16 %v406
        %v787 = vunpack.c.l.b16 %v407
        %v788 = vunpack.c.h.b16 %v407
        %v789 = vunpack.c.l.b16 %v408
        %v790 = vunpack.c.l.b16 %v409
        %v791 = vunpack.c.h.b16 %v409
        %v792 = vunpack.c.l.b16 %v410
        %v793 = vunpack.c.l.b16 %v411
        %v794 = vunpack.c.h.b16 %v411
        %v795 = vunpack.c.l.b16 %v412
        %v796 = vunpack.c.l.b16 %v413
        %v797 = vunpack.c.h.b16 %v413
        %v798 = vunpack.c.l.b16 %v414
        %v799 = vunpack.c.l.b16 %v415
        %v800 = vunpack.c.h.b16 %v415
        %v801 = vunpack.c.l.b16 %v416
        %v802 = vunpack.c.l.b16 %v417
        %v803 = vunpack.c.h.b16 %v417
        %v804 = vunpack.c.l.b16 %v418
        %v805 = vunpack.c.l.b16 %v419
        %v806 = vunpack.c.h.b16 %v419
        %v807 = vunpack.c.l.b16 %v420
        %v808 = vunpack.c.l.b16 %v421
        %v809 = vunpack.c.h.b16 %v421
        %v810 = vunpack.c.l.b16 %v422
        %v811 = vunpack.c.l.b16 %v423
        %v812 = vunpack.c.h.b16 %v423
        %v813 = vunpack.c.l.b16 %v424
        %v814 = vunpack.c.l.b16 %v425
        %v815 = vunpack.c.h.b16 %v425
        %v816 = vunpack.c.l.b16 %v426
        %v817 = vunpack.c.l.b16 %v427
        %v818 = vunpack.c.h.b16 %v427
        %v819 = vunpack.c.l.b16 %v428
        %v820 = vunpack.c.l.b16 %v429
        %v821 = vunpack.c.h.b16 %v429
        %v822 = vunpack.c.l.b16 %v430
        %v823 = vunpack.c.l.b16 %v431
        %v824 = vunpack.c.h.b16 %v431
        %v825 = vunpack.c.l.b16 %v432
        %v826 = vunpack.c.l.b16 %v433
        %v827 = vunpack.c.h.b16 %v433
        %v828 = vunpack.c.l.b16 %v434
        %v829 = vunpack.c.l.b16 %v435
        %v830 = vunpack.c.h.b16 %v435
        %v831 = vunpack.c.l.b16 %v436
        %v832 = vunpack.c.l.b16 %v437
        %v833 = vunpack.c.h.b16 %v437
        %v834 = vunpack.c.l.b16 %v438
        %v835 = vpack.c.b16 %v739, %v736
        %v836 = vpack.c.b16 %v740, %v737
        %v837 = vpack.c.b16 %v741, %v738
        %v838 = vpack.c.b16 %v745, %v742
        %v839 = vpack.c.b16 %v746, %v743
        %v840 = vpack.c.b16 %v747, %v744
        %v841 = vpack.c.b16 %v751, %v748
        %v842 = vpack.c.b16 %v752, %v749
        %v843 = vpack.c.b16 %v753, %v750
        %v844 = vpack.c.b16 %v757, %v754
        %v845 = vpack.c.b16 %v758, %v755
        %v846 = vpack.c.b16 %v759, %v756
        %v847 = vpack.c.b16 %v763, %v760
        %v848 = vpack.c.b16 %v764, %v761
        %v849 = vpack.c.b16 %v765, %v762
        %v850 = vpack.c.b16 %v769, %v766
        %v851 = vpack.c.b16 %v770, %v767
        %v852 = vpack.c.b16 %v771, %v768
        %v853 = vpack.c.b16 %v775, %v772
        %v854 = vpack.c.b16 %v776, %v773
        %v855 = vpack.c.b16 %v777, %v774
        %v856 = vpack.c.b16 %v781, %v778
        %v857 = vpack.c.b16 %v782, %v779
        %v858 = vpack.c.b16 %v783, %v780
        %v859 = vpack.c.b16 %v787, %v784
        %v860 = vpack.c.b16 %v788, %v785
        %v861 = vpack.c.b16 %v789, %v786
        %v862 = vpack.c.b16 %v793, %v790
        %v863 = vpack.c.b16 %v794, %v791
        %v864 = vpack.c.b16 %v795, %v792
        %v865 = vpack.c.b16 %v799, %v796
        %v866 = vpack.c.b16 %v800, %v797
        %v867 = vpack.c.b16 %v801, %v798
        %v868 = vpack.c.b16 %v805, %v802
        %v869 = vpack.c.b16 %v806, %v803
        %v870 = vpack.c.b16 %v807, %v804
        %v871 = vpack.c.b16 %v811, %v808
        %v872 = vpack.c.b16 %v812, %v809
        %v873 = vpack.c.b16 %v813, %v810
        %v874 = vpack.c.b16 %v817, %v814
        %v875 = vpack.c.b16 %v818, %v815
        %v876 = vpack.c.b16 %v819, %v816
        %v877 = vpack.c.b16 %v823, %v820
        %v878 = vpack.c.b16 %v824, %v821
        %v879 = vpack.c.b16 %v825, %v822
        %v880 = vpack.c.b16 %v829, %v826
        %v881 = vpack.c.b16 %v830, %v827
        %v882 = vpack.c.b16 %v831, %v828
        %v883 = vpack.c.b16 %v832, %v832
        %v884 = vpack.c.b16 %v833, %v833
        %v885 = vpack.c.b16 %v834, %v834
        %v953 = vunpack.c.l.b16 %v472
        %v954 = vunpack.c.h.b16 %v472
        %v955 = vunpack.c.l.b16 %v473
        %v956 = vunpack.c.h.b16 %v473
        %v957 = vunpack.c.l.b16 %v474
        %v958 = vunpack.c.h.b16 %v474
        %v959 = vunpack.c.l.b16 %v475
        %v960 = vunpack.c.h.b16 %v475
        %v961 = vunpack.c.l.b16 %v476
        %v962 = vunpack.c.h.b16 %v476
        %v963 = vunpack.c.l.b16 %v477
        %v964 = vunpack.c.h.b16 %v477
        %v965 = vunpack.c.l.b16 %v478
        %v966 = vunpack.c.h.b16 %v478
        %v967 = vunpack.c.l.b16 %v479
        %v968 = vunpack.c.h.b16 %v479
        %v969 = vunpack.c.l.b16 %v480
        %v970 = vunpack.c.h.b16 %v480
        %v971 = vunpack.c.l.b16 %v481
        %v972 = vunpack.c.h.b16 %v481
        %v973 = vunpack.c.l.b16 %v482
        %v974 = vunpack.c.h.b16 %v482
        %v975 = vunpack.c.l.b16 %v483
        %v976 = vunpack.c.h.b16 %v483
        %v977 = vunpack.c.l.b16 %v484
        %v978 = vunpack.c.h.b16 %v484
        %v979 = vunpack.c.l.b16 %v485
        %v980 = vunpack.c.h.b16 %v485
        %v981 = vunpack.c.l.b16 %v486
        %v982 = vunpack.c.h.b16 %v486
        %v983 = vunpack.c.l.b16 %v487
        %v984 = vunpack.c.h.b16 %v487
        %v985 = vunpack.c.l.b16 %v488
        %v986 = vunpack.c.h.b16 %v488
        %v987 = vunpack.c.l.b16 %v489
        %v988 = vunpack.c.h.b16 %v489
        %v989 = vunpack.c.l.b16 %v490
        %v990 = vunpack.c.h.b16 %v490
        %v991 = vunpack.c.l.b16 %v491
        %v992 = vunpack.c.h.b16 %v491
        %v993 = vunpack.c.l.b16 %v492
        %v994 = vunpack.c.h.b16 %v492
        %v995 = vunpack.c.l.b16 %v493
        %v996 = vunpack.c.h.b16 %v493
        %v997 = vunpack.c.l.b16 %v494
        %v998 = vunpack.c.h.b16 %v494
        %v999 = vunpack.c.l.b16 %v495
        %v1000 = vunpack.c.h.b16 %v495
        %v1001 = vunpack.c.l.b16 %v496
        %v1002 = vunpack.c.h.b16 %v496
        %v1003 = vunpack.c.l.b16 %v497
        %v1004 = vunpack.c.h.b16 %v497
        %v1005 = vunpack.c.l.b16 %v498
        %v1006 = vunpack.c.h.b16 %v498
        %v1007 = vunpack.c.l.b16 %v499
        %v1008 = vunpack.c.h.b16 %v499
        %v1009 = vunpack.c.l.b16 %v500
        %v1010 = vunpack.c.h.b16 %v500
        %v1011 = vunpack.c.l.b16 %v501
        %v1012 = vunpack.c.h.b16 %v501
        %v1013 = vunpack.c.l.b16 %v502
        %v1014 = vunpack.c.h.b16 %v502
        %v1015 = vunpack.c.l.b16 %v503
        %v1016 = vunpack.c.h.b16 %v503
        %v1017 = vunpack.c.l.b16 %v504
        %v1018 = vunpack.c.h.b16 %v504
        %v1019 = vpack.c.b16 %v955, %v953
        %v1020 = vpack.c.b16 %v956, %v954
        %v1021 = vpack.c.b16 %v959, %v957
        %v1022 = vpack.c.b16 %v960, %v958
        %v1023 = vpack.c.b16 %v963, %v961
        %v1024 = vpack.c.b16 %v964, %v962
        %v1025 = vpack.c.b16 %v967, %v965
        %v1026 = vpack.c.b16 %v968, %v966
        %v1027 = vpack.c.b16 %v971, %v969
        %v1028 = vpack.c.b16 %v972, %v970
        %v1029 = vpack.c.b16 %v975, %v973
        %v1030 = vpack.c.b16 %v976, %v974
        %v1031 = vpack.c.b16 %v979, %v977
        %v1032 = vpack.c.b16 %v980, %v978
        %v1033 = vpack.c.b16 %v983, %v981
        %v1034 = vpack.c.b16 %v984, %v982
        %v1035 = vpack.c.b16 %v987, %v985
        %v1036 = vpack.c.b16 %v988, %v986
        %v1037 = vpack.c.b16 %v991, %v989
        %v1038 = vpack.c.b16 %v992, %v990
        %v1039 = vpack.c.b16 %v995, %v993
        %v1040 = vpack.c.b16 %v996, %v994
        %v1041 = vpack.c.b16 %v999, %v997
        %v1042 = vpack.c.b16 %v1000, %v998
        %v1043 = vpack.c.b16 %v1003, %v1001
        %v1044 = vpack.c.b16 %v1004, %v1002
        %v1045 = vpack.c.b16 %v1007, %v1005
        %v1046 = vpack.c.b16 %v1008, %v1006
        %v1047 = vpack.c.b16 %v1011, %v1009
        %v1048 = vpack.c.b16 %v1012, %v1010
        %v1049 = vpack.c.b16 %v1015, %v1013
        %v1050 = vpack.c.b16 %v1016, %v1014
        %v1051 = vpack.c.b16 %v1017, %v1017
        %v1052 = vpack.c.b16 %v1018, %v1018
        %vm1085 = vcmask 64512
        %v1087 = vsel %vm1085, %v837, 0
        %v1090 = vsel %vm1085, %v840, 0
        %v1093 = vsel %vm1085, %v843, 0
        %v1096 = vsel %vm1085, %v846, 0
        %v1099 = vsel %vm1085, %v849, 0
        %v1102 = vsel %vm1085, %v852, 0
        %v1105 = vsel %vm1085, %v855, 0
        %v1108 = vsel %vm1085, %v858, 0
        %v1111 = vsel %vm1085, %v861, 0
        %v1114 = vsel %vm1085, %v864, 0
        %v1117 = vsel %vm1085, %v867, 0
        %v1120 = vsel %vm1085, %v870, 0
        %v1123 = vsel %vm1085, %v873, 0
        %v1126 = vsel %vm1085, %v876, 0
        %v1129 = vsel %vm1085, %v879, 0
        %v1132 = vsel %vm1085, %v882, 0
        %v1135 = vsel %vm1085, %v885, 0
        %vm1137 = vcmask 1043456
        %v1139 = vsel %vm1137, %v1051, 0
        %v1142 = vsel %vm1137, %v1052, 0
        %1144 = vmatpush.bf16.msra.mxu0 %v1033
        %1145 = vmatpush.bf16.msra.mxu0 %v1031
        %1146 = vmatpush.bf16.msra.mxu0 %v1029
        %1147 = vmatpush.bf16.msra.mxu0 %v1027
        %1148 = vmatpush.bf16.msra.mxu0 %v1025
        %1149 = vmatpush.bf16.msra.mxu0 %v1023
        %1150 = vmatpush.bf16.msra.mxu0 %v1021
        %1151 = vmatpush.bf16.msra.mxu0 %v1019
        %1152 = vmatmul.bf16.gmra.mxu0 %v835
        %v1153 = vpop.f32.mrf.mxu0
        %v1154 = vadd.f32 %v508, %v1153
        %v1155 = vpop.f32.mrf.mxu0
        %v1156 = vadd.f32 %v513, %v1155
        %1157 = vmatmul.bf16.gmra.mxu0 %v838
        %v1158 = vpop.f32.mrf.mxu0
        %v1159 = vadd.f32 %v518, %v1158
        %v1160 = vpop.f32.mrf.mxu0
        %v1161 = vadd.f32 %v523, %v1160
        %1162 = vmatmul.bf16.gmra.mxu0 %v841
        %v1163 = vpop.f32.mrf.mxu0
        %v1164 = vadd.f32 %v528, %v1163
        %v1165 = vpop.f32.mrf.mxu0
        %v1166 = vadd.f32 %v533, %v1165
        %1167 = vmatmul.bf16.gmra.mxu0 %v844
        %v1168 = vpop.f32.mrf.mxu0
        %v1169 = vadd.f32 %v538, %v1168
        %v1170 = vpop.f32.mrf.mxu0
        %v1171 = vadd.f32 %v543, %v1170
        %1172 = vmatmul.bf16.gmra.mxu0 %v847
        %v1173 = vpop.f32.mrf.mxu0
        %v1174 = vadd.f32 %v548, %v1173
        %v1175 = vpop.f32.mrf.mxu0
        %v1176 = vadd.f32 %v553, %v1175
        %1177 = vmatmul.bf16.gmra.mxu0 %v850
        %v1178 = vpop.f32.mrf.mxu0
        %v1179 = vadd.f32 %v558, %v1178
        %v1180 = vpop.f32.mrf.mxu0
        %v1181 = vadd.f32 %v563, %v1180
        %1182 = vmatmul.bf16.gmra.mxu0 %v853
        %v1183 = vpop.f32.mrf.mxu0
        %v1184 = vadd.f32 %v568, %v1183
        %v1185 = vpop.f32.mrf.mxu0
        %v1186 = vadd.f32 %v573, %v1185
        %1187 = vmatmul.bf16.gmra.mxu0 %v856
        %v1188 = vpop.f32.mrf.mxu0
        %v1189 = vadd.f32 %v578, %v1188
        %v1190 = vpop.f32.mrf.mxu0
        %v1191 = vadd.f32 %v583, %v1190
        %1192 = vmatmul.bf16.gmra.mxu0 %v859
        %v1193 = vpop.f32.mrf.mxu0
        %v1194 = vadd.f32 %v588, %v1193
        %v1195 = vpop.f32.mrf.mxu0
        %v1196 = vadd.f32 %v593, %v1195
        %1197 = vmatmul.bf16.gmra.mxu0 %v862
        %v1198 = vpop.f32.mrf.mxu0
        %v1199 = vadd.f32 %v598, %v1198
        %v1200 = vpop.f32.mrf.mxu0
        %v1201 = vadd.f32 %v603, %v1200
        %1202 = vmatmul.bf16.gmra.mxu0 %v865
        %v1203 = vpop.f32.mrf.mxu0
        %v1204 = vadd.f32 %v608, %v1203
        %v1205 = vpop.f32.mrf.mxu0
        %v1206 = vadd.f32 %v613, %v1205
        %1207 = vmatmul.bf16.gmra.mxu0 %v868
        %v1208 = vpop.f32.mrf.mxu0
        %v1209 = vadd.f32 %v618, %v1208
        %v1210 = vpop.f32.mrf.mxu0
        %v1211 = vadd.f32 %v623, %v1210
        %1212 = vmatmul.bf16.gmra.mxu0 %v871
        %v1213 = vpop.f32.mrf.mxu0
        %v1214 = vadd.f32 %v628, %v1213
        %v1215 = vpop.f32.mrf.mxu0
        %v1216 = vadd.f32 %v633, %v1215
        %1217 = vmatmul.bf16.gmra.mxu0 %v874
        %v1218 = vpop.f32.mrf.mxu0
        %v1219 = vadd.f32 %v638, %v1218
        %v1220 = vpop.f32.mrf.mxu0
        %v1221 = vadd.f32 %v643, %v1220
        %1222 = vmatmul.bf16.gmra.mxu0 %v877
        %v1223 = vpop.f32.mrf.mxu0
        %v1224 = vadd.f32 %v648, %v1223
        %v1225 = vpop.f32.mrf.mxu0
        %v1226 = vadd.f32 %v653, %v1225
        %1227 = vmatmul.bf16.gmra.mxu0 %v880
        %v1228 = vpop.f32.mrf.mxu0
        %v1229 = vadd.f32 %v658, %v1228
        %v1230 = vpop.f32.mrf.mxu0
        %v1231 = vadd.f32 %v663, %v1230
        %1232 = vmatmul.bf16.gmra.mxu0 %v883
        %v1233 = vpop.f32.mrf.mxu0
        %v1234 = vadd.f32 %v668, %v1233
        %v1235 = vpop.f32.mrf.mxu0
        %1236 = vdwg.mxu0
        %1237 = vmatpush.bf16.msra.mxu0 %v1049
        %1238 = vmatpush.bf16.msra.mxu0 %v1047
        %1239 = vmatpush.bf16.msra.mxu0 %v1045
        %1240 = vmatpush.bf16.msra.mxu0 %v1043
        %1241 = vmatpush.bf16.msra.mxu0 %v1041
        %1242 = vmatpush.bf16.msra.mxu0 %v1039
        %1243 = vmatpush.bf16.msra.mxu0 %v1037
        %1244 = vmatpush.bf16.msra.mxu0 %v1035
        %1245 = vmatmul.bf16.gmra.mxu0 %v836
        %v1246 = vpop.f32.mrf.mxu0
        %v1247 = vadd.f32 %v1154, %v1246
        %v1248 = vpop.f32.mrf.mxu0
        %v1249 = vadd.f32 %v1156, %v1248
        %1250 = vmatmul.bf16.gmra.mxu0 %v839
        %v1251 = vpop.f32.mrf.mxu0
        %v1252 = vadd.f32 %v1159, %v1251
        %v1253 = vpop.f32.mrf.mxu0
        %v1254 = vadd.f32 %v1161, %v1253
        %1255 = vmatmul.bf16.gmra.mxu0 %v842
        %v1256 = vpop.f32.mrf.mxu0
        %v1257 = vadd.f32 %v1164, %v1256
        %v1258 = vpop.f32.mrf.mxu0
        %v1259 = vadd.f32 %v1166, %v1258
        %1260 = vmatmul.bf16.gmra.mxu0 %v845
        %v1261 = vpop.f32.mrf.mxu0
        %v1262 = vadd.f32 %v1169, %v1261
        %v1263 = vpop.f32.mrf.mxu0
        %v1264 = vadd.f32 %v1171, %v1263
        %1265 = vmatmul.bf16.gmra.mxu0 %v848
        %v1266 = vpop.f32.mrf.mxu0
        %v1267 = vadd.f32 %v1174, %v1266
        %v1268 = vpop.f32.mrf.mxu0
        %v1269 = vadd.f32 %v1176, %v1268
        %1270 = vmatmul.bf16.gmra.mxu0 %v851
        %v1271 = vpop.f32.mrf.mxu0
        %v1272 = vadd.f32 %v1179, %v1271
        %v1273 = vpop.f32.mrf.mxu0
        %v1274 = vadd.f32 %v1181, %v1273
        %1275 = vmatmul.bf16.gmra.mxu0 %v854
        %v1276 = vpop.f32.mrf.mxu0
        %v1277 = vadd.f32 %v1184, %v1276
        %v1278 = vpop.f32.mrf.mxu0
        %v1279 = vadd.f32 %v1186, %v1278
        %1280 = vmatmul.bf16.gmra.mxu0 %v857
        %v1281 = vpop.f32.mrf.mxu0
        %v1282 = vadd.f32 %v1189, %v1281
        %v1283 = vpop.f32.mrf.mxu0
        %v1284 = vadd.f32 %v1191, %v1283
        %1285 = vmatmul.bf16.gmra.mxu0 %v860
        %v1286 = vpop.f32.mrf.mxu0
        %v1287 = vadd.f32 %v1194, %v1286
        %v1288 = vpop.f32.mrf.mxu0
        %v1289 = vadd.f32 %v1196, %v1288
        %1290 = vmatmul.bf16.gmra.mxu0 %v863
        %v1291 = vpop.f32.mrf.mxu0
        %v1292 = vadd.f32 %v1199, %v1291
        %v1293 = vpop.f32.mrf.mxu0
        %v1294 = vadd.f32 %v1201, %v1293
        %1295 = vmatmul.bf16.gmra.mxu0 %v866
        %v1296 = vpop.f32.mrf.mxu0
        %v1297 = vadd.f32 %v1204, %v1296
        %v1298 = vpop.f32.mrf.mxu0
        %v1299 = vadd.f32 %v1206, %v1298
        %1300 = vmatmul.bf16.gmra.mxu0 %v869
        %v1301 = vpop.f32.mrf.mxu0
        %v1302 = vadd.f32 %v1209, %v1301
        %v1303 = vpop.f32.mrf.mxu0
        %v1304 = vadd.f32 %v1211, %v1303
        %1305 = vmatmul.bf16.gmra.mxu0 %v872
        %v1306 = vpop.f32.mrf.mxu0
        %v1307 = vadd.f32 %v1214, %v1306
        %v1308 = vpop.f32.mrf.mxu0
        %v1309 = vadd.f32 %v1216, %v1308
        %1310 = vmatmul.bf16.gmra.mxu0 %v875
        %v1311 = vpop.f32.mrf.mxu0
        %v1312 = vadd.f32 %v1219, %v1311
        %v1313 = vpop.f32.mrf.mxu0
        %v1314 = vadd.f32 %v1221, %v1313
        %1315 = vmatmul.bf16.gmra.mxu0 %v878
        %v1316 = vpop.f32.mrf.mxu0
        %v1317 = vadd.f32 %v1224, %v1316
        %v1318 = vpop.f32.mrf.mxu0
        %v1319 = vadd.f32 %v1226, %v1318
        %1320 = vmatmul.bf16.gmra.mxu0 %v881
        %v1321 = vpop.f32.mrf.mxu0
        %v1322 = vadd.f32 %v1229, %v1321
        %v1323 = vpop.f32.mrf.mxu0
        %v1324 = vadd.f32 %v1231, %v1323
        %1325 = vmatmul.bf16.gmra.mxu0 %v884
        %v1326 = vpop.f32.mrf.mxu0
        %v1327 = vadd.f32 %v1234, %v1326
        %v1328 = vpop.f32.mrf.mxu0
        %1329 = vdwg.mxu0
        %1330 = vmatpush.bf16.msra.mxu0 0
        %1331 = vmatpush.bf16.msra.mxu0 0
        %1332 = vmatpush.bf16.msra.mxu0 0
        %1333 = vmatpush.bf16.msra.mxu0 0
        %1334 = vmatpush.bf16.msra.mxu0 0
        %1335 = vmatpush.bf16.msra.mxu0 0
        %1336 = vmatpush.bf16.msra.mxu0 0
        %1337 = vmatpush.bf16.msra.mxu0 %v1139
        %1338 = vmatmul.bf16.gmra.mxu0 %v1087
        %v1339 = vpop.f32.mrf.mxu0
        %v1340 = vadd.f32 %v1247, %v1339
        %v1341 = vpop.f32.mrf.mxu0
        %v1342 = vadd.f32 %v1249, %v1341
        %1343 = vmatmul.bf16.gmra.mxu0 %v1090
        %v1344 = vpop.f32.mrf.mxu0
        %v1345 = vadd.f32 %v1252, %v1344
        %v1346 = vpop.f32.mrf.mxu0
        %v1347 = vadd.f32 %v1254, %v1346
        %1348 = vmatmul.bf16.gmra.mxu0 %v1093
        %v1349 = vpop.f32.mrf.mxu0
        %v1350 = vadd.f32 %v1257, %v1349
        %v1351 = vpop.f32.mrf.mxu0
        %v1352 = vadd.f32 %v1259, %v1351
        %1353 = vmatmul.bf16.gmra.mxu0 %v1096
        %v1354 = vpop.f32.mrf.mxu0
        %v1355 = vadd.f32 %v1262, %v1354
        %v1356 = vpop.f32.mrf.mxu0
        %v1357 = vadd.f32 %v1264, %v1356
        %1358 = vmatmul.bf16.gmra.mxu0 %v1099
        %v1359 = vpop.f32.mrf.mxu0
        %v1360 = vadd.f32 %v1267, %v1359
        %v1361 = vpop.f32.mrf.mxu0
        %v1362 = vadd.f32 %v1269, %v1361
        %1363 = vmatmul.bf16.gmra.mxu0 %v1102
        %v1364 = vpop.f32.mrf.mxu0
        %v1365 = vadd.f32 %v1272, %v1364
        %v1366 = vpop.f32.mrf.mxu0
        %v1367 = vadd.f32 %v1274, %v1366
        %1368 = vmatmul.bf16.gmra.mxu0 %v1105
        %v1369 = vpop.f32.mrf.mxu0
        %v1370 = vadd.f32 %v1277, %v1369
        %v1371 = vpop.f32.mrf.mxu0
        %v1372 = vadd.f32 %v1279, %v1371
        %1373 = vmatmul.bf16.gmra.mxu0 %v1108
        %v1374 = vpop.f32.mrf.mxu0
        %v1375 = vadd.f32 %v1282, %v1374
        %v1376 = vpop.f32.mrf.mxu0
        %v1377 = vadd.f32 %v1284, %v1376
        %1378 = vmatmul.bf16.gmra.mxu0 %v1111
        %v1379 = vpop.f32.mrf.mxu0
        %v1380 = vadd.f32 %v1287, %v1379
        %v1381 = vpop.f32.mrf.mxu0
        %v1382 = vadd.f32 %v1289, %v1381
        %1383 = vmatmul.bf16.gmra.mxu0 %v1114
        %v1384 = vpop.f32.mrf.mxu0
        %v1385 = vadd.f32 %v1292, %v1384
        %v1386 = vpop.f32.mrf.mxu0
        %v1387 = vadd.f32 %v1294, %v1386
        %1388 = vmatmul.bf16.gmra.mxu0 %v1117
        %v1389 = vpop.f32.mrf.mxu0
        %v1390 = vadd.f32 %v1297, %v1389
        %v1391 = vpop.f32.mrf.mxu0
        %v1392 = vadd.f32 %v1299, %v1391
        %1393 = vmatmul.bf16.gmra.mxu0 %v1120
        %v1394 = vpop.f32.mrf.mxu0
        %v1395 = vadd.f32 %v1302, %v1394
        %v1396 = vpop.f32.mrf.mxu0
        %v1397 = vadd.f32 %v1304, %v1396
        %1398 = vmatmul.bf16.gmra.mxu0 %v1123
        %v1399 = vpop.f32.mrf.mxu0
        %v1400 = vadd.f32 %v1307, %v1399
        %v1401 = vpop.f32.mrf.mxu0
        %v1402 = vadd.f32 %v1309, %v1401
        %1403 = vmatmul.bf16.gmra.mxu0 %v1126
        %v1404 = vpop.f32.mrf.mxu0
        %v1405 = vadd.f32 %v1312, %v1404
        %v1406 = vpop.f32.mrf.mxu0
        %v1407 = vadd.f32 %v1314, %v1406
        %1408 = vmatmul.bf16.gmra.mxu0 %v1129
        %v1409 = vpop.f32.mrf.mxu0
        %v1410 = vadd.f32 %v1317, %v1409
        %v1411 = vpop.f32.mrf.mxu0
        %v1412 = vadd.f32 %v1319, %v1411
        %1413 = vmatmul.bf16.gmra.mxu0 %v1132
        %v1414 = vpop.f32.mrf.mxu0
        %v1415 = vadd.f32 %v1322, %v1414
        %v1416 = vpop.f32.mrf.mxu0
        %v1417 = vadd.f32 %v1324, %v1416
        %1418 = vmatmul.bf16.gmra.mxu0 %v1135
        %v1419 = vpop.f32.mrf.mxu0
        %v1420 = vadd.f32 %v1327, %v1419
        %v1421 = vpop.f32.mrf.mxu0
        %1422 = vdwg.mxu0
        %1423 = vmatpush.bf16.msra.mxu0 %v1034
        %1424 = vmatpush.bf16.msra.mxu0 %v1032
        %1425 = vmatpush.bf16.msra.mxu0 %v1030
        %1426 = vmatpush.bf16.msra.mxu0 %v1028
        %1427 = vmatpush.bf16.msra.mxu0 %v1026
        %1428 = vmatpush.bf16.msra.mxu0 %v1024
        %1429 = vmatpush.bf16.msra.mxu0 %v1022
        %1430 = vmatpush.bf16.msra.mxu0 %v1020
        %1431 = vmatmul.bf16.gmra.mxu0 %v835
        %v1432 = vpop.f32.mrf.mxu0
        %v1433 = vadd.f32 %v508, %v1432
        %v1434 = vpop.f32.mrf.mxu0
        %v1435 = vadd.f32 %v513, %v1434
        %1436 = vmatmul.bf16.gmra.mxu0 %v838
        %v1437 = vpop.f32.mrf.mxu0
        %v1438 = vadd.f32 %v518, %v1437
        %v1439 = vpop.f32.mrf.mxu0
        %v1440 = vadd.f32 %v523, %v1439
        %1441 = vmatmul.bf16.gmra.mxu0 %v841
        %v1442 = vpop.f32.mrf.mxu0
        %v1443 = vadd.f32 %v528, %v1442
        %v1444 = vpop.f32.mrf.mxu0
        %v1445 = vadd.f32 %v533, %v1444
        %1446 = vmatmul.bf16.gmra.mxu0 %v844
        %v1447 = vpop.f32.mrf.mxu0
        %v1448 = vadd.f32 %v538, %v1447
        %v1449 = vpop.f32.mrf.mxu0
        %v1450 = vadd.f32 %v543, %v1449
        %1451 = vmatmul.bf16.gmra.mxu0 %v847
        %v1452 = vpop.f32.mrf.mxu0
        %v1453 = vadd.f32 %v548, %v1452
        %v1454 = vpop.f32.mrf.mxu0
        %v1455 = vadd.f32 %v553, %v1454
        %1456 = vmatmul.bf16.gmra.mxu0 %v850
        %v1457 = vpop.f32.mrf.mxu0
        %v1458 = vadd.f32 %v558, %v1457
        %v1459 = vpop.f32.mrf.mxu0
        %v1460 = vadd.f32 %v563, %v1459
        %1461 = vmatmul.bf16.gmra.mxu0 %v853
        %v1462 = vpop.f32.mrf.mxu0
        %v1463 = vadd.f32 %v568, %v1462
        %v1464 = vpop.f32.mrf.mxu0
        %v1465 = vadd.f32 %v573, %v1464
        %1466 = vmatmul.bf16.gmra.mxu0 %v856
        %v1467 = vpop.f32.mrf.mxu0
        %v1468 = vadd.f32 %v578, %v1467
        %v1469 = vpop.f32.mrf.mxu0
        %v1470 = vadd.f32 %v583, %v1469
        %1471 = vmatmul.bf16.gmra.mxu0 %v859
        %v1472 = vpop.f32.mrf.mxu0
        %v1473 = vadd.f32 %v588, %v1472
        %v1474 = vpop.f32.mrf.mxu0
        %v1475 = vadd.f32 %v593, %v1474
        %1476 = vmatmul.bf16.gmra.mxu0 %v862
        %v1477 = vpop.f32.mrf.mxu0
        %v1478 = vadd.f32 %v598, %v1477
        %v1479 = vpop.f32.mrf.mxu0
        %v1480 = vadd.f32 %v603, %v1479
        %1481 = vmatmul.bf16.gmra.mxu0 %v865
        %v1482 = vpop.f32.mrf.mxu0
        %v1483 = vadd.f32 %v608, %v1482
        %v1484 = vpop.f32.mrf.mxu0
        %v1485 = vadd.f32 %v613, %v1484
        %1486 = vmatmul.bf16.gmra.mxu0 %v868
        %v1487 = vpop.f32.mrf.mxu0
        %v1488 = vadd.f32 %v618, %v1487
        %v1489 = vpop.f32.mrf.mxu0
        %v1490 = vadd.f32 %v623, %v1489
        %1491 = vmatmul.bf16.gmra.mxu0 %v871
        %v1492 = vpop.f32.mrf.mxu0
        %v1493 = vadd.f32 %v628, %v1492
        %v1494 = vpop.f32.mrf.mxu0
        %v1495 = vadd.f32 %v633, %v1494
        %1496 = vmatmul.bf16.gmra.mxu0 %v874
        %v1497 = vpop.f32.mrf.mxu0
        %v1498 = vadd.f32 %v638, %v1497
        %v1499 = vpop.f32.mrf.mxu0
        %v1500 = vadd.f32 %v643, %v1499
        %1501 = vmatmul.bf16.gmra.mxu0 %v877
        %v1502 = vpop.f32.mrf.mxu0
        %v1503 = vadd.f32 %v648, %v1502
        %v1504 = vpop.f32.mrf.mxu0
        %v1505 = vadd.f32 %v653, %v1504
        %1506 = vmatmul.bf16.gmra.mxu0 %v880
        %v1507 = vpop.f32.mrf.mxu0
        %v1508 = vadd.f32 %v658, %v1507
        %v1509 = vpop.f32.mrf.mxu0
        %v1510 = vadd.f32 %v663, %v1509
        %1511 = vmatmul.bf16.gmra.mxu0 %v883
        %v1512 = vpop.f32.mrf.mxu0
        %v1513 = vadd.f32 %v668, %v1512
        %v1514 = vpop.f32.mrf.mxu0
        %1515 = vdwg.mxu0
        %1516 = vmatpush.bf16.msra.mxu0 %v1050
        %1517 = vmatpush.bf16.msra.mxu0 %v1048
        %1518 = vmatpush.bf16.msra.mxu0 %v1046
        %1519 = vmatpush.bf16.msra.mxu0 %v1044
        %1520 = vmatpush.bf16.msra.mxu0 %v1042
        %1521 = vmatpush.bf16.msra.mxu0 %v1040
        %1522 = vmatpush.bf16.msra.mxu0 %v1038
        %1523 = vmatpush.bf16.msra.mxu0 %v1036
        %1524 = vmatmul.bf16.gmra.mxu0 %v836
        %v1525 = vpop.f32.mrf.mxu0
        %v1526 = vadd.f32 %v1433, %v1525
        %v1527 = vpop.f32.mrf.mxu0
        %v1528 = vadd.f32 %v1435, %v1527
        %1529 = vmatmul.bf16.gmra.mxu0 %v839
        %v1530 = vpop.f32.mrf.mxu0
        %v1531 = vadd.f32 %v1438, %v1530
        %v1532 = vpop.f32.mrf.mxu0
        %v1533 = vadd.f32 %v1440, %v1532
        %1534 = vmatmul.bf16.gmra.mxu0 %v842
        %v1535 = vpop.f32.mrf.mxu0
        %v1536 = vadd.f32 %v1443, %v1535
        %v1537 = vpop.f32.mrf.mxu0
        %v1538 = vadd.f32 %v1445, %v1537
        %1539 = vmatmul.bf16.gmra.mxu0 %v845
        %v1540 = vpop.f32.mrf.mxu0
        %v1541 = vadd.f32 %v1448, %v1540
        %v1542 = vpop.f32.mrf.mxu0
        %v1543 = vadd.f32 %v1450, %v1542
        %1544 = vmatmul.bf16.gmra.mxu0 %v848
        %v1545 = vpop.f32.mrf.mxu0
        %v1546 = vadd.f32 %v1453, %v1545
        %v1547 = vpop.f32.mrf.mxu0
        %v1548 = vadd.f32 %v1455, %v1547
        %1549 = vmatmul.bf16.gmra.mxu0 %v851
        %v1550 = vpop.f32.mrf.mxu0
        %v1551 = vadd.f32 %v1458, %v1550
        %v1552 = vpop.f32.mrf.mxu0
        %v1553 = vadd.f32 %v1460, %v1552
        %1554 = vmatmul.bf16.gmra.mxu0 %v854
        %v1555 = vpop.f32.mrf.mxu0
        %v1556 = vadd.f32 %v1463, %v1555
        %v1557 = vpop.f32.mrf.mxu0
        %v1558 = vadd.f32 %v1465, %v1557
        %1559 = vmatmul.bf16.gmra.mxu0 %v857
        %v1560 = vpop.f32.mrf.mxu0
        %v1561 = vadd.f32 %v1468, %v1560
        %v1562 = vpop.f32.mrf.mxu0
        %v1563 = vadd.f32 %v1470, %v1562
        %1564 = vmatmul.bf16.gmra.mxu0 %v860
        %v1565 = vpop.f32.mrf.mxu0
        %v1566 = vadd.f32 %v1473, %v1565
        %v1567 = vpop.f32.mrf.mxu0
        %v1568 = vadd.f32 %v1475, %v1567
        %1569 = vmatmul.bf16.gmra.mxu0 %v863
        %v1570 = vpop.f32.mrf.mxu0
        %v1571 = vadd.f32 %v1478, %v1570
        %v1572 = vpop.f32.mrf.mxu0
        %v1573 = vadd.f32 %v1480, %v1572
        %1574 = vmatmul.bf16.gmra.mxu0 %v866
        %v1575 = vpop.f32.mrf.mxu0
        %v1576 = vadd.f32 %v1483, %v1575
        %v1577 = vpop.f32.mrf.mxu0
        %v1578 = vadd.f32 %v1485, %v1577
        %1579 = vmatmul.bf16.gmra.mxu0 %v869
        %v1580 = vpop.f32.mrf.mxu0
        %v1581 = vadd.f32 %v1488, %v1580
        %v1582 = vpop.f32.mrf.mxu0
        %v1583 = vadd.f32 %v1490, %v1582
        %1584 = vmatmul.bf16.gmra.mxu0 %v872
        %v1585 = vpop.f32.mrf.mxu0
        %v1586 = vadd.f32 %v1493, %v1585
        %v1587 = vpop.f32.mrf.mxu0
        %v1588 = vadd.f32 %v1495, %v1587
        %1589 = vmatmul.bf16.gmra.mxu0 %v875
        %v1590 = vpop.f32.mrf.mxu0
        %v1591 = vadd.f32 %v1498, %v1590
        %v1592 = vpop.f32.mrf.mxu0
        %v1593 = vadd.f32 %v1500, %v1592
        %1594 = vmatmul.bf16.gmra.mxu0 %v878
        %v1595 = vpop.f32.mrf.mxu0
        %v1596 = vadd.f32 %v1503, %v1595
        %v1597 = vpop.f32.mrf.mxu0
        %v1598 = vadd.f32 %v1505, %v1597
        %1599 = vmatmul.bf16.gmra.mxu0 %v881
        %v1600 = vpop.f32.mrf.mxu0
        %v1601 = vadd.f32 %v1508, %v1600
        %v1602 = vpop.f32.mrf.mxu0
        %v1603 = vadd.f32 %v1510, %v1602
        %1604 = vmatmul.bf16.gmra.mxu0 %v884
        %v1605 = vpop.f32.mrf.mxu0
        %v1606 = vadd.f32 %v1513, %v1605
        %v1607 = vpop.f32.mrf.mxu0
        %1608 = vdwg.mxu0
        %1609 = vmatpush.bf16.msra.mxu0 0
        %1610 = vmatpush.bf16.msra.mxu0 0
        %1611 = vmatpush.bf16.msra.mxu0 0
        %1612 = vmatpush.bf16.msra.mxu0 0
        %1613 = vmatpush.bf16.msra.mxu0 0
        %1614 = vmatpush.bf16.msra.mxu0 0
        %1615 = vmatpush.bf16.msra.mxu0 0
        %1616 = vmatpush.bf16.msra.mxu0 %v1142
        %1617 = vmatmul.bf16.gmra.mxu0 %v1087
        %v1618 = vpop.f32.mrf.mxu0
        %v1619 = vadd.f32 %v1526, %v1618
        %v1620 = vpop.f32.mrf.mxu0
        %v1621 = vadd.f32 %v1528, %v1620
        %1622 = vmatmul.bf16.gmra.mxu0 %v1090
        %v1623 = vpop.f32.mrf.mxu0
        %v1624 = vadd.f32 %v1531, %v1623
        %v1625 = vpop.f32.mrf.mxu0
        %v1626 = vadd.f32 %v1533, %v1625
        %1627 = vmatmul.bf16.gmra.mxu0 %v1093
        %v1628 = vpop.f32.mrf.mxu0
        %v1629 = vadd.f32 %v1536, %v1628
        %v1630 = vpop.f32.mrf.mxu0
        %v1631 = vadd.f32 %v1538, %v1630
        %1632 = vmatmul.bf16.gmra.mxu0 %v1096
        %v1633 = vpop.f32.mrf.mxu0
        %v1634 = vadd.f32 %v1541, %v1633
        %v1635 = vpop.f32.mrf.mxu0
        %v1636 = vadd.f32 %v1543, %v1635
        %1637 = vmatmul.bf16.gmra.mxu0 %v1099
        %v1638 = vpop.f32.mrf.mxu0
        %v1639 = vadd.f32 %v1546, %v1638
        %v1640 = vpop.f32.mrf.mxu0
        %v1641 = vadd.f32 %v1548, %v1640
        %1642 = vmatmul.bf16.gmra.mxu0 %v1102
        %v1643 = vpop.f32.mrf.mxu0
        %v1644 = vadd.f32 %v1551, %v1643
        %v1645 = vpop.f32.mrf.mxu0
        %v1646 = vadd.f32 %v1553, %v1645
        %1647 = vmatmul.bf16.gmra.mxu0 %v1105
        %v1648 = vpop.f32.mrf.mxu0
        %v1649 = vadd.f32 %v1556, %v1648
        %v1650 = vpop.f32.mrf.mxu0
        %v1651 = vadd.f32 %v1558, %v1650
        %1652 = vmatmul.bf16.gmra.mxu0 %v1108
        %v1653 = vpop.f32.mrf.mxu0
        %v1654 = vadd.f32 %v1561, %v1653
        %v1655 = vpop.f32.mrf.mxu0
        %v1656 = vadd.f32 %v1563, %v1655
        %1657 = vmatmul.bf16.gmra.mxu0 %v1111
        %v1658 = vpop.f32.mrf.mxu0
        %v1659 = vadd.f32 %v1566, %v1658
        %v1660 = vpop.f32.mrf.mxu0
        %v1661 = vadd.f32 %v1568, %v1660
        %1662 = vmatmul.bf16.gmra.mxu0 %v1114
        %v1663 = vpop.f32.mrf.mxu0
        %v1664 = vadd.f32 %v1571, %v1663
        %v1665 = vpop.f32.mrf.mxu0
        %v1666 = vadd.f32 %v1573, %v1665
        %1667 = vmatmul.bf16.gmra.mxu0 %v1117
        %v1668 = vpop.f32.mrf.mxu0
        %v1669 = vadd.f32 %v1576, %v1668
        %v1670 = vpop.f32.mrf.mxu0
        %v1671 = vadd.f32 %v1578, %v1670
        %1672 = vmatmul.bf16.gmra.mxu0 %v1120
        %v1673 = vpop.f32.mrf.mxu0
        %v1674 = vadd.f32 %v1581, %v1673
        %v1675 = vpop.f32.mrf.mxu0
        %v1676 = vadd.f32 %v1583, %v1675
        %1677 = vmatmul.bf16.gmra.mxu0 %v1123
        %v1678 = vpop.f32.mrf.mxu0
        %v1679 = vadd.f32 %v1586, %v1678
        %v1680 = vpop.f32.mrf.mxu0
        %v1681 = vadd.f32 %v1588, %v1680
        %1682 = vmatmul.bf16.gmra.mxu0 %v1126
        %v1683 = vpop.f32.mrf.mxu0
        %v1684 = vadd.f32 %v1591, %v1683
        %v1685 = vpop.f32.mrf.mxu0
        %v1686 = vadd.f32 %v1593, %v1685
        %1687 = vmatmul.bf16.gmra.mxu0 %v1129
        %v1688 = vpop.f32.mrf.mxu0
        %v1689 = vadd.f32 %v1596, %v1688
        %v1690 = vpop.f32.mrf.mxu0
        %v1691 = vadd.f32 %v1598, %v1690
        %1692 = vmatmul.bf16.gmra.mxu0 %v1132
        %v1693 = vpop.f32.mrf.mxu0
        %v1694 = vadd.f32 %v1601, %v1693
        %v1695 = vpop.f32.mrf.mxu0
        %v1696 = vadd.f32 %v1603, %v1695
        %1697 = vmatmul.bf16.gmra.mxu0 %v1135
        %v1698 = vpop.f32.mrf.mxu0
        %v1699 = vadd.f32 %v1606, %v1698
        %v1700 = vpop.f32.mrf.mxu0
        %1701 = vdwg.mxu0
        %v1702 = vld [vmem:[%s361] sm:$0xff]
        %v1703 = vld [vmem:[%s361 + $0x8] sm:$0xff]
        %v1704 = vld [vmem:[%s361 + $0x10] sm:$0xff]
        %v1705 = vld [vmem:[%s361 + $0x18] sm:$0xff]
        %v1706 = vld [vmem:[%s361 + $0x20] sm:$0xff]
        %v1707 = vld [vmem:[%s361 + $0x28] sm:$0xff]
        %v1708 = vld [vmem:[%s361 + $0x30] sm:$0xff]
        %v1709 = vld [vmem:[%s361 + $0x38] sm:$0xff]
        %v1710 = vld [vmem:[%s361 + $0x40] sm:$0xff]
        %v1711 = vld [vmem:[%s361 + $0x48] sm:$0xff]
        %v1712 = vld [vmem:[%s361 + $0x50] sm:$0xff]
        %v1713 = vld [vmem:[%s361 + $0x58] sm:$0xff]
        %v1714 = vld [vmem:[%s361 + $0x60] sm:$0xff]
        %v1715 = vld [vmem:[%s361 + $0x68] sm:$0xff]
        %v1716 = vld [vmem:[%s361 + $0x70] sm:$0xff]
        %v1717 = vld [vmem:[%s361 + $0x78] sm:$0xff]
        %v1718 = vld [vmem:[%s361 + $0x80] sm:$0xff]
        %v1719 = vld [vmem:[%s361 + $0x88] sm:$0xff]
        %v1720 = vld [vmem:[%s361 + $0x90] sm:$0xff]
        %v1721 = vld [vmem:[%s361 + $0x98] sm:$0xff]
        %v1722 = vld [vmem:[%s361 + $0xa0] sm:$0xff]
        %v1723 = vld [vmem:[%s361 + $0xa8] sm:$0xff]
        %v1724 = vld [vmem:[%s361 + $0xb0] sm:$0xff]
        %v1725 = vld [vmem:[%s361 + $0xb8] sm:$0xff]
        %v1726 = vld [vmem:[%s361 + $0xc0] sm:$0xff]
        %v1727 = vld [vmem:[%s361 + $0xc8] sm:$0xff]
        %v1728 = vld [vmem:[%s361 + $0xd0] sm:$0xff]
        %v1729 = vld [vmem:[%s361 + $0xd8] sm:$0xff]
        %v1730 = vld [vmem:[%s361 + $0xe0] sm:$0xff]
        %v1731 = vld [vmem:[%s361 + $0xe8] sm:$0xff]
        %v1732 = vld [vmem:[%s361 + $0xf0] sm:$0xff]
        %v1733 = vld [vmem:[%s361 + $0xf8] sm:$0xff]
        %v1734 = vld [vmem:[%s361 + $0x100] sm:$0xff]
        %v1768 = vunpack.c.l.b16 %v1702
        %v1769 = vunpack.c.h.b16 %v1702
        %v1770 = vunpack.c.l.b16 %v1703
        %v1771 = vunpack.c.h.b16 %v1703
        %v1772 = vunpack.c.l.b16 %v1704
        %v1773 = vunpack.c.h.b16 %v1704
        %v1774 = vunpack.c.l.b16 %v1705
        %v1775 = vunpack.c.h.b16 %v1705
        %v1776 = vunpack.c.l.b16 %v1706
        %v1777 = vunpack.c.h.b16 %v1706
        %v1778 = vunpack.c.l.b16 %v1707
        %v1779 = vunpack.c.h.b16 %v1707
        %v1780 = vunpack.c.l.b16 %v1708
        %v1781 = vunpack.c.h.b16 %v1708
        %v1782 = vunpack.c.l.b16 %v1709
        %v1783 = vunpack.c.h.b16 %v1709
        %v1784 = vunpack.c.l.b16 %v1710
        %v1785 = vunpack.c.h.b16 %v1710
        %v1786 = vunpack.c.l.b16 %v1711
        %v1787 = vunpack.c.h.b16 %v1711
        %v1788 = vunpack.c.l.b16 %v1712
        %v1789 = vunpack.c.h.b16 %v1712
        %v1790 = vunpack.c.l.b16 %v1713
        %v1791 = vunpack.c.h.b16 %v1713
        %v1792 = vunpack.c.l.b16 %v1714
        %v1793 = vunpack.c.h.b16 %v1714
        %v1794 = vunpack.c.l.b16 %v1715
        %v1795 = vunpack.c.h.b16 %v1715
        %v1796 = vunpack.c.l.b16 %v1716
        %v1797 = vunpack.c.h.b16 %v1716
        %v1798 = vunpack.c.l.b16 %v1717
        %v1799 = vunpack.c.h.b16 %v1717
        %v1800 = vunpack.c.l.b16 %v1718
        %v1801 = vunpack.c.h.b16 %v1718
        %v1802 = vunpack.c.l.b16 %v1719
        %v1803 = vunpack.c.h.b16 %v1719
        %v1804 = vunpack.c.l.b16 %v1720
        %v1805 = vunpack.c.h.b16 %v1720
        %v1806 = vunpack.c.l.b16 %v1721
        %v1807 = vunpack.c.h.b16 %v1721
        %v1808 = vunpack.c.l.b16 %v1722
        %v1809 = vunpack.c.h.b16 %v1722
        %v1810 = vunpack.c.l.b16 %v1723
        %v1811 = vunpack.c.h.b16 %v1723
        %v1812 = vunpack.c.l.b16 %v1724
        %v1813 = vunpack.c.h.b16 %v1724
        %v1814 = vunpack.c.l.b16 %v1725
        %v1815 = vunpack.c.h.b16 %v1725
        %v1816 = vunpack.c.l.b16 %v1726
        %v1817 = vunpack.c.h.b16 %v1726
        %v1818 = vunpack.c.l.b16 %v1727
        %v1819 = vunpack.c.h.b16 %v1727
        %v1820 = vunpack.c.l.b16 %v1728
        %v1821 = vunpack.c.h.b16 %v1728
        %v1822 = vunpack.c.l.b16 %v1729
        %v1823 = vunpack.c.h.b16 %v1729
        %v1824 = vunpack.c.l.b16 %v1730
        %v1825 = vunpack.c.h.b16 %v1730
        %v1826 = vunpack.c.l.b16 %v1731
        %v1827 = vunpack.c.h.b16 %v1731
        %v1828 = vunpack.c.l.b16 %v1732
        %v1829 = vunpack.c.h.b16 %v1732
        %v1830 = vunpack.c.l.b16 %v1733
        %v1831 = vunpack.c.h.b16 %v1733
        %v1832 = vunpack.c.l.b16 %v1734
        %v1833 = vunpack.c.h.b16 %v1734
        %v1834 = vpack.c.b16 %v1770, %v1768
        %v1835 = vpack.c.b16 %v1771, %v1769
        %v1836 = vpack.c.b16 %v1774, %v1772
        %v1837 = vpack.c.b16 %v1775, %v1773
        %v1838 = vpack.c.b16 %v1778, %v1776
        %v1839 = vpack.c.b16 %v1779, %v1777
        %v1840 = vpack.c.b16 %v1782, %v1780
        %v1841 = vpack.c.b16 %v1783, %v1781
        %v1842 = vpack.c.b16 %v1786, %v1784
        %v1843 = vpack.c.b16 %v1787, %v1785
        %v1844 = vpack.c.b16 %v1790, %v1788
        %v1845 = vpack.c.b16 %v1791, %v1789
        %v1846 = vpack.c.b16 %v1794, %v1792
        %v1847 = vpack.c.b16 %v1795, %v1793
        %v1848 = vpack.c.b16 %v1798, %v1796
        %v1849 = vpack.c.b16 %v1799, %v1797
        %v1850 = vpack.c.b16 %v1802, %v1800
        %v1851 = vpack.c.b16 %v1803, %v1801
        %v1852 = vpack.c.b16 %v1806, %v1804
        %v1853 = vpack.c.b16 %v1807, %v1805
        %v1854 = vpack.c.b16 %v1810, %v1808
        %v1855 = vpack.c.b16 %v1811, %v1809
        %v1856 = vpack.c.b16 %v1814, %v1812
        %v1857 = vpack.c.b16 %v1815, %v1813
        %v1858 = vpack.c.b16 %v1818, %v1816
        %v1859 = vpack.c.b16 %v1819, %v1817
        %v1860 = vpack.c.b16 %v1822, %v1820
        %v1861 = vpack.c.b16 %v1823, %v1821
        %v1862 = vpack.c.b16 %v1826, %v1824
        %v1863 = vpack.c.b16 %v1827, %v1825
        %v1864 = vpack.c.b16 %v1830, %v1828
        %v1865 = vpack.c.b16 %v1831, %v1829
        %v1866 = vpack.c.b16 %v1832, %v1832
        %v1867 = vpack.c.b16 %v1833, %v1833
        %v1901 = vsel %vm1137, %v1866, 0
        %v1904 = vsel %vm1137, %v1867, 0
        %1906 = vmatpush.bf16.msra.mxu0 %v1848
        %1907 = vmatpush.bf16.msra.mxu0 %v1846
        %1908 = vmatpush.bf16.msra.mxu0 %v1844
        %1909 = vmatpush.bf16.msra.mxu0 %v1842
        %1910 = vmatpush.bf16.msra.mxu0 %v1840
        %1911 = vmatpush.bf16.msra.mxu0 %v1838
        %1912 = vmatpush.bf16.msra.mxu0 %v1836
        %1913 = vmatpush.bf16.msra.mxu0 %v1834
        %1914 = vmatmul.bf16.gmra.mxu0 %v835
        %v1915 = vpop.f32.mrf.mxu0
        %v1916 = vadd.f32 %v508, %v1915
        %v1917 = vpop.f32.mrf.mxu0
        %v1918 = vadd.f32 %v513, %v1917
        %1919 = vmatmul.bf16.gmra.mxu0 %v838
        %v1920 = vpop.f32.mrf.mxu0
        %v1921 = vadd.f32 %v518, %v1920
        %v1922 = vpop.f32.mrf.mxu0
        %v1923 = vadd.f32 %v523, %v1922
        %1924 = vmatmul.bf16.gmra.mxu0 %v841
        %v1925 = vpop.f32.mrf.mxu0
        %v1926 = vadd.f32 %v528, %v1925
        %v1927 = vpop.f32.mrf.mxu0
        %v1928 = vadd.f32 %v533, %v1927
        %1929 = vmatmul.bf16.gmra.mxu0 %v844
        %v1930 = vpop.f32.mrf.mxu0
        %v1931 = vadd.f32 %v538, %v1930
        %v1932 = vpop.f32.mrf.mxu0
        %v1933 = vadd.f32 %v543, %v1932
        %1934 = vmatmul.bf16.gmra.mxu0 %v847
        %v1935 = vpop.f32.mrf.mxu0
        %v1936 = vadd.f32 %v548, %v1935
        %v1937 = vpop.f32.mrf.mxu0
        %v1938 = vadd.f32 %v553, %v1937
        %1939 = vmatmul.bf16.gmra.mxu0 %v850
        %v1940 = vpop.f32.mrf.mxu0
        %v1941 = vadd.f32 %v558, %v1940
        %v1942 = vpop.f32.mrf.mxu0
        %v1943 = vadd.f32 %v563, %v1942
        %1944 = vmatmul.bf16.gmra.mxu0 %v853
        %v1945 = vpop.f32.mrf.mxu0
        %v1946 = vadd.f32 %v568, %v1945
        %v1947 = vpop.f32.mrf.mxu0
        %v1948 = vadd.f32 %v573, %v1947
        %1949 = vmatmul.bf16.gmra.mxu0 %v856
        %v1950 = vpop.f32.mrf.mxu0
        %v1951 = vadd.f32 %v578, %v1950
        %v1952 = vpop.f32.mrf.mxu0
        %v1953 = vadd.f32 %v583, %v1952
        %1954 = vmatmul.bf16.gmra.mxu0 %v859
        %v1955 = vpop.f32.mrf.mxu0
        %v1956 = vadd.f32 %v588, %v1955
        %v1957 = vpop.f32.mrf.mxu0
        %v1958 = vadd.f32 %v593, %v1957
        %1959 = vmatmul.bf16.gmra.mxu0 %v862
        %v1960 = vpop.f32.mrf.mxu0
        %v1961 = vadd.f32 %v598, %v1960
        %v1962 = vpop.f32.mrf.mxu0
        %v1963 = vadd.f32 %v603, %v1962
        %1964 = vmatmul.bf16.gmra.mxu0 %v865
        %v1965 = vpop.f32.mrf.mxu0
        %v1966 = vadd.f32 %v608, %v1965
        %v1967 = vpop.f32.mrf.mxu0
        %v1968 = vadd.f32 %v613, %v1967
        %1969 = vmatmul.bf16.gmra.mxu0 %v868
        %v1970 = vpop.f32.mrf.mxu0
        %v1971 = vadd.f32 %v618, %v1970
        %v1972 = vpop.f32.mrf.mxu0
        %v1973 = vadd.f32 %v623, %v1972
        %1974 = vmatmul.bf16.gmra.mxu0 %v871
        %v1975 = vpop.f32.mrf.mxu0
        %v1976 = vadd.f32 %v628, %v1975
        %v1977 = vpop.f32.mrf.mxu0
        %v1978 = vadd.f32 %v633, %v1977
        %1979 = vmatmul.bf16.gmra.mxu0 %v874
        %v1980 = vpop.f32.mrf.mxu0
        %v1981 = vadd.f32 %v638, %v1980
        %v1982 = vpop.f32.mrf.mxu0
        %v1983 = vadd.f32 %v643, %v1982
        %1984 = vmatmul.bf16.gmra.mxu0 %v877
        %v1985 = vpop.f32.mrf.mxu0
        %v1986 = vadd.f32 %v648, %v1985
        %v1987 = vpop.f32.mrf.mxu0
        %v1988 = vadd.f32 %v653, %v1987
        %1989 = vmatmul.bf16.gmra.mxu0 %v880
        %v1990 = vpop.f32.mrf.mxu0
        %v1991 = vadd.f32 %v658, %v1990
        %v1992 = vpop.f32.mrf.mxu0
        %v1993 = vadd.f32 %v663, %v1992
        %1994 = vmatmul.bf16.gmra.mxu0 %v883
        %v1995 = vpop.f32.mrf.mxu0
        %v1996 = vadd.f32 %v668, %v1995
        %v1997 = vpop.f32.mrf.mxu0
        %1998 = vdwg.mxu0
        %1999 = vmatpush.bf16.msra.mxu0 %v1864
        %2000 = vmatpush.bf16.msra.mxu0 %v1862
        %2001 = vmatpush.bf16.msra.mxu0 %v1860
        %2002 = vmatpush.bf16.msra.mxu0 %v1858
        %2003 = vmatpush.bf16.msra.mxu0 %v1856
        %2004 = vmatpush.bf16.msra.mxu0 %v1854
        %2005 = vmatpush.bf16.msra.mxu0 %v1852
        %2006 = vmatpush.bf16.msra.mxu0 %v1850
        %2007 = vmatmul.bf16.gmra.mxu0 %v836
        %v2008 = vpop.f32.mrf.mxu0
        %v2009 = vadd.f32 %v1916, %v2008
        %v2010 = vpop.f32.mrf.mxu0
        %v2011 = vadd.f32 %v1918, %v2010
        %2012 = vmatmul.bf16.gmra.mxu0 %v839
        %v2013 = vpop.f32.mrf.mxu0
        %v2014 = vadd.f32 %v1921, %v2013
        %v2015 = vpop.f32.mrf.mxu0
        %v2016 = vadd.f32 %v1923, %v2015
        %2017 = vmatmul.bf16.gmra.mxu0 %v842
        %v2018 = vpop.f32.mrf.mxu0
        %v2019 = vadd.f32 %v1926, %v2018
        %v2020 = vpop.f32.mrf.mxu0
        %v2021 = vadd.f32 %v1928, %v2020
        %2022 = vmatmul.bf16.gmra.mxu0 %v845
        %v2023 = vpop.f32.mrf.mxu0
        %v2024 = vadd.f32 %v1931, %v2023
        %v2025 = vpop.f32.mrf.mxu0
        %v2026 = vadd.f32 %v1933, %v2025
        %2027 = vmatmul.bf16.gmra.mxu0 %v848
        %v2028 = vpop.f32.mrf.mxu0
        %v2029 = vadd.f32 %v1936, %v2028
        %v2030 = vpop.f32.mrf.mxu0
        %v2031 = vadd.f32 %v1938, %v2030
        %2032 = vmatmul.bf16.gmra.mxu0 %v851
        %v2033 = vpop.f32.mrf.mxu0
        %v2034 = vadd.f32 %v1941, %v2033
        %v2035 = vpop.f32.mrf.mxu0
        %v2036 = vadd.f32 %v1943, %v2035
        %2037 = vmatmul.bf16.gmra.mxu0 %v854
        %v2038 = vpop.f32.mrf.mxu0
        %v2039 = vadd.f32 %v1946, %v2038
        %v2040 = vpop.f32.mrf.mxu0
        %v2041 = vadd.f32 %v1948, %v2040
        %2042 = vmatmul.bf16.gmra.mxu0 %v857
        %v2043 = vpop.f32.mrf.mxu0
        %v2044 = vadd.f32 %v1951, %v2043
        %v2045 = vpop.f32.mrf.mxu0
        %v2046 = vadd.f32 %v1953, %v2045
        %2047 = vmatmul.bf16.gmra.mxu0 %v860
        %v2048 = vpop.f32.mrf.mxu0
        %v2049 = vadd.f32 %v1956, %v2048
        %v2050 = vpop.f32.mrf.mxu0
        %v2051 = vadd.f32 %v1958, %v2050
        %2052 = vmatmul.bf16.gmra.mxu0 %v863
        %v2053 = vpop.f32.mrf.mxu0
        %v2054 = vadd.f32 %v1961, %v2053
        %v2055 = vpop.f32.mrf.mxu0
        %v2056 = vadd.f32 %v1963, %v2055
        %2057 = vmatmul.bf16.gmra.mxu0 %v866
        %v2058 = vpop.f32.mrf.mxu0
        %v2059 = vadd.f32 %v1966, %v2058
        %v2060 = vpop.f32.mrf.mxu0
        %v2061 = vadd.f32 %v1968, %v2060
        %2062 = vmatmul.bf16.gmra.mxu0 %v869
        %v2063 = vpop.f32.mrf.mxu0
        %v2064 = vadd.f32 %v1971, %v2063
        %v2065 = vpop.f32.mrf.mxu0
        %v2066 = vadd.f32 %v1973, %v2065
        %2067 = vmatmul.bf16.gmra.mxu0 %v872
        %v2068 = vpop.f32.mrf.mxu0
        %v2069 = vadd.f32 %v1976, %v2068
        %v2070 = vpop.f32.mrf.mxu0
        %v2071 = vadd.f32 %v1978, %v2070
        %2072 = vmatmul.bf16.gmra.mxu0 %v875
        %v2073 = vpop.f32.mrf.mxu0
        %v2074 = vadd.f32 %v1981, %v2073
        %v2075 = vpop.f32.mrf.mxu0
        %v2076 = vadd.f32 %v1983, %v2075
        %2077 = vmatmul.bf16.gmra.mxu0 %v878
        %v2078 = vpop.f32.mrf.mxu0
        %v2079 = vadd.f32 %v1986, %v2078
        %v2080 = vpop.f32.mrf.mxu0
        %v2081 = vadd.f32 %v1988, %v2080
        %2082 = vmatmul.bf16.gmra.mxu0 %v881
        %v2083 = vpop.f32.mrf.mxu0
        %v2084 = vadd.f32 %v1991, %v2083
        %v2085 = vpop.f32.mrf.mxu0
        %v2086 = vadd.f32 %v1993, %v2085
        %2087 = vmatmul.bf16.gmra.mxu0 %v884
        %v2088 = vpop.f32.mrf.mxu0
        %v2089 = vadd.f32 %v1996, %v2088
        %v2090 = vpop.f32.mrf.mxu0
        %2091 = vdwg.mxu0
        %2092 = vmatpush.bf16.msra.mxu0 0
        %2093 = vmatpush.bf16.msra.mxu0 0
        %2094 = vmatpush.bf16.msra.mxu0 0
        %2095 = vmatpush.bf16.msra.mxu0 0
        %2096 = vmatpush.bf16.msra.mxu0 0
        %2097 = vmatpush.bf16.msra.mxu0 0
        %2098 = vmatpush.bf16.msra.mxu0 0
        %2099 = vmatpush.bf16.msra.mxu0 %v1901
        %2100 = vmatmul.bf16.gmra.mxu0 %v1087
        %v2101 = vpop.f32.mrf.mxu0
        %v2102 = vadd.f32 %v2009, %v2101
        %v2103 = vpop.f32.mrf.mxu0
        %v2104 = vadd.f32 %v2011, %v2103
        %2105 = vmatmul.bf16.gmra.mxu0 %v1090
        %v2106 = vpop.f32.mrf.mxu0
        %v2107 = vadd.f32 %v2014, %v2106
        %v2108 = vpop.f32.mrf.mxu0
        %v2109 = vadd.f32 %v2016, %v2108
        %2110 = vmatmul.bf16.gmra.mxu0 %v1093
        %v2111 = vpop.f32.mrf.mxu0
        %v2112 = vadd.f32 %v2019, %v2111
        %v2113 = vpop.f32.mrf.mxu0
        %v2114 = vadd.f32 %v2021, %v2113
        %2115 = vmatmul.bf16.gmra.mxu0 %v1096
        %v2116 = vpop.f32.mrf.mxu0
        %v2117 = vadd.f32 %v2024, %v2116
        %v2118 = vpop.f32.mrf.mxu0
        %v2119 = vadd.f32 %v2026, %v2118
        %2120 = vmatmul.bf16.gmra.mxu0 %v1099
        %v2121 = vpop.f32.mrf.mxu0
        %v2122 = vadd.f32 %v2029, %v2121
        %v2123 = vpop.f32.mrf.mxu0
        %v2124 = vadd.f32 %v2031, %v2123
        %2125 = vmatmul.bf16.gmra.mxu0 %v1102
        %v2126 = vpop.f32.mrf.mxu0
        %v2127 = vadd.f32 %v2034, %v2126
        %v2128 = vpop.f32.mrf.mxu0
        %v2129 = vadd.f32 %v2036, %v2128
        %2130 = vmatmul.bf16.gmra.mxu0 %v1105
        %v2131 = vpop.f32.mrf.mxu0
        %v2132 = vadd.f32 %v2039, %v2131
        %v2133 = vpop.f32.mrf.mxu0
        %v2134 = vadd.f32 %v2041, %v2133
        %2135 = vmatmul.bf16.gmra.mxu0 %v1108
        %v2136 = vpop.f32.mrf.mxu0
        %v2137 = vadd.f32 %v2044, %v2136
        %v2138 = vpop.f32.mrf.mxu0
        %v2139 = vadd.f32 %v2046, %v2138
        %2140 = vmatmul.bf16.gmra.mxu0 %v1111
        %v2141 = vpop.f32.mrf.mxu0
        %v2142 = vadd.f32 %v2049, %v2141
        %v2143 = vpop.f32.mrf.mxu0
        %v2144 = vadd.f32 %v2051, %v2143
        %2145 = vmatmul.bf16.gmra.mxu0 %v1114
        %v2146 = vpop.f32.mrf.mxu0
        %v2147 = vadd.f32 %v2054, %v2146
        %v2148 = vpop.f32.mrf.mxu0
        %v2149 = vadd.f32 %v2056, %v2148
        %2150 = vmatmul.bf16.gmra.mxu0 %v1117
        %v2151 = vpop.f32.mrf.mxu0
        %v2152 = vadd.f32 %v2059, %v2151
        %v2153 = vpop.f32.mrf.mxu0
        %v2154 = vadd.f32 %v2061, %v2153
        %2155 = vmatmul.bf16.gmra.mxu0 %v1120
        %v2156 = vpop.f32.mrf.mxu0
        %v2157 = vadd.f32 %v2064, %v2156
        %v2158 = vpop.f32.mrf.mxu0
        %v2159 = vadd.f32 %v2066, %v2158
        %2160 = vmatmul.bf16.gmra.mxu0 %v1123
        %v2161 = vpop.f32.mrf.mxu0
        %v2162 = vadd.f32 %v2069, %v2161
        %v2163 = vpop.f32.mrf.mxu0
        %v2164 = vadd.f32 %v2071, %v2163
        %2165 = vmatmul.bf16.gmra.mxu0 %v1126
        %v2166 = vpop.f32.mrf.mxu0
        %v2167 = vadd.f32 %v2074, %v2166
        %v2168 = vpop.f32.mrf.mxu0
        %v2169 = vadd.f32 %v2076, %v2168
        %2170 = vmatmul.bf16.gmra.mxu0 %v1129
        %v2171 = vpop.f32.mrf.mxu0
        %v2172 = vadd.f32 %v2079, %v2171
        %v2173 = vpop.f32.mrf.mxu0
        %v2174 = vadd.f32 %v2081, %v2173
        %2175 = vmatmul.bf16.gmra.mxu0 %v1132
        %v2176 = vpop.f32.mrf.mxu0
        %v2177 = vadd.f32 %v2084, %v2176
        %v2178 = vpop.f32.mrf.mxu0
        %v2179 = vadd.f32 %v2086, %v2178
        %2180 = vmatmul.bf16.gmra.mxu0 %v1135
        %v2181 = vpop.f32.mrf.mxu0
        %v2182 = vadd.f32 %v2089, %v2181
        %v2183 = vpop.f32.mrf.mxu0
        %2184 = vdwg.mxu0
        %2185 = vmatpush.bf16.msra.mxu0 %v1849
        %2186 = vmatpush.bf16.msra.mxu0 %v1847
        %2187 = vmatpush.bf16.msra.mxu0 %v1845
        %2188 = vmatpush.bf16.msra.mxu0 %v1843
        %2189 = vmatpush.bf16.msra.mxu0 %v1841
        %2190 = vmatpush.bf16.msra.mxu0 %v1839
        %2191 = vmatpush.bf16.msra.mxu0 %v1837
        %2192 = vmatpush.bf16.msra.mxu0 %v1835
        %2193 = vmatmul.bf16.gmra.mxu0 %v835
        %v2194 = vpop.f32.mrf.mxu0
        %v2195 = vadd.f32 %v508, %v2194
        %v2196 = vpop.f32.mrf.mxu0
        %v2197 = vadd.f32 %v513, %v2196
        %2198 = vmatmul.bf16.gmra.mxu0 %v838
        %v2199 = vpop.f32.mrf.mxu0
        %v2200 = vadd.f32 %v518, %v2199
        %v2201 = vpop.f32.mrf.mxu0
        %v2202 = vadd.f32 %v523, %v2201
        %2203 = vmatmul.bf16.gmra.mxu0 %v841
        %v2204 = vpop.f32.mrf.mxu0
        %v2205 = vadd.f32 %v528, %v2204
        %v2206 = vpop.f32.mrf.mxu0
        %v2207 = vadd.f32 %v533, %v2206
        %2208 = vmatmul.bf16.gmra.mxu0 %v844
        %v2209 = vpop.f32.mrf.mxu0
        %v2210 = vadd.f32 %v538, %v2209
        %v2211 = vpop.f32.mrf.mxu0
        %v2212 = vadd.f32 %v543, %v2211
        %2213 = vmatmul.bf16.gmra.mxu0 %v847
        %v2214 = vpop.f32.mrf.mxu0
        %v2215 = vadd.f32 %v548, %v2214
        %v2216 = vpop.f32.mrf.mxu0
        %v2217 = vadd.f32 %v553, %v2216
        %2218 = vmatmul.bf16.gmra.mxu0 %v850
        %v2219 = vpop.f32.mrf.mxu0
        %v2220 = vadd.f32 %v558, %v2219
        %v2221 = vpop.f32.mrf.mxu0
        %v2222 = vadd.f32 %v563, %v2221
        %2223 = vmatmul.bf16.gmra.mxu0 %v853
        %v2224 = vpop.f32.mrf.mxu0
        %v2225 = vadd.f32 %v568, %v2224
        %v2226 = vpop.f32.mrf.mxu0
        %v2227 = vadd.f32 %v573, %v2226
        %2228 = vmatmul.bf16.gmra.mxu0 %v856
        %v2229 = vpop.f32.mrf.mxu0
        %v2230 = vadd.f32 %v578, %v2229
        %v2231 = vpop.f32.mrf.mxu0
        %v2232 = vadd.f32 %v583, %v2231
        %2233 = vmatmul.bf16.gmra.mxu0 %v859
        %v2234 = vpop.f32.mrf.mxu0
        %v2235 = vadd.f32 %v588, %v2234
        %v2236 = vpop.f32.mrf.mxu0
        %v2237 = vadd.f32 %v593, %v2236
        %2238 = vmatmul.bf16.gmra.mxu0 %v862
        %v2239 = vpop.f32.mrf.mxu0
        %v2240 = vadd.f32 %v598, %v2239
        %v2241 = vpop.f32.mrf.mxu0
        %v2242 = vadd.f32 %v603, %v2241
        %2243 = vmatmul.bf16.gmra.mxu0 %v865
        %v2244 = vpop.f32.mrf.mxu0
        %v2245 = vadd.f32 %v608, %v2244
        %v2246 = vpop.f32.mrf.mxu0
        %v2247 = vadd.f32 %v613, %v2246
        %2248 = vmatmul.bf16.gmra.mxu0 %v868
        %v2249 = vpop.f32.mrf.mxu0
        %v2250 = vadd.f32 %v618, %v2249
        %v2251 = vpop.f32.mrf.mxu0
        %v2252 = vadd.f32 %v623, %v2251
        %2253 = vmatmul.bf16.gmra.mxu0 %v871
        %v2254 = vpop.f32.mrf.mxu0
        %v2255 = vadd.f32 %v628, %v2254
        %v2256 = vpop.f32.mrf.mxu0
        %v2257 = vadd.f32 %v633, %v2256
        %2258 = vmatmul.bf16.gmra.mxu0 %v874
        %v2259 = vpop.f32.mrf.mxu0
        %v2260 = vadd.f32 %v638, %v2259
        %v2261 = vpop.f32.mrf.mxu0
        %v2262 = vadd.f32 %v643, %v2261
        %2263 = vmatmul.bf16.gmra.mxu0 %v877
        %v2264 = vpop.f32.mrf.mxu0
        %v2265 = vadd.f32 %v648, %v2264
        %v2266 = vpop.f32.mrf.mxu0
        %v2267 = vadd.f32 %v653, %v2266
        %2268 = vmatmul.bf16.gmra.mxu0 %v880
        %v2269 = vpop.f32.mrf.mxu0
        %v2270 = vadd.f32 %v658, %v2269
        %v2271 = vpop.f32.mrf.mxu0
        %v2272 = vadd.f32 %v663, %v2271
        %2273 = vmatmul.bf16.gmra.mxu0 %v883
        %v2274 = vpop.f32.mrf.mxu0
        %v2275 = vadd.f32 %v668, %v2274
        %v2276 = vpop.f32.mrf.mxu0
        %2277 = vdwg.mxu0
        %2278 = vmatpush.bf16.msra.mxu0 %v1865
        %2279 = vmatpush.bf16.msra.mxu0 %v1863
        %2280 = vmatpush.bf16.msra.mxu0 %v1861
        %2281 = vmatpush.bf16.msra.mxu0 %v1859
        %2282 = vmatpush.bf16.msra.mxu0 %v1857
        %2283 = vmatpush.bf16.msra.mxu0 %v1855
        %2284 = vmatpush.bf16.msra.mxu0 %v1853
        %2285 = vmatpush.bf16.msra.mxu0 %v1851
        %2286 = vmatmul.bf16.gmra.mxu0 %v836
        %v2287 = vpop.f32.mrf.mxu0
        %v2288 = vadd.f32 %v2195, %v2287
        %v2289 = vpop.f32.mrf.mxu0
        %v2290 = vadd.f32 %v2197, %v2289
        %2291 = vmatmul.bf16.gmra.mxu0 %v839
        %v2292 = vpop.f32.mrf.mxu0
        %v2293 = vadd.f32 %v2200, %v2292
        %v2294 = vpop.f32.mrf.mxu0
        %v2295 = vadd.f32 %v2202, %v2294
        %2296 = vmatmul.bf16.gmra.mxu0 %v842
        %v2297 = vpop.f32.mrf.mxu0
        %v2298 = vadd.f32 %v2205, %v2297
        %v2299 = vpop.f32.mrf.mxu0
        %v2300 = vadd.f32 %v2207, %v2299
        %2301 = vmatmul.bf16.gmra.mxu0 %v845
        %v2302 = vpop.f32.mrf.mxu0
        %v2303 = vadd.f32 %v2210, %v2302
        %v2304 = vpop.f32.mrf.mxu0
        %v2305 = vadd.f32 %v2212, %v2304
        %2306 = vmatmul.bf16.gmra.mxu0 %v848
        %v2307 = vpop.f32.mrf.mxu0
        %v2308 = vadd.f32 %v2215, %v2307
        %v2309 = vpop.f32.mrf.mxu0
        %v2310 = vadd.f32 %v2217, %v2309
        %2311 = vmatmul.bf16.gmra.mxu0 %v851
        %v2312 = vpop.f32.mrf.mxu0
        %v2313 = vadd.f32 %v2220, %v2312
        %v2314 = vpop.f32.mrf.mxu0
        %v2315 = vadd.f32 %v2222, %v2314
        %2316 = vmatmul.bf16.gmra.mxu0 %v854
        %v2317 = vpop.f32.mrf.mxu0
        %v2318 = vadd.f32 %v2225, %v2317
        %v2319 = vpop.f32.mrf.mxu0
        %v2320 = vadd.f32 %v2227, %v2319
        %2321 = vmatmul.bf16.gmra.mxu0 %v857
        %v2322 = vpop.f32.mrf.mxu0
        %v2323 = vadd.f32 %v2230, %v2322
        %v2324 = vpop.f32.mrf.mxu0
        %v2325 = vadd.f32 %v2232, %v2324
        %2326 = vmatmul.bf16.gmra.mxu0 %v860
        %v2327 = vpop.f32.mrf.mxu0
        %v2328 = vadd.f32 %v2235, %v2327
        %v2329 = vpop.f32.mrf.mxu0
        %v2330 = vadd.f32 %v2237, %v2329
        %2331 = vmatmul.bf16.gmra.mxu0 %v863
        %v2332 = vpop.f32.mrf.mxu0
        %v2333 = vadd.f32 %v2240, %v2332
        %v2334 = vpop.f32.mrf.mxu0
        %v2335 = vadd.f32 %v2242, %v2334
        %2336 = vmatmul.bf16.gmra.mxu0 %v866
        %v2337 = vpop.f32.mrf.mxu0
        %v2338 = vadd.f32 %v2245, %v2337
        %v2339 = vpop.f32.mrf.mxu0
        %v2340 = vadd.f32 %v2247, %v2339
        %2341 = vmatmul.bf16.gmra.mxu0 %v869
        %v2342 = vpop.f32.mrf.mxu0
        %v2343 = vadd.f32 %v2250, %v2342
        %v2344 = vpop.f32.mrf.mxu0
        %v2345 = vadd.f32 %v2252, %v2344
        %2346 = vmatmul.bf16.gmra.mxu0 %v872
        %v2347 = vpop.f32.mrf.mxu0
        %v2348 = vadd.f32 %v2255, %v2347
        %v2349 = vpop.f32.mrf.mxu0
        %v2350 = vadd.f32 %v2257, %v2349
        %2351 = vmatmul.bf16.gmra.mxu0 %v875
        %v2352 = vpop.f32.mrf.mxu0
        %v2353 = vadd.f32 %v2260, %v2352
        %v2354 = vpop.f32.mrf.mxu0
        %v2355 = vadd.f32 %v2262, %v2354
        %2356 = vmatmul.bf16.gmra.mxu0 %v878
        %v2357 = vpop.f32.mrf.mxu0
        %v2358 = vadd.f32 %v2265, %v2357
        %v2359 = vpop.f32.mrf.mxu0
        %v2360 = vadd.f32 %v2267, %v2359
        %2361 = vmatmul.bf16.gmra.mxu0 %v881
        %v2362 = vpop.f32.mrf.mxu0
        %v2363 = vadd.f32 %v2270, %v2362
        %v2364 = vpop.f32.mrf.mxu0
        %v2365 = vadd.f32 %v2272, %v2364
        %2366 = vmatmul.bf16.gmra.mxu0 %v884
        %v2367 = vpop.f32.mrf.mxu0
        %v2368 = vadd.f32 %v2275, %v2367
        %v2369 = vpop.f32.mrf.mxu0
        %2370 = vdwg.mxu0
        %2371 = vmatpush.bf16.msra.mxu0 0
        %2372 = vmatpush.bf16.msra.mxu0 0
        %2373 = vmatpush.bf16.msra.mxu0 0
        %2374 = vmatpush.bf16.msra.mxu0 0
        %2375 = vmatpush.bf16.msra.mxu0 0
        %2376 = vmatpush.bf16.msra.mxu0 0
        %2377 = vmatpush.bf16.msra.mxu0 0
        %2378 = vmatpush.bf16.msra.mxu0 %v1904
        %2379 = vmatmul.bf16.gmra.mxu0 %v1087
        %v2380 = vpop.f32.mrf.mxu0
        %v2381 = vadd.f32 %v2288, %v2380
        %v2382 = vpop.f32.mrf.mxu0
        %v2383 = vadd.f32 %v2290, %v2382
        %2384 = vmatmul.bf16.gmra.mxu0 %v1090
        %v2385 = vpop.f32.mrf.mxu0
        %v2386 = vadd.f32 %v2293, %v2385
        %v2387 = vpop.f32.mrf.mxu0
        %v2388 = vadd.f32 %v2295, %v2387
        %2389 = vmatmul.bf16.gmra.mxu0 %v1093
        %v2390 = vpop.f32.mrf.mxu0
        %v2391 = vadd.f32 %v2298, %v2390
        %v2392 = vpop.f32.mrf.mxu0
        %v2393 = vadd.f32 %v2300, %v2392
        %2394 = vmatmul.bf16.gmra.mxu0 %v1096
        %v2395 = vpop.f32.mrf.mxu0
        %v2396 = vadd.f32 %v2303, %v2395
        %v2397 = vpop.f32.mrf.mxu0
        %v2398 = vadd.f32 %v2305, %v2397
        %2399 = vmatmul.bf16.gmra.mxu0 %v1099
        %v2400 = vpop.f32.mrf.mxu0
        %v2401 = vadd.f32 %v2308, %v2400
        %v2402 = vpop.f32.mrf.mxu0
        %v2403 = vadd.f32 %v2310, %v2402
        %2404 = vmatmul.bf16.gmra.mxu0 %v1102
        %v2405 = vpop.f32.mrf.mxu0
        %v2406 = vadd.f32 %v2313, %v2405
        %v2407 = vpop.f32.mrf.mxu0
        %v2408 = vadd.f32 %v2315, %v2407
        %2409 = vmatmul.bf16.gmra.mxu0 %v1105
        %v2410 = vpop.f32.mrf.mxu0
        %v2411 = vadd.f32 %v2318, %v2410
        %v2412 = vpop.f32.mrf.mxu0
        %v2413 = vadd.f32 %v2320, %v2412
        %2414 = vmatmul.bf16.gmra.mxu0 %v1108
        %v2415 = vpop.f32.mrf.mxu0
        %v2416 = vadd.f32 %v2323, %v2415
        %v2417 = vpop.f32.mrf.mxu0
        %v2418 = vadd.f32 %v2325, %v2417
        %2419 = vmatmul.bf16.gmra.mxu0 %v1111
        %v2420 = vpop.f32.mrf.mxu0
        %v2421 = vadd.f32 %v2328, %v2420
        %v2422 = vpop.f32.mrf.mxu0
        %v2423 = vadd.f32 %v2330, %v2422
        %2424 = vmatmul.bf16.gmra.mxu0 %v1114
        %v2425 = vpop.f32.mrf.mxu0
        %v2426 = vadd.f32 %v2333, %v2425
        %v2427 = vpop.f32.mrf.mxu0
        %v2428 = vadd.f32 %v2335, %v2427
        %2429 = vmatmul.bf16.gmra.mxu0 %v1117
        %v2430 = vpop.f32.mrf.mxu0
        %v2431 = vadd.f32 %v2338, %v2430
        %v2432 = vpop.f32.mrf.mxu0
        %v2433 = vadd.f32 %v2340, %v2432
        %2434 = vmatmul.bf16.gmra.mxu0 %v1120
        %v2435 = vpop.f32.mrf.mxu0
        %v2436 = vadd.f32 %v2343, %v2435
        %v2437 = vpop.f32.mrf.mxu0
        %v2438 = vadd.f32 %v2345, %v2437
        %2439 = vmatmul.bf16.gmra.mxu0 %v1123
        %v2440 = vpop.f32.mrf.mxu0
        %v2441 = vadd.f32 %v2348, %v2440
        %v2442 = vpop.f32.mrf.mxu0
        %v2443 = vadd.f32 %v2350, %v2442
        %2444 = vmatmul.bf16.gmra.mxu0 %v1126
        %v2445 = vpop.f32.mrf.mxu0
        %v2446 = vadd.f32 %v2353, %v2445
        %v2447 = vpop.f32.mrf.mxu0
        %v2448 = vadd.f32 %v2355, %v2447
        %2449 = vmatmul.bf16.gmra.mxu0 %v1129
        %v2450 = vpop.f32.mrf.mxu0
        %v2451 = vadd.f32 %v2358, %v2450
        %v2452 = vpop.f32.mrf.mxu0
        %v2453 = vadd.f32 %v2360, %v2452
        %2454 = vmatmul.bf16.gmra.mxu0 %v1132
        %v2455 = vpop.f32.mrf.mxu0
        %v2456 = vadd.f32 %v2363, %v2455
        %v2457 = vpop.f32.mrf.mxu0
        %v2458 = vadd.f32 %v2365, %v2457
        %2459 = vmatmul.bf16.gmra.mxu0 %v1135
        %v2460 = vpop.f32.mrf.mxu0
        %v2461 = vadd.f32 %v2368, %v2460
        %v2462 = vpop.f32.mrf.mxu0
        %2463 = vdwg.mxu0
        %2464 = vst [vmem:[%s344] sm:$0xff] %v1340
        %vm2465 = vcmask 138240
        %2466 = vst.msk [vmem:[%s344 + $0x8] sm:$0xff] %vm2465, %v1619
        %2467 = vst [vmem:[%s344 + $0x10] sm:$0xff] %v1342
        %2468 = vst.msk [vmem:[%s344 + $0x18] sm:$0xff] %vm2465, %v1621
        %2469 = vst [vmem:[%s344 + $0x20] sm:$0xff] %v1345
        %2470 = vst.msk [vmem:[%s344 + $0x28] sm:$0xff] %vm2465, %v1624
        %2471 = vst [vmem:[%s344 + $0x30] sm:$0xff] %v1347
        %2472 = vst.msk [vmem:[%s344 + $0x38] sm:$0xff] %vm2465, %v1626
        %2473 = vst [vmem:[%s344 + $0x40] sm:$0xff] %v1350
        %2474 = vst.msk [vmem:[%s344 + $0x48] sm:$0xff] %vm2465, %v1629
        %2475 = vst [vmem:[%s344 + $0x50] sm:$0xff] %v1352
        %2476 = vst.msk [vmem:[%s344 + $0x58] sm:$0xff] %vm2465, %v1631
        %2477 = vst [vmem:[%s344 + $0x60] sm:$0xff] %v1355
        %2478 = vst.msk [vmem:[%s344 + $0x68] sm:$0xff] %vm2465, %v1634
        %2479 = vst [vmem:[%s344 + $0x70] sm:$0xff] %v1357
        %2480 = vst.msk [vmem:[%s344 + $0x78] sm:$0xff] %vm2465, %v1636
        %2481 = vst [vmem:[%s344 + $0x80] sm:$0xff] %v1360
        %2482 = vst.msk [vmem:[%s344 + $0x88] sm:$0xff] %vm2465, %v1639
        %2483 = vst [vmem:[%s344 + $0x90] sm:$0xff] %v1362
        %2484 = vst.msk [vmem:[%s344 + $0x98] sm:$0xff] %vm2465, %v1641
        %2485 = vst [vmem:[%s344 + $0xa0] sm:$0xff] %v1365
        %2486 = vst.msk [vmem:[%s344 + $0xa8] sm:$0xff] %vm2465, %v1644
        %2487 = vst [vmem:[%s344 + $0xb0] sm:$0xff] %v1367
        %2488 = vst.msk [vmem:[%s344 + $0xb8] sm:$0xff] %vm2465, %v1646
        %2489 = vst [vmem:[%s344 + $0xc0] sm:$0xff] %v1370
        %2490 = vst.msk [vmem:[%s344 + $0xc8] sm:$0xff] %vm2465, %v1649
        %2491 = vst [vmem:[%s344 + $0xd0] sm:$0xff] %v1372
        %2492 = vst.msk [vmem:[%s344 + $0xd8] sm:$0xff] %vm2465, %v1651
        %2493 = vst [vmem:[%s344 + $0xe0] sm:$0xff] %v1375
        %2494 = vst.msk [vmem:[%s344 + $0xe8] sm:$0xff] %vm2465, %v1654
        %2495 = vst [vmem:[%s344 + $0xf0] sm:$0xff] %v1377
        %2496 = vst.msk [vmem:[%s344 + $0xf8] sm:$0xff] %vm2465, %v1656
        %2497 = vst [vmem:[%s344 + $0x100] sm:$0xff] %v1380
        %2498 = vst.msk [vmem:[%s344 + $0x108] sm:$0xff] %vm2465, %v1659
        %2499 = vst [vmem:[%s344 + $0x110] sm:$0xff] %v1382
        %2500 = vst.msk [vmem:[%s344 + $0x118] sm:$0xff] %vm2465, %v1661
        %2501 = vst [vmem:[%s344 + $0x120] sm:$0xff] %v1385
        %2502 = vst.msk [vmem:[%s344 + $0x128] sm:$0xff] %vm2465, %v1664
        %2503 = vst [vmem:[%s344 + $0x130] sm:$0xff] %v1387
        %2504 = vst.msk [vmem:[%s344 + $0x138] sm:$0xff] %vm2465, %v1666
        %2505 = vst [vmem:[%s344 + $0x140] sm:$0xff] %v1390
        %2506 = vst.msk [vmem:[%s344 + $0x148] sm:$0xff] %vm2465, %v1669
        %2507 = vst [vmem:[%s344 + $0x150] sm:$0xff] %v1392
        %2508 = vst.msk [vmem:[%s344 + $0x158] sm:$0xff] %vm2465, %v1671
        %2509 = vst [vmem:[%s344 + $0x160] sm:$0xff] %v1395
        %2510 = vst.msk [vmem:[%s344 + $0x168] sm:$0xff] %vm2465, %v1674
        %2511 = vst [vmem:[%s344 + $0x170] sm:$0xff] %v1397
        %2512 = vst.msk [vmem:[%s344 + $0x178] sm:$0xff] %vm2465, %v1676
        %2513 = vst [vmem:[%s344 + $0x180] sm:$0xff] %v1400
        %2514 = vst.msk [vmem:[%s344 + $0x188] sm:$0xff] %vm2465, %v1679
        %2515 = vst [vmem:[%s344 + $0x190] sm:$0xff] %v1402
        %2516 = vst.msk [vmem:[%s344 + $0x198] sm:$0xff] %vm2465, %v1681
        %2517 = vst [vmem:[%s344 + $0x1a0] sm:$0xff] %v1405
        %2518 = vst.msk [vmem:[%s344 + $0x1a8] sm:$0xff] %vm2465, %v1684
        %2519 = vst [vmem:[%s344 + $0x1b0] sm:$0xff] %v1407
        %2520 = vst.msk [vmem:[%s344 + $0x1b8] sm:$0xff] %vm2465, %v1686
        %2521 = vst [vmem:[%s344 + $0x1c0] sm:$0xff] %v1410
        %2522 = vst.msk [vmem:[%s344 + $0x1c8] sm:$0xff] %vm2465, %v1689
        %2523 = vst [vmem:[%s344 + $0x1d0] sm:$0xff] %v1412
        %2524 = vst.msk [vmem:[%s344 + $0x1d8] sm:$0xff] %vm2465, %v1691
        %2525 = vst [vmem:[%s344 + $0x1e0] sm:$0xff] %v1415
        %2526 = vst.msk [vmem:[%s344 + $0x1e8] sm:$0xff] %vm2465, %v1694
        %2527 = vst [vmem:[%s344 + $0x1f0] sm:$0xff] %v1417
        %2528 = vst.msk [vmem:[%s344 + $0x1f8] sm:$0xff] %vm2465, %v1696
        %2529 = vst [vmem:[%s344 + $0x200] sm:$0xff] %v1420
        %2530 = vst.msk [vmem:[%s344 + $0x208] sm:$0xff] %vm2465, %v1699
        %s2531 = scalar_lea.vmem %s344, 528 [#allocation2]
        %2532 = vst [vmem:[%s2531] sm:$0xff] %v2102
        %2533 = vst.msk [vmem:[%s2531 + $0x8] sm:$0xff] %vm2465, %v2381
        %2534 = vst [vmem:[%s2531 + $0x10] sm:$0xff] %v2104
        %2535 = vst.msk [vmem:[%s2531 + $0x18] sm:$0xff] %vm2465, %v2383
        %2536 = vst [vmem:[%s2531 + $0x20] sm:$0xff] %v2107
        %2537 = vst.msk [vmem:[%s2531 + $0x28] sm:$0xff] %vm2465, %v2386
        %2538 = vst [vmem:[%s2531 + $0x30] sm:$0xff] %v2109
        %2539 = vst.msk [vmem:[%s2531 + $0x38] sm:$0xff] %vm2465, %v2388
        %2540 = vst [vmem:[%s2531 + $0x40] sm:$0xff] %v2112
        %2541 = vst.msk [vmem:[%s2531 + $0x48] sm:$0xff] %vm2465, %v2391
        %2542 = vst [vmem:[%s2531 + $0x50] sm:$0xff] %v2114
        %2543 = vst.msk [vmem:[%s2531 + $0x58] sm:$0xff] %vm2465, %v2393
        %2544 = vst [vmem:[%s2531 + $0x60] sm:$0xff] %v2117
        %2545 = vst.msk [vmem:[%s2531 + $0x68] sm:$0xff] %vm2465, %v2396
        %2546 = vst [vmem:[%s2531 + $0x70] sm:$0xff] %v2119
        %2547 = vst.msk [vmem:[%s2531 + $0x78] sm:$0xff] %vm2465, %v2398
        %2548 = vst [vmem:[%s2531 + $0x80] sm:$0xff] %v2122
        %2549 = vst.msk [vmem:[%s2531 + $0x88] sm:$0xff] %vm2465, %v2401
        %2550 = vst [vmem:[%s2531 + $0x90] sm:$0xff] %v2124
        %2551 = vst.msk [vmem:[%s2531 + $0x98] sm:$0xff] %vm2465, %v2403
        %2552 = vst [vmem:[%s2531 + $0xa0] sm:$0xff] %v2127
        %2553 = vst.msk [vmem:[%s2531 + $0xa8] sm:$0xff] %vm2465, %v2406
        %2554 = vst [vmem:[%s2531 + $0xb0] sm:$0xff] %v2129
        %2555 = vst.msk [vmem:[%s2531 + $0xb8] sm:$0xff] %vm2465, %v2408
        %2556 = vst [vmem:[%s2531 + $0xc0] sm:$0xff] %v2132
        %2557 = vst.msk [vmem:[%s2531 + $0xc8] sm:$0xff] %vm2465, %v2411
        %2558 = vst [vmem:[%s2531 + $0xd0] sm:$0xff] %v2134
        %2559 = vst.msk [vmem:[%s2531 + $0xd8] sm:$0xff] %vm2465, %v2413
        %2560 = vst [vmem:[%s2531 + $0xe0] sm:$0xff] %v2137
        %2561 = vst.msk [vmem:[%s2531 + $0xe8] sm:$0xff] %vm2465, %v2416
        %2562 = vst [vmem:[%s2531 + $0xf0] sm:$0xff] %v2139
        %2563 = vst.msk [vmem:[%s2531 + $0xf8] sm:$0xff] %vm2465, %v2418
        %2564 = vst [vmem:[%s2531 + $0x100] sm:$0xff] %v2142
        %2565 = vst.msk [vmem:[%s2531 + $0x108] sm:$0xff] %vm2465, %v2421
        %2566 = vst [vmem:[%s2531 + $0x110] sm:$0xff] %v2144
        %2567 = vst.msk [vmem:[%s2531 + $0x118] sm:$0xff] %vm2465, %v2423
        %2568 = vst [vmem:[%s2531 + $0x120] sm:$0xff] %v2147
        %2569 = vst.msk [vmem:[%s2531 + $0x128] sm:$0xff] %vm2465, %v2426
        %2570 = vst [vmem:[%s2531 + $0x130] sm:$0xff] %v2149
        %2571 = vst.msk [vmem:[%s2531 + $0x138] sm:$0xff] %vm2465, %v2428
        %2572 = vst [vmem:[%s2531 + $0x140] sm:$0xff] %v2152
        %2573 = vst.msk [vmem:[%s2531 + $0x148] sm:$0xff] %vm2465, %v2431
        %2574 = vst [vmem:[%s2531 + $0x150] sm:$0xff] %v2154
        %2575 = vst.msk [vmem:[%s2531 + $0x158] sm:$0xff] %vm2465, %v2433
        %2576 = vst [vmem:[%s2531 + $0x160] sm:$0xff] %v2157
        %2577 = vst.msk [vmem:[%s2531 + $0x168] sm:$0xff] %vm2465, %v2436
        %2578 = vst [vmem:[%s2531 + $0x170] sm:$0xff] %v2159
        %2579 = vst.msk [vmem:[%s2531 + $0x178] sm:$0xff] %vm2465, %v2438
        %2580 = vst [vmem:[%s2531 + $0x180] sm:$0xff] %v2162
        %2581 = vst.msk [vmem:[%s2531 + $0x188] sm:$0xff] %vm2465, %v2441
        %2582 = vst [vmem:[%s2531 + $0x190] sm:$0xff] %v2164
        %2583 = vst.msk [vmem:[%s2531 + $0x198] sm:$0xff] %vm2465, %v2443
        %2584 = vst [vmem:[%s2531 + $0x1a0] sm:$0xff] %v2167
        %2585 = vst.msk [vmem:[%s2531 + $0x1a8] sm:$0xff] %vm2465, %v2446
        %2586 = vst [vmem:[%s2531 + $0x1b0] sm:$0xff] %v2169
        %2587 = vst.msk [vmem:[%s2531 + $0x1b8] sm:$0xff] %vm2465, %v2448
        %2588 = vst [vmem:[%s2531 + $0x1c0] sm:$0xff] %v2172
        %2589 = vst.msk [vmem:[%s2531 + $0x1c8] sm:$0xff] %vm2465, %v2451
        %2590 = vst [vmem:[%s2531 + $0x1d0] sm:$0xff] %v2174
        %2591 = vst.msk [vmem:[%s2531 + $0x1d8] sm:$0xff] %vm2465, %v2453
        %2592 = vst [vmem:[%s2531 + $0x1e0] sm:$0xff] %v2177
        %2593 = vst.msk [vmem:[%s2531 + $0x1e8] sm:$0xff] %vm2465, %v2456
        %2594 = vst [vmem:[%s2531 + $0x1f0] sm:$0xff] %v2179
        %2595 = vst.msk [vmem:[%s2531 + $0x1f8] sm:$0xff] %vm2465, %v2458
        %2596 = vst [vmem:[%s2531 + $0x200] sm:$0xff] %v2182
        %2597 = vst.msk [vmem:[%s2531 + $0x208] sm:$0xff] %vm2465, %v2461
        %v2598 = vld [vmem:[%s4] sm:$0xff]
        %v2599 = vld [vmem:[%s4 + $0x8] sm:$0xff]
        %v2600 = vld [vmem:[%s4 + $0x10] sm:$0xff]
        %v2601 = vld [vmem:[%s4 + $0x18] sm:$0xff]
        %v2602 = vld [vmem:[%s4 + $0x20] sm:$0xff]
        %v2603 = vld [vmem:[%s4 + $0x28] sm:$0xff]
        %v2604 = vld [vmem:[%s4 + $0x30] sm:$0x3]
        %v2605 = vld [vmem:[%s4 + $0x38] sm:$0x3]
        %v2606 = vld [vmem:[%s4 + $0x40] sm:$0x3]
        %v2608 = vsel %vm1085, %v2600, 0
        %v2611 = vsel %vm1085, %v2603, 0
        %v2614 = vsel %vm1085, %v2606, 0
        %2616 = vmatpush.msra.mxu0 %v2139
        %2617 = vmatpush.msra.mxu0 %v2137
        %2618 = vmatpush.msra.mxu0 %v2134
        %2619 = vmatpush.msra.mxu0 %v2132
        %2620 = vmatpush.msra.mxu0 %v2129
        %2621 = vmatpush.msra.mxu0 %v2127
        %2622 = vmatpush.msra.mxu0 %v2124
        %2623 = vmatpush.msra.mxu0 %v2122
        %2624 = vmatpush.msra.mxu0 %v2119
        %2625 = vmatpush.msra.mxu0 %v2117
        %2626 = vmatpush.msra.mxu0 %v2114
        %2627 = vmatpush.msra.mxu0 %v2112
        %2628 = vmatpush.msra.mxu0 %v2109
        %2629 = vmatpush.msra.mxu0 %v2107
        %2630 = vmatpush.msra.mxu0 %v2104
        %2631 = vmatpush.msra.mxu0 %v2102
        %2632 = vmatmul.f32.gmra.mxu0 %v2598
        %v2633 = vpop.f32.mrf.mxu0
        %v2634 = vadd.f32 0.0, %v2633
        %2635 = vmatmul.f32.gmra.mxu0 %v2601
        %v2636 = vpop.f32.mrf.mxu0
        %v2637 = vadd.f32 0.0, %v2636
        %2638 = vmatmul.f32.gmra.mxu0 %v2604
        %v2639 = vpop.f32.mrf.mxu0
        %v2640 = vadd.f32 0.0, %v2639
        %2641 = vdwg.mxu0
        %2642 = vmatpush.msra.mxu0 %v2179
        %2643 = vmatpush.msra.mxu0 %v2177
        %2644 = vmatpush.msra.mxu0 %v2174
        %2645 = vmatpush.msra.mxu0 %v2172
        %2646 = vmatpush.msra.mxu0 %v2169
        %2647 = vmatpush.msra.mxu0 %v2167
        %2648 = vmatpush.msra.mxu0 %v2164
        %2649 = vmatpush.msra.mxu0 %v2162
        %2650 = vmatpush.msra.mxu0 %v2159
        %2651 = vmatpush.msra.mxu0 %v2157
        %2652 = vmatpush.msra.mxu0 %v2154
        %2653 = vmatpush.msra.mxu0 %v2152
        %2654 = vmatpush.msra.mxu0 %v2149
        %2655 = vmatpush.msra.mxu0 %v2147
        %2656 = vmatpush.msra.mxu0 %v2144
        %2657 = vmatpush.msra.mxu0 %v2142
        %2658 = vmatmul.f32.gmra.mxu0 %v2599
        %v2659 = vpop.f32.mrf.mxu0
        %v2660 = vadd.f32 %v2634, %v2659
        %2661 = vmatmul.f32.gmra.mxu0 %v2602
        %v2662 = vpop.f32.mrf.mxu0
        %v2663 = vadd.f32 %v2637, %v2662
        %2664 = vmatmul.f32.gmra.mxu0 %v2605
        %v2665 = vpop.f32.mrf.mxu0
        %v2666 = vadd.f32 %v2640, %v2665
        %2667 = vdwg.mxu0
        %2668 = vmatpush.msra.mxu0 0.0
        %2669 = vmatpush.msra.mxu0 0.0
        %2670 = vmatpush.msra.mxu0 0.0
        %2671 = vmatpush.msra.mxu0 0.0
        %2672 = vmatpush.msra.mxu0 0.0
        %2673 = vmatpush.msra.mxu0 0.0
        %2674 = vmatpush.msra.mxu0 0.0
        %2675 = vmatpush.msra.mxu0 0.0
        %2676 = vmatpush.msra.mxu0 0.0
        %2677 = vmatpush.msra.mxu0 0.0
        %2678 = vmatpush.msra.mxu0 0.0
        %2679 = vmatpush.msra.mxu0 0.0
        %2680 = vmatpush.msra.mxu0 0.0
        %2681 = vmatpush.msra.mxu0 0.0
        %2682 = vmatpush.msra.mxu0 0.0
        %2683 = vmatpush.msra.mxu0 %v2182
        %2684 = vmatmul.f32.gmra.mxu0 %v2608
        %v2685 = vpop.f32.mrf.mxu0
        %v2686 = vadd.f32 %v2660, %v2685
        %2687 = vmatmul.f32.gmra.mxu0 %v2611
        %v2688 = vpop.f32.mrf.mxu0
        %v2689 = vadd.f32 %v2663, %v2688
        %2690 = vmatmul.f32.gmra.mxu0 %v2614
        %v2691 = vpop.f32.mrf.mxu0
        %v2692 = vadd.f32 %v2666, %v2691
        %2693 = vdwg.mxu0
        %2694 = vmatpush.msra.mxu0 %v2418
        %2695 = vmatpush.msra.mxu0 %v2416
        %2696 = vmatpush.msra.mxu0 %v2413
        %2697 = vmatpush.msra.mxu0 %v2411
        %2698 = vmatpush.msra.mxu0 %v2408
        %2699 = vmatpush.msra.mxu0 %v2406
        %2700 = vmatpush.msra.mxu0 %v2403
        %2701 = vmatpush.msra.mxu0 %v2401
        %2702 = vmatpush.msra.mxu0 %v2398
        %2703 = vmatpush.msra.mxu0 %v2396
        %2704 = vmatpush.msra.mxu0 %v2393
        %2705 = vmatpush.msra.mxu0 %v2391
        %2706 = vmatpush.msra.mxu0 %v2388
        %2707 = vmatpush.msra.mxu0 %v2386
        %2708 = vmatpush.msra.mxu0 %v2383
        %2709 = vmatpush.msra.mxu0 %v2381
        %2710 = vmatmul.f32.gmra.mxu0 %v2598
        %v2711 = vpop.f32.mrf.mxu0
        %v2712 = vadd.f32 0.0, %v2711
        %2713 = vmatmul.f32.gmra.mxu0 %v2601
        %v2714 = vpop.f32.mrf.mxu0
        %v2715 = vadd.f32 0.0, %v2714
        %2716 = vmatmul.f32.gmra.mxu0 %v2604
        %v2717 = vpop.f32.mrf.mxu0
        %v2718 = vadd.f32 0.0, %v2717
        %2719 = vdwg.mxu0
        %2720 = vmatpush.msra.mxu0 %v2458
        %2721 = vmatpush.msra.mxu0 %v2456
        %2722 = vmatpush.msra.mxu0 %v2453
        %2723 = vmatpush.msra.mxu0 %v2451
        %2724 = vmatpush.msra.mxu0 %v2448
        %2725 = vmatpush.msra.mxu0 %v2446
        %2726 = vmatpush.msra.mxu0 %v2443
        %2727 = vmatpush.msra.mxu0 %v2441
        %2728 = vmatpush.msra.mxu0 %v2438
        %2729 = vmatpush.msra.mxu0 %v2436
        %2730 = vmatpush.msra.mxu0 %v2433
        %2731 = vmatpush.msra.mxu0 %v2431
        %2732 = vmatpush.msra.mxu0 %v2428
        %2733 = vmatpush.msra.mxu0 %v2426
        %2734 = vmatpush.msra.mxu0 %v2423
        %2735 = vmatpush.msra.mxu0 %v2421
        %2736 = vmatmul.f32.gmra.mxu0 %v2599
        %v2737 = vpop.f32.mrf.mxu0
        %v2738 = vadd.f32 %v2712, %v2737
        %2739 = vmatmul.f32.gmra.mxu0 %v2602
        %v2740 = vpop.f32.mrf.mxu0
        %v2741 = vadd.f32 %v2715, %v2740
        %2742 = vmatmul.f32.gmra.mxu0 %v2605
        %v2743 = vpop.f32.mrf.mxu0
        %v2744 = vadd.f32 %v2718, %v2743
        %2745 = vdwg.mxu0
        %2746 = vmatpush.msra.mxu0 0.0
        %2747 = vmatpush.msra.mxu0 0.0
        %2748 = vmatpush.msra.mxu0 0.0
        %2749 = vmatpush.msra.mxu0 0.0
        %2750 = vmatpush.msra.mxu0 0.0
        %2751 = vmatpush.msra.mxu0 0.0
        %2752 = vmatpush.msra.mxu0 0.0
        %2753 = vmatpush.msra.mxu0 0.0
        %2754 = vmatpush.msra.mxu0 0.0
        %2755 = vmatpush.msra.mxu0 0.0
        %2756 = vmatpush.msra.mxu0 0.0
        %2757 = vmatpush.msra.mxu0 0.0
        %2758 = vmatpush.msra.mxu0 0.0
        %2759 = vmatpush.msra.mxu0 0.0
        %2760 = vmatpush.msra.mxu0 0.0
        %2761 = vmatpush.msra.mxu0 %v2461
        %2762 = vmatmul.f32.gmra.mxu0 %v2608
        %v2763 = vpop.f32.mrf.mxu0
        %v2764 = vadd.f32 %v2738, %v2763
        %2765 = vmatmul.f32.gmra.mxu0 %v2611
        %v2766 = vpop.f32.mrf.mxu0
        %v2767 = vadd.f32 %v2741, %v2766
        %2768 = vmatmul.f32.gmra.mxu0 %v2614
        %v2769 = vpop.f32.mrf.mxu0
        %v2770 = vadd.f32 %v2744, %v2769
        %2771 = vdwg.mxu0
        %2774 = vrot.lane.b32.xlu0 %v2686, 13
        %v2775 = vpop.permute.xlu0 %2774
        %2776 = vrot.lane.b32.xlu0 %v2764, 13
        %v2777 = vpop.permute.xlu0 %2776
        %vm2778 = vcmask 105472
        %v2779 = vsel %vm2778, %v2775, %v2777
        %v2782 = vsel %vm2778, 0.0, %v2775
        %v2783 = vld [vmem:[%s6] ss:$8 sm:$0x3]
        %v2785 = vperm.slane %v2783, 0
        %v2786 = vperm.slane %v2783, 1
        %v2789 = vmul.f32 %v2785, %v2782
        %v2790 = vmul.f32 %v2786, %v2779
        %v2791 = vadd.f32 %v2789, 0.0
        %v2792 = vadd.f32 %v2790, 0.0
        %v2793 = vrot.slane %v2686, 2
        %v2794 = vrot.slane %v2764, 2
        %2795 = vrot.lane.b32.xlu0 %v2793, 12
        %v2796 = vpop.permute.xlu0 %2795
        %2797 = vrot.lane.b32.xlu0 %v2794, 12
        %v2798 = vpop.permute.xlu0 %2797
        %vm2799 = vcmask 97280
        %v2800 = vsel %vm2799, %v2796, %v2798
        %v2803 = vsel %vm2799, 0.0, %v2796
        %s2804 = scalar_lea.vmem %s6, 1
        %v2805 = vld [vmem:[%s2804] ss:$8 sm:$0x3]
        %v2807 = vperm.slane %v2805, 0
        %v2808 = vperm.slane %v2805, 1
        %v2811 = vmul.f32 %v2807, %v2803
        %v2812 = vmul.f32 %v2808, %v2800
        %v2813 = vadd.f32 %v2791, %v2811
        %v2814 = vadd.f32 %v2792, %v2812
        %v2815 = vrot.slane %v2686, 4
        %v2816 = vrot.slane %v2764, 4
        %2817 = vrot.lane.b32.xlu0 %v2815, 11
        %v2818 = vpop.permute.xlu0 %2817
        %2819 = vrot.lane.b32.xlu0 %v2816, 11
        %v2820 = vpop.permute.xlu0 %2819
        %vm2821 = vcmask 89088
        %v2822 = vsel %vm2821, %v2818, %v2820
        %v2825 = vsel %vm2821, 0.0, %v2818
        %s2826 = scalar_lea.vmem %s6, 2
        %v2827 = vld [vmem:[%s2826] ss:$8 sm:$0x3]
        %v2829 = vperm.slane %v2827, 0
        %v2830 = vperm.slane %v2827, 1
        %v2833 = vmul.f32 %v2829, %v2825
        %v2834 = vmul.f32 %v2830, %v2822
        %v2835 = vadd.f32 %v2813, %v2833
        %v2836 = vadd.f32 %v2814, %v2834
        %v2837 = vrot.slane %v2686, 6
        %v2838 = vrot.slane %v2764, 6
        %2839 = vrot.lane.b32.xlu0 %v2837, 1
        %v2840 = vpop.permute.xlu0 %2839
        %2841 = vrot.lane.b32.xlu0 %v2838, 1
        %v2842 = vpop.permute.xlu0 %2841
        %vm2843 = vcmask 7168
        %v2844 = vsel %vm2843, %v2840, %v2842
        %v2847 = vsel %vm2843, 0.0, %v2840
        %s2848 = scalar_lea.vmem %s6, 3
        %v2849 = vld [vmem:[%s2848] ss:$8 sm:$0x3]
        %v2851 = vperm.slane %v2849, 0
        %v2852 = vperm.slane %v2849, 1
        %v2855 = vmul.f32 %v2851, %v2847
        %v2856 = vmul.f32 %v2852, %v2844
        %v2857 = vadd.f32 %v2835, %v2855
        %v2858 = vadd.f32 %v2836, %v2856
        %s2859 = scalar_lea.vmem %s6, 4
        %v2860 = vld [vmem:[%s2859] ss:$8 sm:$0x3]
        %v2862 = vperm.slane %v2860, 0
        %v2863 = vperm.slane %v2860, 1
        %v2866 = vmul.f32 %v2862, %v2689
        %v2867 = vmul.f32 %v2863, %v2767
        %v2868 = vadd.f32 %v2857, %v2866
        %v2869 = vadd.f32 %v2858, %v2867
        %2872 = vrot.lane.b32.xlu0 %v2689, 127
        %v2873 = vpop.permute.xlu0 %2872
        %2874 = vrot.lane.b32.xlu0 %v2767, 127
        %v2875 = vpop.permute.xlu0 %2874
        %vm2876 = vcmask 1039360
        %v2877 = vsel %vm2876, %v2873, %v2875
        %vm2880 = vcmask 121856
        %v2881 = vsel %vm2880, %v2875, 0.0
        %s2882 = scalar_lea.vmem %s6, 5
        %v2883 = vld [vmem:[%s2882] ss:$8 sm:$0x3]
        %v2885 = vperm.slane %v2883, 0
        %v2886 = vperm.slane %v2883, 1
        %v2889 = vmul.f32 %v2885, %v2877
        %v2890 = vmul.f32 %v2886, %v2881
        %v2893 = vrot.slane %v2889, 2
        %v2894 = vrot.slane %v2890, 2
        %v2897 = vadd.f32 %v2868, %v2893
        %v2898 = vadd.f32 %v2869, %v2894
        %2899 = vrot.lane.b32.xlu0 %v2689, 117
        %v2900 = vpop.permute.xlu0 %2899
        %2901 = vrot.lane.b32.xlu0 %v2767, 117
        %v2902 = vpop.permute.xlu0 %2901
        %vm2903 = vcmask 957440
        %v2904 = vsel %vm2903, %v2900, %v2902
        %vm2907 = vcmask 39936
        %v2908 = vsel %vm2907, %v2902, 0.0
        %s2909 = scalar_lea.vmem %s6, 6
        %v2910 = vld [vmem:[%s2909] ss:$8 sm:$0x3]
        %v2912 = vperm.slane %v2910, 0
        %v2913 = vperm.slane %v2910, 1
        %v2916 = vmul.f32 %v2912, %v2904
        %v2917 = vmul.f32 %v2913, %v2908
        %v2920 = vrot.slane %v2916, 4
        %v2921 = vrot.slane %v2917, 4
        %v2924 = vadd.f32 %v2897, %v2920
        %v2925 = vadd.f32 %v2898, %v2921
        %2926 = vrot.lane.b32.xlu0 %v2689, 116
        %v2927 = vpop.permute.xlu0 %2926
        %2928 = vrot.lane.b32.xlu0 %v2767, 116
        %v2929 = vpop.permute.xlu0 %2928
        %vm2930 = vcmask 949248
        %v2931 = vsel %vm2930, %v2927, %v2929
        %vm2934 = vcmask 31744
        %v2935 = vsel %vm2934, %v2929, 0.0
        %s2936 = scalar_lea.vmem %s6, 7
        %v2937 = vld [vmem:[%s2936] ss:$8 sm:$0x3]
        %v2939 = vperm.slane %v2937, 0
        %v2940 = vperm.slane %v2937, 1
        %v2943 = vmul.f32 %v2939, %v2931
        %v2944 = vmul.f32 %v2940, %v2935
        %v2947 = vrot.slane %v2943, 6
        %v2948 = vrot.slane %v2944, 6
        %v2951 = vadd.f32 %v2924, %v2947
        %v2952 = vadd.f32 %v2925, %v2948
        %2955 = vrot.lane.b32.xlu0 %v2692, 115
        %v2956 = vpop.permute.xlu0 %2955
        %2957 = vrot.lane.b32.xlu0 %v2770, 115
        %v2958 = vpop.permute.xlu0 %2957
        %vm2959 = vcmask 941056
        %v2960 = vsel %vm2959, %v2956, %v2958
        %vm2963 = vcmask 23552
        %v2964 = vsel %vm2963, %v2958, 0.0
        %s2965 = scalar_lea.vmem %s6, 16
        %v2966 = vld [vmem:[%s2965] ss:$8 sm:$0x3]
        %v2968 = vperm.slane %v2966, 0
        %v2969 = vperm.slane %v2966, 1
        %v2972 = vmul.f32 %v2968, %v2960
        %v2973 = vmul.f32 %v2969, %v2964
        %v2974 = vadd.f32 %v2951, %v2972
        %v2975 = vadd.f32 %v2952, %v2973
        %v2976 = vld [vmem:[%s5] sm:$0x3]
        %2978 = vset.pattern.permute.xlu0 0
        %2979 = vperm.xlu0 %2978, %v2976
        %v2980 = vpop.permute.xlu0 %2979
        %v2982 = vadd.f32 %v2974, %v2980
        %v2983 = vadd.f32 %v2975, %v2980
        %v2984 = vxor.u32 %v2982, 2147483648
        %v2985 = vxor.u32 %v2983, 2147483648
        %v2986 = vmul.f32 %v2984, 1.442695
        %v2987 = vpow.pop %v2986
        %v2988 = vmul.f32 %v2985, 1.442695
        %v2989 = vpow.pop %v2988
        %v2990 = vadd.f32 %v2987, 1.0
        %v2991 = vadd.f32 %v2989, 1.0
        %v2992 = vrcp.pop %v2990
        %v2993 = vmul.f32 %v2990, %v2992
        %v2994 = vsub.f32 1.0, %v2993
        %v2995 = vmul.f32 %v2992, %v2994
        %v2996 = vadd.f32 %v2992, %v2995
        %vm2997 = vweird.f32 %v2990
        %vm2998 = vweird.f32 %v2992
        %vm2999 = vmor %vm2997, %vm2998
        %v3000 = vsel %vm2999, %v2992, %v2996
        %v3001 = vand.u32 2147483647, %v2990
        %vm3002 = vcmp.eq.f32.partialorder %v3001, 8.507059e+37
        %v3003 = vand.u32 %v2990, 2147483648
        %v3004 = vor.u32 1.1754944e-38, %v3003
        %v3005 = vsel %vm3002, %v3004, %v3000
        %v3006 = vmul.f32 1.0, %v3005
        %v3007 = vrcp.pop %v2991
        %v3008 = vmul.f32 %v2991, %v3007
        %v3009 = vsub.f32 1.0, %v3008
        %v3010 = vmul.f32 %v3007, %v3009
        %v3011 = vadd.f32 %v3007, %v3010
        %vm3012 = vweird.f32 %v2991
        %vm3013 = vweird.f32 %v3007
        %vm3014 = vmor %vm3012, %vm3013
        %v3015 = vsel %vm3014, %v3007, %v3011
        %v3016 = vand.u32 2147483647, %v2991
        %vm3017 = vcmp.eq.f32.partialorder %v3016, 8.507059e+37
        %v3018 = vand.u32 %v2991, 2147483648
        %v3019 = vor.u32 1.1754944e-38, %v3018
        %v3020 = vsel %vm3017, %v3019, %v3015
        %v3021 = vmul.f32 1.0, %v3020
        %v3022 = vmul.f32 %v3006, 5.5451775
        %v3023 = vmul.f32 %v3021, 5.5451775
        %v3024 = vsub.f32 %v3022, 2.7725887
        %v3025 = vsub.f32 %v3023, 2.7725887
        %v3026 = vmul.f32 %v3024, 1.442695
        %v3027 = vpow.pop %v3026
        %v3028 = vmul.f32 %v3025, 1.442695
        %v3029 = vpow.pop %v3028
        %v3032 = vrot.slane %v3027, 1
        %v3033 = vrot.slane %v3029, 1
        %v3036 = vmul.f32 %v3027, %v3032
        %v3037 = vmul.f32 %v3029, %v3033
        %v3040 = vrot.slane %v3036, 6
        %v3041 = vrot.slane %v3037, 6
        %vm3044 = vcmask 1041408
        %v3045 = vsel %vm3044, %v3027, %v3040
        %v3046 = vsel %vm3044, %v3029, %v3041
        %v3049 = vrot.slane %v3046, 4
        %v3050 = vsel %vm1137, %v3045, %v3049
        %vm3052 = vcmask 1042432
        %vm3053 = vcmask 129028
        %vm3054 = vmor %vm3053, %vm3052
        %3055 = vst.msk [vmem:[%s371] sm:$0x77] %vm3054, %v3050
        %3056 = vxpose.xlu0.b32.start [1/16] %v1340, 128
        %3057 = vxpose.xlu0.b32.cont [2/16] %v1342, 128
        %3058 = vxpose.xlu0.b32.cont [3/16] %v1345, 128
        %3059 = vxpose.xlu0.b32.cont [4/16] %v1347, 128
        %3060 = vxpose.xlu0.b32.cont [5/16] %v1350, 128
        %3061 = vxpose.xlu0.b32.cont [6/16] %v1352, 128
        %3062 = vxpose.xlu0.b32.cont [7/16] %v1355, 128
        %3063 = vxpose.xlu0.b32.cont [8/16] %v1357, 128
        %3064 = vxpose.xlu0.b32.cont [9/16] %v1360, 128
        %3065 = vxpose.xlu0.b32.cont [10/16] %v1362, 128
        %3066 = vxpose.xlu0.b32.cont [11/16] %v1365, 128
        %3067 = vxpose.xlu0.b32.cont [12/16] %v1367, 128
        %3068 = vxpose.xlu0.b32.cont [13/16] %v1370, 128
        %3069 = vxpose.xlu0.b32.cont [14/16] %v1372, 128
        %3070 = vxpose.xlu0.b32.cont [15/16] %v1375, 128
        %3071 = vxpose.xlu0.b32.end [16/16] %v1377, 128
        %v3072 = vpop.trf.xlu0
        %v3073 = vpop.trf.xlu0
        %v3074 = vpop.trf.xlu0
        %v3075 = vpop.trf.xlu0
        %v3076 = vpop.trf.xlu0
        %v3077 = vpop.trf.xlu0
        %v3078 = vpop.trf.xlu0
        %v3079 = vpop.trf.xlu0
        %v3080 = vpop.trf.xlu0
        %v3081 = vpop.trf.xlu0
        %v3082 = vpop.trf.xlu0
        %v3083 = vpop.trf.xlu0
        %v3084 = vpop.trf.xlu0
        %v3085 = vpop.trf.xlu0
        %v3086 = vpop.trf.xlu0
        %v3087 = vpop.trf.xlu0
        %3088 = vxpose.xlu0.b32.start [1/16] %v1619, 128
        %3089 = vxpose.xlu0.b32.cont [2/16] %v1621, 128
        %3090 = vxpose.xlu0.b32.cont [3/16] %v1624, 128
        %3091 = vxpose.xlu0.b32.cont [4/16] %v1626, 128
        %3092 = vxpose.xlu0.b32.cont [5/16] %v1629, 128
        %3093 = vxpose.xlu0.b32.cont [6/16] %v1631, 128
        %3094 = vxpose.xlu0.b32.cont [7/16] %v1634, 128
        %3095 = vxpose.xlu0.b32.cont [8/16] %v1636, 128
        %3096 = vxpose.xlu0.b32.cont [9/16] %v1639, 128
        %3097 = vxpose.xlu0.b32.cont [10/16] %v1641, 128
        %3098 = vxpose.xlu0.b32.cont [11/16] %v1644, 128
        %3099 = vxpose.xlu0.b32.cont [12/16] %v1646, 128
        %3100 = vxpose.xlu0.b32.cont [13/16] %v1649, 128
        %3101 = vxpose.xlu0.b32.cont [14/16] %v1651, 128
        %3102 = vxpose.xlu0.b32.cont [15/16] %v1654, 128
        %3103 = vxpose.xlu0.b32.end [16/16] %v1656, 128
        %v3104 = vpop.trf.xlu0
        %v3105 = vpop.trf.xlu0
        %v3106 = vpop.trf.xlu0
        %v3107 = vpop.trf.xlu0
        %v3108 = vpop.trf.xlu0
        %v3109 = vpop.trf.xlu0
        %v3110 = vpop.trf.xlu0
        %v3111 = vpop.trf.xlu0
        %v3112 = vpop.trf.xlu0
        %v3113 = vpop.trf.xlu0
        %v3114 = vpop.trf.xlu0
        %v3115 = vpop.trf.xlu0
        %v3116 = vpop.trf.xlu0
        %v3117 = vpop.trf.xlu0
        %v3118 = vpop.trf.xlu0
        %v3119 = vpop.trf.xlu0
        %3120 = vxpose.xlu0.b32.start [1/16] %v1380, 128
        %3121 = vxpose.xlu0.b32.cont [2/16] %v1382, 128
        %3122 = vxpose.xlu0.b32.cont [3/16] %v1385, 128
        %3123 = vxpose.xlu0.b32.cont [4/16] %v1387, 128
        %3124 = vxpose.xlu0.b32.cont [5/16] %v1390, 128
        %3125 = vxpose.xlu0.b32.cont [6/16] %v1392, 128
        %3126 = vxpose.xlu0.b32.cont [7/16] %v1395, 128
        %3127 = vxpose.xlu0.b32.cont [8/16] %v1397, 128
        %3128 = vxpose.xlu0.b32.cont [9/16] %v1400, 128
        %3129 = vxpose.xlu0.b32.cont [10/16] %v1402, 128
        %3130 = vxpose.xlu0.b32.cont [11/16] %v1405, 128
        %3131 = vxpose.xlu0.b32.cont [12/16] %v1407, 128
        %3132 = vxpose.xlu0.b32.cont [13/16] %v1410, 128
        %3133 = vxpose.xlu0.b32.cont [14/16] %v1412, 128
        %3134 = vxpose.xlu0.b32.cont [15/16] %v1415, 128
        %3135 = vxpose.xlu0.b32.end [16/16] %v1417, 128
        %v3136 = vpop.trf.xlu0
        %v3137 = vpop.trf.xlu0
        %v3138 = vpop.trf.xlu0
        %v3139 = vpop.trf.xlu0
        %v3140 = vpop.trf.xlu0
        %v3141 = vpop.trf.xlu0
        %v3142 = vpop.trf.xlu0
        %v3143 = vpop.trf.xlu0
        %v3144 = vpop.trf.xlu0
        %v3145 = vpop.trf.xlu0
        %v3146 = vpop.trf.xlu0
        %v3147 = vpop.trf.xlu0
        %v3148 = vpop.trf.xlu0
        %v3149 = vpop.trf.xlu0
        %v3150 = vpop.trf.xlu0
        %v3151 = vpop.trf.xlu0
        %3152 = vxpose.xlu0.b32.start [1/16] %v1659, 128
        %3153 = vxpose.xlu0.b32.cont [2/16] %v1661, 128
        %3154 = vxpose.xlu0.b32.cont [3/16] %v1664, 128
        %3155 = vxpose.xlu0.b32.cont [4/16] %v1666, 128
        %3156 = vxpose.xlu0.b32.cont [5/16] %v1669, 128
        %3157 = vxpose.xlu0.b32.cont [6/16] %v1671, 128
        %3158 = vxpose.xlu0.b32.cont [7/16] %v1674, 128
        %3159 = vxpose.xlu0.b32.cont [8/16] %v1676, 128
        %3160 = vxpose.xlu0.b32.cont [9/16] %v1679, 128
        %3161 = vxpose.xlu0.b32.cont [10/16] %v1681, 128
        %3162 = vxpose.xlu0.b32.cont [11/16] %v1684, 128
        %3163 = vxpose.xlu0.b32.cont [12/16] %v1686, 128
        %3164 = vxpose.xlu0.b32.cont [13/16] %v1689, 128
        %3165 = vxpose.xlu0.b32.cont [14/16] %v1691, 128
        %3166 = vxpose.xlu0.b32.cont [15/16] %v1694, 128
        %3167 = vxpose.xlu0.b32.end [16/16] %v1696, 128
        %v3168 = vpop.trf.xlu0
        %v3169 = vpop.trf.xlu0
        %v3170 = vpop.trf.xlu0
        %v3171 = vpop.trf.xlu0
        %v3172 = vpop.trf.xlu0
        %v3173 = vpop.trf.xlu0
        %v3174 = vpop.trf.xlu0
        %v3175 = vpop.trf.xlu0
        %v3176 = vpop.trf.xlu0
        %v3177 = vpop.trf.xlu0
        %v3178 = vpop.trf.xlu0
        %v3179 = vpop.trf.xlu0
        %v3180 = vpop.trf.xlu0
        %v3181 = vpop.trf.xlu0
        %v3182 = vpop.trf.xlu0
        %v3183 = vpop.trf.xlu0
        %3184 = vxpose.xlu0.b32.start [1/16] %v1420, 128
        %3185 = vxpose.xlu0.b32.cont [2/16] 0.0, 128
        %3186 = vxpose.xlu0.b32.cont [3/16] 0.0, 128
        %3187 = vxpose.xlu0.b32.cont [4/16] 0.0, 128
        %3188 = vxpose.xlu0.b32.cont [5/16] 0.0, 128
        %3189 = vxpose.xlu0.b32.cont [6/16] 0.0, 128
        %3190 = vxpose.xlu0.b32.cont [7/16] 0.0, 128
        %3191 = vxpose.xlu0.b32.cont [8/16] 0.0, 128
        %3192 = vxpose.xlu0.b32.cont [9/16] 0.0, 128
        %3193 = vxpose.xlu0.b32.cont [10/16] 0.0, 128
        %3194 = vxpose.xlu0.b32.cont [11/16] 0.0, 128
        %3195 = vxpose.xlu0.b32.cont [12/16] 0.0, 128
        %3196 = vxpose.xlu0.b32.cont [13/16] 0.0, 128
        %3197 = vxpose.xlu0.b32.cont [14/16] 0.0, 128
        %3198 = vxpose.xlu0.b32.cont [15/16] 0.0, 128
        %3199 = vxpose.xlu0.b32.end [16/16] 0.0, 128
        %v3200 = vpop.trf.xlu0
        %v3201 = vpop.trf.xlu0
        %v3202 = vpop.trf.xlu0
        %v3203 = vpop.trf.xlu0
        %v3204 = vpop.trf.xlu0
        %v3205 = vpop.trf.xlu0
        %v3206 = vpop.trf.xlu0
        %v3207 = vpop.trf.xlu0
        %v3208 = vpop.trf.xlu0
        %v3209 = vpop.trf.xlu0
        %v3210 = vpop.trf.xlu0
        %v3211 = vpop.trf.xlu0
        %v3212 = vpop.trf.xlu0
        %v3213 = vpop.trf.xlu0
        %v3214 = vpop.trf.xlu0
        %v3215 = vpop.trf.xlu0
        %3216 = vxpose.xlu0.b32.start [1/16] %v1699, 128
        %3217 = vxpose.xlu0.b32.cont [2/16] 0.0, 128
        %3218 = vxpose.xlu0.b32.cont [3/16] 0.0, 128
        %3219 = vxpose.xlu0.b32.cont [4/16] 0.0, 128
        %3220 = vxpose.xlu0.b32.cont [5/16] 0.0, 128
        %3221 = vxpose.xlu0.b32.cont [6/16] 0.0, 128
        %3222 = vxpose.xlu0.b32.cont [7/16] 0.0, 128
        %3223 = vxpose.xlu0.b32.cont [8/16] 0.0, 128
        %3224 = vxpose.xlu0.b32.cont [9/16] 0.0, 128
        %3225 = vxpose.xlu0.b32.cont [10/16] 0.0, 128
        %3226 = vxpose.xlu0.b32.cont [11/16] 0.0, 128
        %3227 = vxpose.xlu0.b32.cont [12/16] 0.0, 128
        %3228 = vxpose.xlu0.b32.cont [13/16] 0.0, 128
        %3229 = vxpose.xlu0.b32.cont [14/16] 0.0, 128
        %3230 = vxpose.xlu0.b32.cont [15/16] 0.0, 128
        %3231 = vxpose.xlu0.b32.end [16/16] 0.0, 128
        %v3232 = vpop.trf.xlu0
        %v3233 = vpop.trf.xlu0
        %v3234 = vpop.trf.xlu0
        %v3235 = vpop.trf.xlu0
        %v3236 = vpop.trf.xlu0
        %v3237 = vpop.trf.xlu0
        %v3238 = vpop.trf.xlu0
        %v3239 = vpop.trf.xlu0
        %v3240 = vpop.trf.xlu0
        %v3241 = vpop.trf.xlu0
        %v3242 = vpop.trf.xlu0
        %v3243 = vpop.trf.xlu0
        %v3244 = vpop.trf.xlu0
        %v3245 = vpop.trf.xlu0
        %v3246 = vpop.trf.xlu0
        %v3247 = vpop.trf.xlu0
        %v3249 = vsel %vm1085, %v3200, 0
        %v3252 = vsel %vm1085, %v3201, 0
        %v3255 = vsel %vm1085, %v3202, 0
        %v3258 = vsel %vm1085, %v3203, 0
        %v3261 = vsel %vm1085, %v3204, 0
        %v3264 = vsel %vm1085, %v3205, 0
        %v3267 = vsel %vm1085, %v3206, 0
        %v3270 = vsel %vm1085, %v3207, 0
        %v3273 = vsel %vm1085, %v3208, 0
        %v3276 = vsel %vm1085, %v3209, 0
        %v3279 = vsel %vm1085, %v3210, 0
        %v3282 = vsel %vm1085, %v3211, 0
        %v3285 = vsel %vm1085, %v3212, 0
        %v3288 = vsel %vm1085, %v3213, 0
        %v3291 = vsel %vm1085, %v3214, 0
        %v3294 = vsel %vm1085, %v3215, 0
        %v3297 = vsel %vm1085, %v3232, 0
        %v3300 = vsel %vm1085, %v3233, 0
        %v3303 = vsel %vm1085, %v3234, 0
        %3305 = vmatpush.msra.mxu0 %v2139
        %3306 = vmatpush.msra.mxu0 %v2137
        %3307 = vmatpush.msra.mxu0 %v2134
        %3308 = vmatpush.msra.mxu0 %v2132
        %3309 = vmatpush.msra.mxu0 %v2129
        %3310 = vmatpush.msra.mxu0 %v2127
        %3311 = vmatpush.msra.mxu0 %v2124
        %3312 = vmatpush.msra.mxu0 %v2122
        %3313 = vmatpush.msra.mxu0 %v2119
        %3314 = vmatpush.msra.mxu0 %v2117
        %3315 = vmatpush.msra.mxu0 %v2114
        %3316 = vmatpush.msra.mxu0 %v2112
        %3317 = vmatpush.msra.mxu0 %v2109
        %3318 = vmatpush.msra.mxu0 %v2107
        %3319 = vmatpush.msra.mxu0 %v2104
        %3320 = vmatpush.msra.mxu0 %v2102
        %3321 = vmatmul.f32.gmra.mxu0 %v3072
        %v3322 = vpop.f32.mrf.mxu0
        %v3323 = vadd.f32 0.0, %v3322
        %3324 = vmatmul.f32.gmra.mxu0 %v3073
        %v3325 = vpop.f32.mrf.mxu0
        %v3326 = vadd.f32 0.0, %v3325
        %3327 = vmatmul.f32.gmra.mxu0 %v3074
        %v3328 = vpop.f32.mrf.mxu0
        %v3329 = vadd.f32 0.0, %v3328
        %3330 = vmatmul.f32.gmra.mxu0 %v3075
        %v3331 = vpop.f32.mrf.mxu0
        %v3332 = vadd.f32 0.0, %v3331
        %3333 = vmatmul.f32.gmra.mxu0 %v3076
        %v3334 = vpop.f32.mrf.mxu0
        %v3335 = vadd.f32 0.0, %v3334
        %3336 = vmatmul.f32.gmra.mxu0 %v3077
        %v3337 = vpop.f32.mrf.mxu0
        %v3338 = vadd.f32 0.0, %v3337
        %3339 = vmatmul.f32.gmra.mxu0 %v3078
        %v3340 = vpop.f32.mrf.mxu0
        %v3341 = vadd.f32 0.0, %v3340
        %3342 = vmatmul.f32.gmra.mxu0 %v3079
        %v3343 = vpop.f32.mrf.mxu0
        %v3344 = vadd.f32 0.0, %v3343
        %3345 = vmatmul.f32.gmra.mxu0 %v3080
        %v3346 = vpop.f32.mrf.mxu0
        %v3347 = vadd.f32 0.0, %v3346
        %3348 = vmatmul.f32.gmra.mxu0 %v3081
        %v3349 = vpop.f32.mrf.mxu0
        %v3350 = vadd.f32 0.0, %v3349
        %3351 = vmatmul.f32.gmra.mxu0 %v3082
        %v3352 = vpop.f32.mrf.mxu0
        %v3353 = vadd.f32 0.0, %v3352
        %3354 = vmatmul.f32.gmra.mxu0 %v3083
        %v3355 = vpop.f32.mrf.mxu0
        %v3356 = vadd.f32 0.0, %v3355
        %3357 = vmatmul.f32.gmra.mxu0 %v3084
        %v3358 = vpop.f32.mrf.mxu0
        %v3359 = vadd.f32 0.0, %v3358
        %3360 = vmatmul.f32.gmra.mxu0 %v3085
        %v3361 = vpop.f32.mrf.mxu0
        %v3362 = vadd.f32 0.0, %v3361
        %3363 = vmatmul.f32.gmra.mxu0 %v3086
        %v3364 = vpop.f32.mrf.mxu0
        %v3365 = vadd.f32 0.0, %v3364
        %3366 = vmatmul.f32.gmra.mxu0 %v3087
        %v3367 = vpop.f32.mrf.mxu0
        %v3368 = vadd.f32 0.0, %v3367
        %3369 = vmatmul.f32.gmra.mxu0 %v3104
        %v3370 = vpop.f32.mrf.mxu0
        %v3371 = vadd.f32 0.0, %v3370
        %3372 = vmatmul.f32.gmra.mxu0 %v3105
        %v3373 = vpop.f32.mrf.mxu0
        %v3374 = vadd.f32 0.0, %v3373
        %3375 = vmatmul.f32.gmra.mxu0 %v3106
        %v3376 = vpop.f32.mrf.mxu0
        %v3377 = vadd.f32 0.0, %v3376
        %3378 = vdwg.mxu0
        %3379 = vmatpush.msra.mxu0 %v2179
        %3380 = vmatpush.msra.mxu0 %v2177
        %3381 = vmatpush.msra.mxu0 %v2174
        %3382 = vmatpush.msra.mxu0 %v2172
        %3383 = vmatpush.msra.mxu0 %v2169
        %3384 = vmatpush.msra.mxu0 %v2167
        %3385 = vmatpush.msra.mxu0 %v2164
        %3386 = vmatpush.msra.mxu0 %v2162
        %3387 = vmatpush.msra.mxu0 %v2159
        %3388 = vmatpush.msra.mxu0 %v2157
        %3389 = vmatpush.msra.mxu0 %v2154
        %3390 = vmatpush.msra.mxu0 %v2152
        %3391 = vmatpush.msra.mxu0 %v2149
        %3392 = vmatpush.msra.mxu0 %v2147
        %3393 = vmatpush.msra.mxu0 %v2144
        %3394 = vmatpush.msra.mxu0 %v2142
        %3395 = vmatmul.f32.gmra.mxu0 %v3136
        %v3396 = vpop.f32.mrf.mxu0
        %v3397 = vadd.f32 %v3323, %v3396
        %3398 = vmatmul.f32.gmra.mxu0 %v3137
        %v3399 = vpop.f32.mrf.mxu0
        %v3400 = vadd.f32 %v3326, %v3399
        %3401 = vmatmul.f32.gmra.mxu0 %v3138
        %v3402 = vpop.f32.mrf.mxu0
        %v3403 = vadd.f32 %v3329, %v3402
        %3404 = vmatmul.f32.gmra.mxu0 %v3139
        %v3405 = vpop.f32.mrf.mxu0
        %v3406 = vadd.f32 %v3332, %v3405
        %3407 = vmatmul.f32.gmra.mxu0 %v3140
        %v3408 = vpop.f32.mrf.mxu0
        %v3409 = vadd.f32 %v3335, %v3408
        %3410 = vmatmul.f32.gmra.mxu0 %v3141
        %v3411 = vpop.f32.mrf.mxu0
        %v3412 = vadd.f32 %v3338, %v3411
        %3413 = vmatmul.f32.gmra.mxu0 %v3142
        %v3414 = vpop.f32.mrf.mxu0
        %v3415 = vadd.f32 %v3341, %v3414
        %3416 = vmatmul.f32.gmra.mxu0 %v3143
        %v3417 = vpop.f32.mrf.mxu0
        %v3418 = vadd.f32 %v3344, %v3417
        %3419 = vmatmul.f32.gmra.mxu0 %v3144
        %v3420 = vpop.f32.mrf.mxu0
        %v3421 = vadd.f32 %v3347, %v3420
        %3422 = vmatmul.f32.gmra.mxu0 %v3145
        %v3423 = vpop.f32.mrf.mxu0
        %v3424 = vadd.f32 %v3350, %v3423
        %3425 = vmatmul.f32.gmra.mxu0 %v3146
        %v3426 = vpop.f32.mrf.mxu0
        %v3427 = vadd.f32 %v3353, %v3426
        %3428 = vmatmul.f32.gmra.mxu0 %v3147
        %v3429 = vpop.f32.mrf.mxu0
        %v3430 = vadd.f32 %v3356, %v3429
        %3431 = vmatmul.f32.gmra.mxu0 %v3148
        %v3432 = vpop.f32.mrf.mxu0
        %v3433 = vadd.f32 %v3359, %v3432
        %3434 = vmatmul.f32.gmra.mxu0 %v3149
        %v3435 = vpop.f32.mrf.mxu0
        %v3436 = vadd.f32 %v3362, %v3435
        %3437 = vmatmul.f32.gmra.mxu0 %v3150
        %v3438 = vpop.f32.mrf.mxu0
        %v3439 = vadd.f32 %v3365, %v3438
        %3440 = vmatmul.f32.gmra.mxu0 %v3151
        %v3441 = vpop.f32.mrf.mxu0
        %v3442 = vadd.f32 %v3368, %v3441
        %3443 = vmatmul.f32.gmra.mxu0 %v3168
        %v3444 = vpop.f32.mrf.mxu0
        %v3445 = vadd.f32 %v3371, %v3444
        %3446 = vmatmul.f32.gmra.mxu0 %v3169
        %v3447 = vpop.f32.mrf.mxu0
        %v3448 = vadd.f32 %v3374, %v3447
        %3449 = vmatmul.f32.gmra.mxu0 %v3170
        %v3450 = vpop.f32.mrf.mxu0
        %v3451 = vadd.f32 %v3377, %v3450
        %3452 = vdwg.mxu0
        %3453 = vmatpush.msra.mxu0 0.0
        %3454 = vmatpush.msra.mxu0 0.0
        %3455 = vmatpush.msra.mxu0 0.0
        %3456 = vmatpush.msra.mxu0 0.0
        %3457 = vmatpush.msra.mxu0 0.0
        %3458 = vmatpush.msra.mxu0 0.0
        %3459 = vmatpush.msra.mxu0 0.0
        %3460 = vmatpush.msra.mxu0 0.0
        %3461 = vmatpush.msra.mxu0 0.0
        %3462 = vmatpush.msra.mxu0 0.0
        %3463 = vmatpush.msra.mxu0 0.0
        %3464 = vmatpush.msra.mxu0 0.0
        %3465 = vmatpush.msra.mxu0 0.0
        %3466 = vmatpush.msra.mxu0 0.0
        %3467 = vmatpush.msra.mxu0 0.0
        %3468 = vmatpush.msra.mxu0 %v2182
        %3469 = vmatmul.f32.gmra.mxu0 %v3249
        %v3470 = vpop.f32.mrf.mxu0
        %v3471 = vadd.f32 %v3397, %v3470
        %3472 = vmatmul.f32.gmra.mxu0 %v3252
        %v3473 = vpop.f32.mrf.mxu0
        %v3474 = vadd.f32 %v3400, %v3473
        %3475 = vmatmul.f32.gmra.mxu0 %v3255
        %v3476 = vpop.f32.mrf.mxu0
        %v3477 = vadd.f32 %v3403, %v3476
        %3478 = vmatmul.f32.gmra.mxu0 %v3258
        %v3479 = vpop.f32.mrf.mxu0
        %v3480 = vadd.f32 %v3406, %v3479
        %3481 = vmatmul.f32.gmra.mxu0 %v3261
        %v3482 = vpop.f32.mrf.mxu0
        %v3483 = vadd.f32 %v3409, %v3482
        %3484 = vmatmul.f32.gmra.mxu0 %v3264
        %v3485 = vpop.f32.mrf.mxu0
        %v3486 = vadd.f32 %v3412, %v3485
        %3487 = vmatmul.f32.gmra.mxu0 %v3267
        %v3488 = vpop.f32.mrf.mxu0
        %v3489 = vadd.f32 %v3415, %v3488
        %3490 = vmatmul.f32.gmra.mxu0 %v3270
        %v3491 = vpop.f32.mrf.mxu0
        %v3492 = vadd.f32 %v3418, %v3491
        %3493 = vmatmul.f32.gmra.mxu0 %v3273
        %v3494 = vpop.f32.mrf.mxu0
        %v3495 = vadd.f32 %v3421, %v3494
        %3496 = vmatmul.f32.gmra.mxu0 %v3276
        %v3497 = vpop.f32.mrf.mxu0
        %v3498 = vadd.f32 %v3424, %v3497
        %3499 = vmatmul.f32.gmra.mxu0 %v3279
        %v3500 = vpop.f32.mrf.mxu0
        %v3501 = vadd.f32 %v3427, %v3500
        %3502 = vmatmul.f32.gmra.mxu0 %v3282
        %v3503 = vpop.f32.mrf.mxu0
        %v3504 = vadd.f32 %v3430, %v3503
        %3505 = vmatmul.f32.gmra.mxu0 %v3285
        %v3506 = vpop.f32.mrf.mxu0
        %v3507 = vadd.f32 %v3433, %v3506
        %3508 = vmatmul.f32.gmra.mxu0 %v3288
        %v3509 = vpop.f32.mrf.mxu0
        %v3510 = vadd.f32 %v3436, %v3509
        %3511 = vmatmul.f32.gmra.mxu0 %v3291
        %v3512 = vpop.f32.mrf.mxu0
        %v3513 = vadd.f32 %v3439, %v3512
        %3514 = vmatmul.f32.gmra.mxu0 %v3294
        %v3515 = vpop.f32.mrf.mxu0
        %v3516 = vadd.f32 %v3442, %v3515
        %3517 = vmatmul.f32.gmra.mxu0 %v3297
        %v3518 = vpop.f32.mrf.mxu0
        %v3519 = vadd.f32 %v3445, %v3518
        %3520 = vmatmul.f32.gmra.mxu0 %v3300
        %v3521 = vpop.f32.mrf.mxu0
        %v3522 = vadd.f32 %v3448, %v3521
        %3523 = vmatmul.f32.gmra.mxu0 %v3303
        %v3524 = vpop.f32.mrf.mxu0
        %v3525 = vadd.f32 %v3451, %v3524
        %3526 = vdwg.mxu0
        %3527 = vmatpush.msra.mxu0 %v2418
        %3528 = vmatpush.msra.mxu0 %v2416
        %3529 = vmatpush.msra.mxu0 %v2413
        %3530 = vmatpush.msra.mxu0 %v2411
        %3531 = vmatpush.msra.mxu0 %v2408
        %3532 = vmatpush.msra.mxu0 %v2406
        %3533 = vmatpush.msra.mxu0 %v2403
        %3534 = vmatpush.msra.mxu0 %v2401
        %3535 = vmatpush.msra.mxu0 %v2398
        %3536 = vmatpush.msra.mxu0 %v2396
        %3537 = vmatpush.msra.mxu0 %v2393
        %3538 = vmatpush.msra.mxu0 %v2391
        %3539 = vmatpush.msra.mxu0 %v2388
        %3540 = vmatpush.msra.mxu0 %v2386
        %3541 = vmatpush.msra.mxu0 %v2383
        %3542 = vmatpush.msra.mxu0 %v2381
        %3543 = vmatmul.f32.gmra.mxu0 %v3072
        %v3544 = vpop.f32.mrf.mxu0
        %v3545 = vadd.f32 0.0, %v3544
        %3546 = vmatmul.f32.gmra.mxu0 %v3073
        %v3547 = vpop.f32.mrf.mxu0
        %v3548 = vadd.f32 0.0, %v3547
        %3549 = vmatmul.f32.gmra.mxu0 %v3074
        %v3550 = vpop.f32.mrf.mxu0
        %v3551 = vadd.f32 0.0, %v3550
        %3552 = vmatmul.f32.gmra.mxu0 %v3075
        %v3553 = vpop.f32.mrf.mxu0
        %v3554 = vadd.f32 0.0, %v3553
        %3555 = vmatmul.f32.gmra.mxu0 %v3076
        %v3556 = vpop.f32.mrf.mxu0
        %v3557 = vadd.f32 0.0, %v3556
        %3558 = vmatmul.f32.gmra.mxu0 %v3077
        %v3559 = vpop.f32.mrf.mxu0
        %v3560 = vadd.f32 0.0, %v3559
        %3561 = vmatmul.f32.gmra.mxu0 %v3078
        %v3562 = vpop.f32.mrf.mxu0
        %v3563 = vadd.f32 0.0, %v3562
        %3564 = vmatmul.f32.gmra.mxu0 %v3079
        %v3565 = vpop.f32.mrf.mxu0
        %v3566 = vadd.f32 0.0, %v3565
        %3567 = vmatmul.f32.gmra.mxu0 %v3080
        %v3568 = vpop.f32.mrf.mxu0
        %v3569 = vadd.f32 0.0, %v3568
        %3570 = vmatmul.f32.gmra.mxu0 %v3081
        %v3571 = vpop.f32.mrf.mxu0
        %v3572 = vadd.f32 0.0, %v3571
        %3573 = vmatmul.f32.gmra.mxu0 %v3082
        %v3574 = vpop.f32.mrf.mxu0
        %v3575 = vadd.f32 0.0, %v3574
        %3576 = vmatmul.f32.gmra.mxu0 %v3083
        %v3577 = vpop.f32.mrf.mxu0
        %v3578 = vadd.f32 0.0, %v3577
        %3579 = vmatmul.f32.gmra.mxu0 %v3084
        %v3580 = vpop.f32.mrf.mxu0
        %v3581 = vadd.f32 0.0, %v3580
        %3582 = vmatmul.f32.gmra.mxu0 %v3085
        %v3583 = vpop.f32.mrf.mxu0
        %v3584 = vadd.f32 0.0, %v3583
        %3585 = vmatmul.f32.gmra.mxu0 %v3086
        %v3586 = vpop.f32.mrf.mxu0
        %v3587 = vadd.f32 0.0, %v3586
        %3588 = vmatmul.f32.gmra.mxu0 %v3087
        %v3589 = vpop.f32.mrf.mxu0
        %v3590 = vadd.f32 0.0, %v3589
        %3591 = vmatmul.f32.gmra.mxu0 %v3104
        %v3592 = vpop.f32.mrf.mxu0
        %v3593 = vadd.f32 0.0, %v3592
        %3594 = vmatmul.f32.gmra.mxu0 %v3105
        %v3595 = vpop.f32.mrf.mxu0
        %v3596 = vadd.f32 0.0, %v3595
        %3597 = vmatmul.f32.gmra.mxu0 %v3106
        %v3598 = vpop.f32.mrf.mxu0
        %v3599 = vadd.f32 0.0, %v3598
        %3600 = vdwg.mxu0
        %3601 = vmatpush.msra.mxu0 %v2458
        %3602 = vmatpush.msra.mxu0 %v2456
        %3603 = vmatpush.msra.mxu0 %v2453
        %3604 = vmatpush.msra.mxu0 %v2451
        %3605 = vmatpush.msra.mxu0 %v2448
        %3606 = vmatpush.msra.mxu0 %v2446
        %3607 = vmatpush.msra.mxu0 %v2443
        %3608 = vmatpush.msra.mxu0 %v2441
        %3609 = vmatpush.msra.mxu0 %v2438
        %3610 = vmatpush.msra.mxu0 %v2436
        %3611 = vmatpush.msra.mxu0 %v2433
        %3612 = vmatpush.msra.mxu0 %v2431
        %3613 = vmatpush.msra.mxu0 %v2428
        %3614 = vmatpush.msra.mxu0 %v2426
        %3615 = vmatpush.msra.mxu0 %v2423
        %3616 = vmatpush.msra.mxu0 %v2421
        %3617 = vmatmul.f32.gmra.mxu0 %v3136
        %v3618 = vpop.f32.mrf.mxu0
        %v3619 = vadd.f32 %v3545, %v3618
        %3620 = vmatmul.f32.gmra.mxu0 %v3137
        %v3621 = vpop.f32.mrf.mxu0
        %v3622 = vadd.f32 %v3548, %v3621
        %3623 = vmatmul.f32.gmra.mxu0 %v3138
        %v3624 = vpop.f32.mrf.mxu0
        %v3625 = vadd.f32 %v3551, %v3624
        %3626 = vmatmul.f32.gmra.mxu0 %v3139
        %v3627 = vpop.f32.mrf.mxu0
        %v3628 = vadd.f32 %v3554, %v3627
        %3629 = vmatmul.f32.gmra.mxu0 %v3140
        %v3630 = vpop.f32.mrf.mxu0
        %v3631 = vadd.f32 %v3557, %v3630
        %3632 = vmatmul.f32.gmra.mxu0 %v3141
        %v3633 = vpop.f32.mrf.mxu0
        %v3634 = vadd.f32 %v3560, %v3633
        %3635 = vmatmul.f32.gmra.mxu0 %v3142
        %v3636 = vpop.f32.mrf.mxu0
        %v3637 = vadd.f32 %v3563, %v3636
        %3638 = vmatmul.f32.gmra.mxu0 %v3143
        %v3639 = vpop.f32.mrf.mxu0
        %v3640 = vadd.f32 %v3566, %v3639
        %3641 = vmatmul.f32.gmra.mxu0 %v3144
        %v3642 = vpop.f32.mrf.mxu0
        %v3643 = vadd.f32 %v3569, %v3642
        %3644 = vmatmul.f32.gmra.mxu0 %v3145
        %v3645 = vpop.f32.mrf.mxu0
        %v3646 = vadd.f32 %v3572, %v3645
        %3647 = vmatmul.f32.gmra.mxu0 %v3146
        %v3648 = vpop.f32.mrf.mxu0
        %v3649 = vadd.f32 %v3575, %v3648
        %3650 = vmatmul.f32.gmra.mxu0 %v3147
        %v3651 = vpop.f32.mrf.mxu0
        %v3652 = vadd.f32 %v3578, %v3651
        %3653 = vmatmul.f32.gmra.mxu0 %v3148
        %v3654 = vpop.f32.mrf.mxu0
        %v3655 = vadd.f32 %v3581, %v3654
        %3656 = vmatmul.f32.gmra.mxu0 %v3149
        %v3657 = vpop.f32.mrf.mxu0
        %v3658 = vadd.f32 %v3584, %v3657
        %3659 = vmatmul.f32.gmra.mxu0 %v3150
        %v3660 = vpop.f32.mrf.mxu0
        %v3661 = vadd.f32 %v3587, %v3660
        %3662 = vmatmul.f32.gmra.mxu0 %v3151
        %v3663 = vpop.f32.mrf.mxu0
        %v3664 = vadd.f32 %v3590, %v3663
        %3665 = vmatmul.f32.gmra.mxu0 %v3168
        %v3666 = vpop.f32.mrf.mxu0
        %v3667 = vadd.f32 %v3593, %v3666
        %3668 = vmatmul.f32.gmra.mxu0 %v3169
        %v3669 = vpop.f32.mrf.mxu0
        %v3670 = vadd.f32 %v3596, %v3669
        %3671 = vmatmul.f32.gmra.mxu0 %v3170
        %v3672 = vpop.f32.mrf.mxu0
        %v3673 = vadd.f32 %v3599, %v3672
        %3674 = vdwg.mxu0
        %3675 = vmatpush.msra.mxu0 0.0
        %3676 = vmatpush.msra.mxu0 0.0
        %3677 = vmatpush.msra.mxu0 0.0
        %3678 = vmatpush.msra.mxu0 0.0
        %3679 = vmatpush.msra.mxu0 0.0
        %3680 = vmatpush.msra.mxu0 0.0
        %3681 = vmatpush.msra.mxu0 0.0
        %3682 = vmatpush.msra.mxu0 0.0
        %3683 = vmatpush.msra.mxu0 0.0
        %3684 = vmatpush.msra.mxu0 0.0
        %3685 = vmatpush.msra.mxu0 0.0
        %3686 = vmatpush.msra.mxu0 0.0
        %3687 = vmatpush.msra.mxu0 0.0
        %3688 = vmatpush.msra.mxu0 0.0
        %3689 = vmatpush.msra.mxu0 0.0
        %3690 = vmatpush.msra.mxu0 %v2461
        %3691 = vmatmul.f32.gmra.mxu0 %v3249
        %v3692 = vpop.f32.mrf.mxu0
        %v3693 = vadd.f32 %v3619, %v3692
        %3694 = vmatmul.f32.gmra.mxu0 %v3252
        %v3695 = vpop.f32.mrf.mxu0
        %v3696 = vadd.f32 %v3622, %v3695
        %3697 = vmatmul.f32.gmra.mxu0 %v3255
        %v3698 = vpop.f32.mrf.mxu0
        %v3699 = vadd.f32 %v3625, %v3698
        %3700 = vmatmul.f32.gmra.mxu0 %v3258
        %v3701 = vpop.f32.mrf.mxu0
        %v3702 = vadd.f32 %v3628, %v3701
        %3703 = vmatmul.f32.gmra.mxu0 %v3261
        %v3704 = vpop.f32.mrf.mxu0
        %v3705 = vadd.f32 %v3631, %v3704
        %3706 = vmatmul.f32.gmra.mxu0 %v3264
        %v3707 = vpop.f32.mrf.mxu0
        %v3708 = vadd.f32 %v3634, %v3707
        %3709 = vmatmul.f32.gmra.mxu0 %v3267
        %v3710 = vpop.f32.mrf.mxu0
        %v3711 = vadd.f32 %v3637, %v3710
        %3712 = vmatmul.f32.gmra.mxu0 %v3270
        %v3713 = vpop.f32.mrf.mxu0
        %v3714 = vadd.f32 %v3640, %v3713
        %3715 = vmatmul.f32.gmra.mxu0 %v3273
        %v3716 = vpop.f32.mrf.mxu0
        %v3717 = vadd.f32 %v3643, %v3716
        %3718 = vmatmul.f32.gmra.mxu0 %v3276
        %v3719 = vpop.f32.mrf.mxu0
        %v3720 = vadd.f32 %v3646, %v3719
        %3721 = vmatmul.f32.gmra.mxu0 %v3279
        %v3722 = vpop.f32.mrf.mxu0
        %v3723 = vadd.f32 %v3649, %v3722
        %3724 = vmatmul.f32.gmra.mxu0 %v3282
        %v3725 = vpop.f32.mrf.mxu0
        %v3726 = vadd.f32 %v3652, %v3725
        %3727 = vmatmul.f32.gmra.mxu0 %v3285
        %v3728 = vpop.f32.mrf.mxu0
        %v3729 = vadd.f32 %v3655, %v3728
        %3730 = vmatmul.f32.gmra.mxu0 %v3288
        %v3731 = vpop.f32.mrf.mxu0
        %v3732 = vadd.f32 %v3658, %v3731
        %3733 = vmatmul.f32.gmra.mxu0 %v3291
        %v3734 = vpop.f32.mrf.mxu0
        %v3735 = vadd.f32 %v3661, %v3734
        %3736 = vmatmul.f32.gmra.mxu0 %v3294
        %v3737 = vpop.f32.mrf.mxu0
        %v3738 = vadd.f32 %v3664, %v3737
        %3739 = vmatmul.f32.gmra.mxu0 %v3297
        %v3740 = vpop.f32.mrf.mxu0
        %v3741 = vadd.f32 %v3667, %v3740
        %3742 = vmatmul.f32.gmra.mxu0 %v3300
        %v3743 = vpop.f32.mrf.mxu0
        %v3744 = vadd.f32 %v3670, %v3743
        %3745 = vmatmul.f32.gmra.mxu0 %v3303
        %v3746 = vpop.f32.mrf.mxu0
        %v3747 = vadd.f32 %v3673, %v3746
        %3748 = vdwg.mxu0
        %v3749 = vmul.f32 %v3471, 0.0061545745
        %v3750 = vmul.f32 %v3693, 0.0061545745
        %v3751 = vmul.f32 %v3474, 0.0061545745
        %v3752 = vmul.f32 %v3696, 0.0061545745
        %v3753 = vmul.f32 %v3477, 0.0061545745
        %v3754 = vmul.f32 %v3699, 0.0061545745
        %v3755 = vmul.f32 %v3480, 0.0061545745
        %v3756 = vmul.f32 %v3702, 0.0061545745
        %v3757 = vmul.f32 %v3483, 0.0061545745
        %v3758 = vmul.f32 %v3705, 0.0061545745
        %v3759 = vmul.f32 %v3486, 0.0061545745
        %v3760 = vmul.f32 %v3708, 0.0061545745
        %v3761 = vmul.f32 %v3489, 0.0061545745
        %v3762 = vmul.f32 %v3711, 0.0061545745
        %v3763 = vmul.f32 %v3492, 0.0061545745
        %v3764 = vmul.f32 %v3714, 0.0061545745
        %v3765 = vmul.f32 %v3495, 0.0061545745
        %v3766 = vmul.f32 %v3717, 0.0061545745
        %v3767 = vmul.f32 %v3498, 0.0061545745
        %v3768 = vmul.f32 %v3720, 0.0061545745
        %v3769 = vmul.f32 %v3501, 0.0061545745
        %v3770 = vmul.f32 %v3723, 0.0061545745
        %v3771 = vmul.f32 %v3504, 0.0061545745
        %v3772 = vmul.f32 %v3726, 0.0061545745
        %v3773 = vmul.f32 %v3507, 0.0061545745
        %v3774 = vmul.f32 %v3729, 0.0061545745
        %v3775 = vmul.f32 %v3510, 0.0061545745
        %v3776 = vmul.f32 %v3732, 0.0061545745
        %v3777 = vmul.f32 %v3513, 0.0061545745
        %v3778 = vmul.f32 %v3735, 0.0061545745
        %v3779 = vmul.f32 %v3516, 0.0061545745
        %v3780 = vmul.f32 %v3738, 0.0061545745
        %v3781 = vmul.f32 %v3519, 0.0061545745
        %v3782 = vmul.f32 %v3741, 0.0061545745
        %v3783 = vmul.f32 %v3522, 0.0061545745
        %v3784 = vmul.f32 %v3744, 0.0061545745
        %v3785 = vmul.f32 %v3525, 0.0061545745
        %v3786 = vmul.f32 %v3747, 0.0061545745
        %v3787 = vlaneseq
        %v3788 = vshrl.u32 %v3787, 7
        %v3789 = vadd.s32 %v3788, 8
        %v3790 = vadd.s32 %v3788, 16
        %v3791 = vadd.s32 %v3788, 24
        %v3792 = vadd.s32 %v3788, 32
        %v3793 = vadd.s32 %v3788, 40
        %v3794 = vadd.s32 %v3788, 48
        %v3795 = vadd.s32 %v3788, 56
        %v3796 = vadd.s32 %v3788, 64
        %v3797 = vadd.s32 %v3788, 72
        %v3798 = vadd.s32 %v3788, 80
        %v3799 = vadd.s32 %v3788, 88
        %v3800 = vadd.s32 %v3788, 96
        %v3801 = vadd.s32 %v3788, 104
        %v3802 = vadd.s32 %v3788, 112
        %v3803 = vadd.s32 %v3788, 120
        %v3804 = vadd.s32 %v3788, 128
        %v3805 = vadd.s32 %v3788, 136
        %v3806 = vadd.s32 %v3788, 144
        %v3807 = vlaneseq
        %v3808 = vand.u32 %v3807, 127
        %v3809 = vadd.s32 %v3808, 128
        %vm3810 = vcmp.eq.s32.totalorder %v3788, 144
        %vm3811 = vcmp.eq.s32.totalorder %v3789, 144
        %vm3812 = vcmp.eq.s32.totalorder %v3790, 144
        %vm3813 = vcmp.eq.s32.totalorder %v3791, 144
        %vm3814 = vcmp.eq.s32.totalorder %v3792, 144
        %vm3815 = vcmp.eq.s32.totalorder %v3793, 144
        %vm3816 = vcmp.eq.s32.totalorder %v3794, 144
        %vm3817 = vcmp.eq.s32.totalorder %v3795, 144
        %vm3818 = vcmp.eq.s32.totalorder %v3796, 144
        %vm3819 = vcmp.eq.s32.totalorder %v3797, 144
        %vm3820 = vcmp.eq.s32.totalorder %v3798, 144
        %vm3821 = vcmp.eq.s32.totalorder %v3799, 144
        %vm3822 = vcmp.eq.s32.totalorder %v3800, 144
        %vm3823 = vcmp.eq.s32.totalorder %v3801, 144
        %vm3824 = vcmp.eq.s32.totalorder %v3802, 144
        %vm3825 = vcmp.eq.s32.totalorder %v3803, 144
        %vm3826 = vcmp.eq.s32.totalorder %v3804, 144
        %vm3827 = vcmp.eq.s32.totalorder %v3805, 144
        %vm3828 = vcmp.eq.s32.totalorder %v3806, 144
        %v3829 = vsel %vm3810, -0.6931472, -5.6629605
        %v3830 = vsel %vm3811, -0.6931472, -5.6629605
        %v3831 = vsel %vm3812, -0.6931472, -5.6629605
        %v3832 = vsel %vm3813, -0.6931472, -5.6629605
        %v3833 = vsel %vm3814, -0.6931472, -5.6629605
        %v3834 = vsel %vm3815, -0.6931472, -5.6629605
        %v3835 = vsel %vm3816, -0.6931472, -5.6629605
        %v3836 = vsel %vm3817, -0.6931472, -5.6629605
        %v3837 = vsel %vm3818, -0.6931472, -5.6629605
        %v3838 = vsel %vm3819, -0.6931472, -5.6629605
        %v3839 = vsel %vm3820, -0.6931472, -5.6629605
        %v3840 = vsel %vm3821, -0.6931472, -5.6629605
        %v3841 = vsel %vm3822, -0.6931472, -5.6629605
        %v3842 = vsel %vm3823, -0.6931472, -5.6629605
        %v3843 = vsel %vm3824, -0.6931472, -5.6629605
        %v3844 = vsel %vm3825, -0.6931472, -5.6629605
        %v3845 = vsel %vm3826, -0.6931472, -5.6629605
        %v3846 = vsel %vm3827, -0.6931472, -5.6629605
        %v3847 = vsel %vm3828, -0.6931472, -5.6629605
        %vm3848 = vcmp.eq.s32.totalorder %v3808, 144
        %vm3849 = vcmp.eq.s32.totalorder %v3809, 144
        %v3850 = vsel %vm3848, -0.6931472, -5.6629605
        %v3851 = vsel %vm3849, -0.6931472, -5.6629605
        %v3852 = vsel %vm2465, %v3750, -inf
        %v3853 = vmax.f32 %v3749, %v3852
        %3854 = vmax.xlane.f32.xlu0 %v3853
        %v3855 = vpop.xlane.xlu0 %3854
        %v3856 = vsel %vm2465, %v3752, -inf
        %v3857 = vmax.f32 %v3751, %v3856
        %3858 = vmax.xlane.f32.xlu0 %v3857
        %v3859 = vpop.xlane.xlu0 %3858
        %v3860 = vsel %vm2465, %v3754, -inf
        %v3861 = vmax.f32 %v3753, %v3860
        %3862 = vmax.xlane.f32.xlu0 %v3861
        %v3863 = vpop.xlane.xlu0 %3862
        %v3864 = vsel %vm2465, %v3756, -inf
        %v3865 = vmax.f32 %v3755, %v3864
        %3866 = vmax.xlane.f32.xlu0 %v3865
        %v3867 = vpop.xlane.xlu0 %3866
        %v3868 = vsel %vm2465, %v3758, -inf
        %v3869 = vmax.f32 %v3757, %v3868
        %3870 = vmax.xlane.f32.xlu0 %v3869
        %v3871 = vpop.xlane.xlu0 %3870
        %v3872 = vsel %vm2465, %v3760, -inf
        %v3873 = vmax.f32 %v3759, %v3872
        %3874 = vmax.xlane.f32.xlu0 %v3873
        %v3875 = vpop.xlane.xlu0 %3874
        %v3876 = vsel %vm2465, %v3762, -inf
        %v3877 = vmax.f32 %v3761, %v3876
        %3878 = vmax.xlane.f32.xlu0 %v3877
        %v3879 = vpop.xlane.xlu0 %3878
        %v3880 = vsel %vm2465, %v3764, -inf
        %v3881 = vmax.f32 %v3763, %v3880
        %3882 = vmax.xlane.f32.xlu0 %v3881
        %v3883 = vpop.xlane.xlu0 %3882
        %v3884 = vsel %vm2465, %v3766, -inf
        %v3885 = vmax.f32 %v3765, %v3884
        %3886 = vmax.xlane.f32.xlu0 %v3885
        %v3887 = vpop.xlane.xlu0 %3886
        %v3888 = vsel %vm2465, %v3768, -inf
        %v3889 = vmax.f32 %v3767, %v3888
        %3890 = vmax.xlane.f32.xlu0 %v3889
        %v3891 = vpop.xlane.xlu0 %3890
        %v3892 = vsel %vm2465, %v3770, -inf
        %v3893 = vmax.f32 %v3769, %v3892
        %3894 = vmax.xlane.f32.xlu0 %v3893
        %v3895 = vpop.xlane.xlu0 %3894
        %v3896 = vsel %vm2465, %v3772, -inf
        %v3897 = vmax.f32 %v3771, %v3896
        %3898 = vmax.xlane.f32.xlu0 %v3897
        %v3899 = vpop.xlane.xlu0 %3898
        %v3900 = vsel %vm2465, %v3774, -inf
        %v3901 = vmax.f32 %v3773, %v3900
        %3902 = vmax.xlane.f32.xlu0 %v3901
        %v3903 = vpop.xlane.xlu0 %3902
        %v3904 = vsel %vm2465, %v3776, -inf
        %v3905 = vmax.f32 %v3775, %v3904
        %3906 = vmax.xlane.f32.xlu0 %v3905
        %v3907 = vpop.xlane.xlu0 %3906
        %v3908 = vsel %vm2465, %v3778, -inf
        %v3909 = vmax.f32 %v3777, %v3908
        %3910 = vmax.xlane.f32.xlu0 %v3909
        %v3911 = vpop.xlane.xlu0 %3910
        %v3912 = vsel %vm2465, %v3780, -inf
        %v3913 = vmax.f32 %v3779, %v3912
        %3914 = vmax.xlane.f32.xlu0 %v3913
        %v3915 = vpop.xlane.xlu0 %3914
        %v3916 = vsel %vm2465, %v3782, -inf
        %v3917 = vmax.f32 %v3781, %v3916
        %3918 = vmax.xlane.f32.xlu0 %v3917
        %v3919 = vpop.xlane.xlu0 %3918
        %v3920 = vsel %vm2465, %v3784, -inf
        %v3921 = vmax.f32 %v3783, %v3920
        %3922 = vmax.xlane.f32.xlu0 %v3921
        %v3923 = vpop.xlane.xlu0 %3922
        %vm3924 = vcmask 1040384
        %v3925 = vsel %vm3924, %v3785, -inf
        %vm3926 = vcmask 131072
        %v3927 = vsel %vm3926, %v3786, -inf
        %v3928 = vmax.f32 %v3925, %v3927
        %3929 = vmax.xlane.f32.xlu0 %v3928
        %v3930 = vpop.xlane.xlu0 %3929
        %v3931 = vmax.f32 %v3749, %v3753
        %v3932 = vmax.f32 %v3751, %v3755
        %v3933 = vmax.f32 %v3931, %v3757
        %v3934 = vmax.f32 %v3932, %v3759
        %v3935 = vmax.f32 %v3933, %v3761
        %v3936 = vmax.f32 %v3934, %v3763
        %v3937 = vmax.f32 %v3935, %v3765
        %v3938 = vmax.f32 %v3936, %v3767
        %v3939 = vmax.f32 %v3937, %v3769
        %v3940 = vmax.f32 %v3938, %v3771
        %v3941 = vmax.f32 %v3939, %v3773
        %v3942 = vmax.f32 %v3940, %v3775
        %v3943 = vmax.f32 %v3941, %v3777
        %v3944 = vmax.f32 %v3942, %v3779
        %v3945 = vmax.f32 %v3943, %v3781
        %v3946 = vmax.f32 %v3944, %v3783
        %v3947 = vmax.f32 %v3945, %v3925
        %v3948 = vmax.f32 %v3947, %v3946
        %v3949 = vrot.slane %v3948, 4
        %v3950 = vmax.f32 %v3948, %v3949
        %v3951 = vrot.slane %v3950, 2
        %v3952 = vmax.f32 %v3950, %v3951
        %v3953 = vrot.slane %v3952, 1
        %v3954 = vmax.f32 %v3952, %v3953
        %v3955 = vmax.f32 %v3852, %v3860
        %v3956 = vmax.f32 %v3856, %v3864
        %v3957 = vmax.f32 %v3955, %v3868
        %v3958 = vmax.f32 %v3956, %v3872
        %v3959 = vmax.f32 %v3957, %v3876
        %v3960 = vmax.f32 %v3958, %v3880
        %v3961 = vmax.f32 %v3959, %v3884
        %v3962 = vmax.f32 %v3960, %v3888
        %v3963 = vmax.f32 %v3961, %v3892
        %v3964 = vmax.f32 %v3962, %v3896
        %v3965 = vmax.f32 %v3963, %v3900
        %v3966 = vmax.f32 %v3964, %v3904
        %v3967 = vmax.f32 %v3965, %v3908
        %v3968 = vmax.f32 %v3966, %v3912
        %v3969 = vmax.f32 %v3967, %v3916
        %v3970 = vmax.f32 %v3968, %v3920
        %v3971 = vmax.f32 %v3969, %v3927
        %v3972 = vmax.f32 %v3971, %v3970
        %v3973 = vrot.slane %v3972, 4
        %v3974 = vmax.f32 %v3972, %v3973
        %v3975 = vrot.slane %v3974, 2
        %v3976 = vmax.f32 %v3974, %v3975
        %v3977 = vrot.slane %v3976, 1
        %v3978 = vmax.f32 %v3976, %v3977
        %v3979 = vsub.f32 %v3749, %v3855
        %v3980 = vsub.f32 %v3750, %v3855
        %v3981 = vsub.f32 %v3751, %v3859
        %v3982 = vsub.f32 %v3752, %v3859
        %v3983 = vsub.f32 %v3753, %v3863
        %v3984 = vsub.f32 %v3754, %v3863
        %v3985 = vsub.f32 %v3755, %v3867
        %v3986 = vsub.f32 %v3756, %v3867
        %v3987 = vsub.f32 %v3757, %v3871
        %v3988 = vsub.f32 %v3758, %v3871
        %v3989 = vsub.f32 %v3759, %v3875
        %v3990 = vsub.f32 %v3760, %v3875
        %v3991 = vsub.f32 %v3761, %v3879
        %v3992 = vsub.f32 %v3762, %v3879
        %v3993 = vsub.f32 %v3763, %v3883
        %v3994 = vsub.f32 %v3764, %v3883
        %v3995 = vsub.f32 %v3765, %v3887
        %v3996 = vsub.f32 %v3766, %v3887
        %v3997 = vsub.f32 %v3767, %v3891
        %v3998 = vsub.f32 %v3768, %v3891
        %v3999 = vsub.f32 %v3769, %v3895
        %v4000 = vsub.f32 %v3770, %v3895
        %v4001 = vsub.f32 %v3771, %v3899
        %v4002 = vsub.f32 %v3772, %v3899
        %v4003 = vsub.f32 %v3773, %v3903
        %v4004 = vsub.f32 %v3774, %v3903
        %v4005 = vsub.f32 %v3775, %v3907
        %v4006 = vsub.f32 %v3776, %v3907
        %v4007 = vsub.f32 %v3777, %v3911
        %v4008 = vsub.f32 %v3778, %v3911
        %v4009 = vsub.f32 %v3779, %v3915
        %v4010 = vsub.f32 %v3780, %v3915
        %v4011 = vsub.f32 %v3781, %v3919
        %v4012 = vsub.f32 %v3782, %v3919
        %v4013 = vsub.f32 %v3783, %v3923
        %v4014 = vsub.f32 %v3784, %v3923
        %v4015 = vsub.f32 %v3785, %v3930
        %v4016 = vsub.f32 %v3786, %v3930
        %v4017 = vmul.f32 %v3979, 1.442695
        %v4018 = vpow.pop %v4017
        %v4019 = vmul.f32 %v3980, 1.442695
        %v4020 = vpow.pop %v4019
        %v4021 = vmul.f32 %v3981, 1.442695
        %v4022 = vpow.pop %v4021
        %v4023 = vmul.f32 %v3982, 1.442695
        %v4024 = vpow.pop %v4023
        %v4025 = vmul.f32 %v3983, 1.442695
        %v4026 = vpow.pop %v4025
        %v4027 = vmul.f32 %v3984, 1.442695
        %v4028 = vpow.pop %v4027
        %v4029 = vmul.f32 %v3985, 1.442695
        %v4030 = vpow.pop %v4029
        %v4031 = vmul.f32 %v3986, 1.442695
        %v4032 = vpow.pop %v4031
        %v4033 = vmul.f32 %v3987, 1.442695
        %v4034 = vpow.pop %v4033
        %v4035 = vmul.f32 %v3988, 1.442695
        %v4036 = vpow.pop %v4035
        %v4037 = vmul.f32 %v3989, 1.442695
        %v4038 = vpow.pop %v4037
        %v4039 = vmul.f32 %v3990, 1.442695
        %v4040 = vpow.pop %v4039
        %v4041 = vmul.f32 %v3991, 1.442695
        %v4042 = vpow.pop %v4041
        %v4043 = vmul.f32 %v3992, 1.442695
        %v4044 = vpow.pop %v4043
        %v4045 = vmul.f32 %v3993, 1.442695
        %v4046 = vpow.pop %v4045
        %v4047 = vmul.f32 %v3994, 1.442695
        %v4048 = vpow.pop %v4047
        %v4049 = vmul.f32 %v3995, 1.442695
        %v4050 = vpow.pop %v4049
        %v4051 = vmul.f32 %v3996, 1.442695
        %v4052 = vpow.pop %v4051
        %v4053 = vmul.f32 %v3997, 1.442695
        %v4054 = vpow.pop %v4053
        %v4055 = vmul.f32 %v3998, 1.442695
        %v4056 = vpow.pop %v4055
        %v4057 = vmul.f32 %v3999, 1.442695
        %v4058 = vpow.pop %v4057
        %v4059 = vmul.f32 %v4000, 1.442695
        %v4060 = vpow.pop %v4059
        %v4061 = vmul.f32 %v4001, 1.442695
        %v4062 = vpow.pop %v4061
        %v4063 = vmul.f32 %v4002, 1.442695
        %v4064 = vpow.pop %v4063
        %v4065 = vmul.f32 %v4003, 1.442695
        %v4066 = vpow.pop %v4065
        %v4067 = vmul.f32 %v4004, 1.442695
        %v4068 = vpow.pop %v4067
        %v4069 = vmul.f32 %v4005, 1.442695
        %v4070 = vpow.pop %v4069
        %v4071 = vmul.f32 %v4006, 1.442695
        %v4072 = vpow.pop %v4071
        %v4073 = vmul.f32 %v4007, 1.442695
        %v4074 = vpow.pop %v4073
        %v4075 = vmul.f32 %v4008, 1.442695
        %v4076 = vpow.pop %v4075
        %v4077 = vmul.f32 %v4009, 1.442695
        %v4078 = vpow.pop %v4077
        %v4079 = vmul.f32 %v4010, 1.442695
        %v4080 = vpow.pop %v4079
        %v4081 = vmul.f32 %v4011, 1.442695
        %v4082 = vpow.pop %v4081
        %v4083 = vmul.f32 %v4012, 1.442695
        %v4084 = vpow.pop %v4083
        %v4085 = vmul.f32 %v4013, 1.442695
        %v4086 = vpow.pop %v4085
        %v4087 = vmul.f32 %v4014, 1.442695
        %v4088 = vpow.pop %v4087
        %v4089 = vmul.f32 %v4015, 1.442695
        %v4090 = vpow.pop %v4089
        %v4091 = vmul.f32 %v4016, 1.442695
        %v4092 = vpow.pop %v4091
        %v4093 = vsub.f32 %v3749, %v3954
        %v4094 = vsub.f32 %v3750, %v3978
        %v4095 = vsub.f32 %v3751, %v3954
        %v4096 = vsub.f32 %v3752, %v3978
        %v4097 = vsub.f32 %v3753, %v3954
        %v4098 = vsub.f32 %v3754, %v3978
        %v4099 = vsub.f32 %v3755, %v3954
        %v4100 = vsub.f32 %v3756, %v3978
        %v4101 = vsub.f32 %v3757, %v3954
        %v4102 = vsub.f32 %v3758, %v3978
        %v4103 = vsub.f32 %v3759, %v3954
        %v4104 = vsub.f32 %v3760, %v3978
        %v4105 = vsub.f32 %v3761, %v3954
        %v4106 = vsub.f32 %v3762, %v3978
        %v4107 = vsub.f32 %v3763, %v3954
        %v4108 = vsub.f32 %v3764, %v3978
        %v4109 = vsub.f32 %v3765, %v3954
        %v4110 = vsub.f32 %v3766, %v3978
        %v4111 = vsub.f32 %v3767, %v3954
        %v4112 = vsub.f32 %v3768, %v3978
        %v4113 = vsub.f32 %v3769, %v3954
        %v4114 = vsub.f32 %v3770, %v3978
        %v4115 = vsub.f32 %v3771, %v3954
        %v4116 = vsub.f32 %v3772, %v3978
        %v4117 = vsub.f32 %v3773, %v3954
        %v4118 = vsub.f32 %v3774, %v3978
        %v4119 = vsub.f32 %v3775, %v3954
        %v4120 = vsub.f32 %v3776, %v3978
        %v4121 = vsub.f32 %v3777, %v3954
        %v4122 = vsub.f32 %v3778, %v3978
        %v4123 = vsub.f32 %v3779, %v3954
        %v4124 = vsub.f32 %v3780, %v3978
        %v4125 = vsub.f32 %v3781, %v3954
        %v4126 = vsub.f32 %v3782, %v3978
        %v4127 = vsub.f32 %v3783, %v3954
        %v4128 = vsub.f32 %v3784, %v3978
        %v4129 = vsub.f32 %v3785, %v3954
        %v4130 = vsub.f32 %v3786, %v3978
        %v4131 = vmul.f32 %v4093, 1.442695
        %v4132 = vpow.pop %v4131
        %v4133 = vmul.f32 %v4094, 1.442695
        %v4134 = vpow.pop %v4133
        %v4135 = vmul.f32 %v4095, 1.442695
        %v4136 = vpow.pop %v4135
        %v4137 = vmul.f32 %v4096, 1.442695
        %v4138 = vpow.pop %v4137
        %v4139 = vmul.f32 %v4097, 1.442695
        %v4140 = vpow.pop %v4139
        %v4141 = vmul.f32 %v4098, 1.442695
        %v4142 = vpow.pop %v4141
        %v4143 = vmul.f32 %v4099, 1.442695
        %v4144 = vpow.pop %v4143
        %v4145 = vmul.f32 %v4100, 1.442695
        %v4146 = vpow.pop %v4145
        %v4147 = vmul.f32 %v4101, 1.442695
        %v4148 = vpow.pop %v4147
        %v4149 = vmul.f32 %v4102, 1.442695
        %v4150 = vpow.pop %v4149
        %v4151 = vmul.f32 %v4103, 1.442695
        %v4152 = vpow.pop %v4151
        %v4153 = vmul.f32 %v4104, 1.442695
        %v4154 = vpow.pop %v4153
        %v4155 = vmul.f32 %v4105, 1.442695
        %v4156 = vpow.pop %v4155
        %v4157 = vmul.f32 %v4106, 1.442695
        %v4158 = vpow.pop %v4157
        %v4159 = vmul.f32 %v4107, 1.442695
        %v4160 = vpow.pop %v4159
        %v4161 = vmul.f32 %v4108, 1.442695
        %v4162 = vpow.pop %v4161
        %v4163 = vmul.f32 %v4109, 1.442695
        %v4164 = vpow.pop %v4163
        %v4165 = vmul.f32 %v4110, 1.442695
        %v4166 = vpow.pop %v4165
        %v4167 = vmul.f32 %v4111, 1.442695
        %v4168 = vpow.pop %v4167
        %v4169 = vmul.f32 %v4112, 1.442695
        %v4170 = vpow.pop %v4169
        %v4171 = vmul.f32 %v4113, 1.442695
        %v4172 = vpow.pop %v4171
        %v4173 = vmul.f32 %v4114, 1.442695
        %v4174 = vpow.pop %v4173
        %v4175 = vmul.f32 %v4115, 1.442695
        %v4176 = vpow.pop %v4175
        %v4177 = vmul.f32 %v4116, 1.442695
        %v4178 = vpow.pop %v4177
        %v4179 = vmul.f32 %v4117, 1.442695
        %v4180 = vpow.pop %v4179
        %v4181 = vmul.f32 %v4118, 1.442695
        %v4182 = vpow.pop %v4181
        %v4183 = vmul.f32 %v4119, 1.442695
        %v4184 = vpow.pop %v4183
        %v4185 = vmul.f32 %v4120, 1.442695
        %v4186 = vpow.pop %v4185
        %v4187 = vmul.f32 %v4121, 1.442695
        %v4188 = vpow.pop %v4187
        %v4189 = vmul.f32 %v4122, 1.442695
        %v4190 = vpow.pop %v4189
        %v4191 = vmul.f32 %v4123, 1.442695
        %v4192 = vpow.pop %v4191
        %v4193 = vmul.f32 %v4124, 1.442695
        %v4194 = vpow.pop %v4193
        %v4195 = vmul.f32 %v4125, 1.442695
        %v4196 = vpow.pop %v4195
        %v4197 = vmul.f32 %v4126, 1.442695
        %v4198 = vpow.pop %v4197
        %v4199 = vmul.f32 %v4127, 1.442695
        %v4200 = vpow.pop %v4199
        %v4201 = vmul.f32 %v4128, 1.442695
        %v4202 = vpow.pop %v4201
        %v4203 = vmul.f32 %v4129, 1.442695
        %v4204 = vpow.pop %v4203
        %v4205 = vmul.f32 %v4130, 1.442695
        %v4206 = vpow.pop %v4205
        loop: start=0, step=1, limit=50
        $region49: #{second_layer_head.1} parent=47 // loop_pre_header
          _
        $region50: #{second_layer_head.1} parent=47 // loop_header
          %s4208 = sphi 0, %s4212
          %p4209 = scmp.ge.s32.totalorder %s4208, 50
          %v4213 = vphi 0.0, %v4853
          %v4214 = vphi 0.0, %v4854
          %v4215 = vphi 0.0, %v4855
          %v4216 = vphi 0.0, %v4856
          %v4217 = vphi 0.0, %v4857
          %v4218 = vphi 0.0, %v4858
          %v4219 = vphi 0.0, %v4859
          %v4220 = vphi 0.0, %v4860
          %v4221 = vphi 0.0, %v4861
          %v4222 = vphi 0.0, %v4862
          %v4223 = vphi 0.0, %v4863
          %v4224 = vphi 0.0, %v4864
          %v4225 = vphi 0.0, %v4865
          %v4226 = vphi 0.0, %v4866
          %v4227 = vphi 0.0, %v4867
          %v4228 = vphi 0.0, %v4868
          %v4229 = vphi 0.0, %v4869
          %v4230 = vphi 0.0, %v4870
          %v4231 = vphi 0.0, %v4871
          %v4232 = vphi 0.0, %v5068
          %v4233 = vphi 0.0, %v5069
        $region51: #{second_layer_head.1} parent=47 // loop_header_branch
          %4211 = sbr.rel (%p4209) target = $region55
        $region52: #{second_layer_head.1} parent=47 // loop_body
          %v4234 = vsel %vm2465, %v4233, -inf
          %v4235 = vmax.f32 %v4232, %v4234
          %4236 = vmax.xlane.f32.xlu0 %v4235
          %v4237 = vpop.xlane.xlu0 %4236
          %v4238 = vsub.f32 %v4232, %v4237
          %v4239 = vsub.f32 %v4233, %v4237
          %v4240 = vmul.f32 %v4238, 1.442695
          %v4241 = vpow.pop %v4240
          %v4242 = vmul.f32 %v4239, 1.442695
          %v4243 = vpow.pop %v4242
          %v4244 = vmul.f32 %v4018, %v4241
          %v4245 = vmul.f32 %v4020, %v4243
          %v4246 = vmul.f32 %v4022, %v4241
          %v4247 = vmul.f32 %v4024, %v4243
          %v4248 = vmul.f32 %v4026, %v4241
          %v4249 = vmul.f32 %v4028, %v4243
          %v4250 = vmul.f32 %v4030, %v4241
          %v4251 = vmul.f32 %v4032, %v4243
          %v4252 = vmul.f32 %v4034, %v4241
          %v4253 = vmul.f32 %v4036, %v4243
          %v4254 = vmul.f32 %v4038, %v4241
          %v4255 = vmul.f32 %v4040, %v4243
          %v4256 = vmul.f32 %v4042, %v4241
          %v4257 = vmul.f32 %v4044, %v4243
          %v4258 = vmul.f32 %v4046, %v4241
          %v4259 = vmul.f32 %v4048, %v4243
          %v4260 = vmul.f32 %v4050, %v4241
          %v4261 = vmul.f32 %v4052, %v4243
          %v4262 = vmul.f32 %v4054, %v4241
          %v4263 = vmul.f32 %v4056, %v4243
          %v4264 = vmul.f32 %v4058, %v4241
          %v4265 = vmul.f32 %v4060, %v4243
          %v4266 = vmul.f32 %v4062, %v4241
          %v4267 = vmul.f32 %v4064, %v4243
          %v4268 = vmul.f32 %v4066, %v4241
          %v4269 = vmul.f32 %v4068, %v4243
          %v4270 = vmul.f32 %v4070, %v4241
          %v4271 = vmul.f32 %v4072, %v4243
          %v4272 = vmul.f32 %v4074, %v4241
          %v4273 = vmul.f32 %v4076, %v4243
          %v4274 = vmul.f32 %v4078, %v4241
          %v4275 = vmul.f32 %v4080, %v4243
          %v4276 = vmul.f32 %v4082, %v4241
          %v4277 = vmul.f32 %v4084, %v4243
          %v4278 = vmul.f32 %v4086, %v4241
          %v4279 = vmul.f32 %v4088, %v4243
          %v4280 = vmul.f32 %v4090, %v4241
          %v4281 = vmul.f32 %v4092, %v4243
          %v4282 = vsel %vm2465, %v4245, 0.0
          %v4283 = vadd.f32 %v4244, %v4282
          %4284 = vadd.xlane.f32.xlu0 %v4283
          %v4285 = vpop.xlane.xlu0 %4284
          %v4286 = vsel %vm2465, %v4247, 0.0
          %v4287 = vadd.f32 %v4246, %v4286
          %4288 = vadd.xlane.f32.xlu0 %v4287
          %v4289 = vpop.xlane.xlu0 %4288
          %v4290 = vsel %vm2465, %v4249, 0.0
          %v4291 = vadd.f32 %v4248, %v4290
          %4292 = vadd.xlane.f32.xlu0 %v4291
          %v4293 = vpop.xlane.xlu0 %4292
          %v4294 = vsel %vm2465, %v4251, 0.0
          %v4295 = vadd.f32 %v4250, %v4294
          %4296 = vadd.xlane.f32.xlu0 %v4295
          %v4297 = vpop.xlane.xlu0 %4296
          %v4298 = vsel %vm2465, %v4253, 0.0
          %v4299 = vadd.f32 %v4252, %v4298
          %4300 = vadd.xlane.f32.xlu0 %v4299
          %v4301 = vpop.xlane.xlu0 %4300
          %v4302 = vsel %vm2465, %v4255, 0.0
          %v4303 = vadd.f32 %v4254, %v4302
          %4304 = vadd.xlane.f32.xlu0 %v4303
          %v4305 = vpop.xlane.xlu0 %4304
          %v4306 = vsel %vm2465, %v4257, 0.0
          %v4307 = vadd.f32 %v4256, %v4306
          %4308 = vadd.xlane.f32.xlu0 %v4307
          %v4309 = vpop.xlane.xlu0 %4308
          %v4310 = vsel %vm2465, %v4259, 0.0
          %v4311 = vadd.f32 %v4258, %v4310
          %4312 = vadd.xlane.f32.xlu0 %v4311
          %v4313 = vpop.xlane.xlu0 %4312
          %v4314 = vsel %vm2465, %v4261, 0.0
          %v4315 = vadd.f32 %v4260, %v4314
          %4316 = vadd.xlane.f32.xlu0 %v4315
          %v4317 = vpop.xlane.xlu0 %4316
          %v4318 = vsel %vm2465, %v4263, 0.0
          %v4319 = vadd.f32 %v4262, %v4318
          %4320 = vadd.xlane.f32.xlu0 %v4319
          %v4321 = vpop.xlane.xlu0 %4320
          %v4322 = vsel %vm2465, %v4265, 0.0
          %v4323 = vadd.f32 %v4264, %v4322
          %4324 = vadd.xlane.f32.xlu0 %v4323
          %v4325 = vpop.xlane.xlu0 %4324
          %v4326 = vsel %vm2465, %v4267, 0.0
          %v4327 = vadd.f32 %v4266, %v4326
          %4328 = vadd.xlane.f32.xlu0 %v4327
          %v4329 = vpop.xlane.xlu0 %4328
          %v4330 = vsel %vm2465, %v4269, 0.0
          %v4331 = vadd.f32 %v4268, %v4330
          %4332 = vadd.xlane.f32.xlu0 %v4331
          %v4333 = vpop.xlane.xlu0 %4332
          %v4334 = vsel %vm2465, %v4271, 0.0
          %v4335 = vadd.f32 %v4270, %v4334
          %4336 = vadd.xlane.f32.xlu0 %v4335
          %v4337 = vpop.xlane.xlu0 %4336
          %v4338 = vsel %vm2465, %v4273, 0.0
          %v4339 = vadd.f32 %v4272, %v4338
          %4340 = vadd.xlane.f32.xlu0 %v4339
          %v4341 = vpop.xlane.xlu0 %4340
          %v4342 = vsel %vm2465, %v4275, 0.0
          %v4343 = vadd.f32 %v4274, %v4342
          %4344 = vadd.xlane.f32.xlu0 %v4343
          %v4345 = vpop.xlane.xlu0 %4344
          %v4346 = vsel %vm2465, %v4277, 0.0
          %v4347 = vadd.f32 %v4276, %v4346
          %4348 = vadd.xlane.f32.xlu0 %v4347
          %v4349 = vpop.xlane.xlu0 %4348
          %v4350 = vsel %vm2465, %v4279, 0.0
          %v4351 = vadd.f32 %v4278, %v4350
          %4352 = vadd.xlane.f32.xlu0 %v4351
          %v4353 = vpop.xlane.xlu0 %4352
          %v4354 = vsel %vm3924, %v4280, 0.0
          %v4355 = vsel %vm3926, %v4281, 0.0
          %v4356 = vadd.f32 %v4354, %v4355
          %4357 = vadd.xlane.f32.xlu0 %v4356
          %v4358 = vpop.xlane.xlu0 %4357
          %v4359 = vadd.f32 %v3855, %v4237
          %v4360 = vadd.f32 %v3859, %v4237
          %v4361 = vadd.f32 %v3863, %v4237
          %v4362 = vadd.f32 %v3867, %v4237
          %v4363 = vadd.f32 %v3871, %v4237
          %v4364 = vadd.f32 %v3875, %v4237
          %v4365 = vadd.f32 %v3879, %v4237
          %v4366 = vadd.f32 %v3883, %v4237
          %v4367 = vadd.f32 %v3887, %v4237
          %v4368 = vadd.f32 %v3891, %v4237
          %v4369 = vadd.f32 %v3895, %v4237
          %v4370 = vadd.f32 %v3899, %v4237
          %v4371 = vadd.f32 %v3903, %v4237
          %v4372 = vadd.f32 %v3907, %v4237
          %v4373 = vadd.f32 %v3911, %v4237
          %v4374 = vadd.f32 %v3915, %v4237
          %v4375 = vadd.f32 %v3919, %v4237
          %v4376 = vadd.f32 %v3923, %v4237
          %v4377 = vadd.f32 %v3930, %v4237
          %v4378 = vlog2.pop %v4285
          %v4379 = vmul.f32 %v4378, 0.6931472
          %v4380 = vlog2.pop %v4289
          %v4381 = vmul.f32 %v4380, 0.6931472
          %v4382 = vlog2.pop %v4293
          %v4383 = vmul.f32 %v4382, 0.6931472
          %v4384 = vlog2.pop %v4297
          %v4385 = vmul.f32 %v4384, 0.6931472
          %v4386 = vlog2.pop %v4301
          %v4387 = vmul.f32 %v4386, 0.6931472
          %v4388 = vlog2.pop %v4305
          %v4389 = vmul.f32 %v4388, 0.6931472
          %v4390 = vlog2.pop %v4309
          %v4391 = vmul.f32 %v4390, 0.6931472
          %v4392 = vlog2.pop %v4313
          %v4393 = vmul.f32 %v4392, 0.6931472
          %v4394 = vlog2.pop %v4317
          %v4395 = vmul.f32 %v4394, 0.6931472
          %v4396 = vlog2.pop %v4321
          %v4397 = vmul.f32 %v4396, 0.6931472
          %v4398 = vlog2.pop %v4325
          %v4399 = vmul.f32 %v4398, 0.6931472
          %v4400 = vlog2.pop %v4329
          %v4401 = vmul.f32 %v4400, 0.6931472
          %v4402 = vlog2.pop %v4333
          %v4403 = vmul.f32 %v4402, 0.6931472
          %v4404 = vlog2.pop %v4337
          %v4405 = vmul.f32 %v4404, 0.6931472
          %v4406 = vlog2.pop %v4341
          %v4407 = vmul.f32 %v4406, 0.6931472
          %v4408 = vlog2.pop %v4345
          %v4409 = vmul.f32 %v4408, 0.6931472
          %v4410 = vlog2.pop %v4349
          %v4411 = vmul.f32 %v4410, 0.6931472
          %v4412 = vlog2.pop %v4353
          %v4413 = vmul.f32 %v4412, 0.6931472
          %v4414 = vlog2.pop %v4358
          %v4415 = vmul.f32 %v4414, 0.6931472
          %v4416 = vadd.f32 %v4359, %v4379
          %v4417 = vadd.f32 %v4360, %v4381
          %v4418 = vadd.f32 %v4361, %v4383
          %v4419 = vadd.f32 %v4362, %v4385
          %v4420 = vadd.f32 %v4363, %v4387
          %v4421 = vadd.f32 %v4364, %v4389
          %v4422 = vadd.f32 %v4365, %v4391
          %v4423 = vadd.f32 %v4366, %v4393
          %v4424 = vadd.f32 %v4367, %v4395
          %v4425 = vadd.f32 %v4368, %v4397
          %v4426 = vadd.f32 %v4369, %v4399
          %v4427 = vadd.f32 %v4370, %v4401
          %v4428 = vadd.f32 %v4371, %v4403
          %v4429 = vadd.f32 %v4372, %v4405
          %v4430 = vadd.f32 %v4373, %v4407
          %v4431 = vadd.f32 %v4374, %v4409
          %v4432 = vadd.f32 %v4375, %v4411
          %v4433 = vadd.f32 %v4376, %v4413
          %v4434 = vadd.f32 %v4377, %v4415
          %v4435 = vsub.f32 %v3829, %v4416
          %v4436 = vsub.f32 %v3830, %v4417
          %v4437 = vsub.f32 %v3831, %v4418
          %v4438 = vsub.f32 %v3832, %v4419
          %v4439 = vsub.f32 %v3833, %v4420
          %v4440 = vsub.f32 %v3834, %v4421
          %v4441 = vsub.f32 %v3835, %v4422
          %v4442 = vsub.f32 %v3836, %v4423
          %v4443 = vsub.f32 %v3837, %v4424
          %v4444 = vsub.f32 %v3838, %v4425
          %v4445 = vsub.f32 %v3839, %v4426
          %v4446 = vsub.f32 %v3840, %v4427
          %v4447 = vsub.f32 %v3841, %v4428
          %v4448 = vsub.f32 %v3842, %v4429
          %v4449 = vsub.f32 %v3843, %v4430
          %v4450 = vsub.f32 %v3844, %v4431
          %v4451 = vsub.f32 %v3845, %v4432
          %v4452 = vsub.f32 %v3846, %v4433
          %v4453 = vsub.f32 %v3847, %v4434
          %v4454 = vmax.f32 %v4435, %v4439
          %v4455 = vmax.f32 %v4436, %v4440
          %v4456 = vmax.f32 %v4437, %v4441
          %v4457 = vmax.f32 %v4438, %v4442
          %v4458 = vmax.f32 %v4454, %v4443
          %v4459 = vmax.f32 %v4455, %v4444
          %v4460 = vmax.f32 %v4456, %v4445
          %v4461 = vmax.f32 %v4457, %v4446
          %v4462 = vmax.f32 %v4458, %v4447
          %v4463 = vmax.f32 %v4459, %v4448
          %v4464 = vmax.f32 %v4460, %v4449
          %v4465 = vmax.f32 %v4461, %v4450
          %v4466 = vmax.f32 %v4462, %v4451
          %v4467 = vmax.f32 %v4463, %v4452
          %v4468 = vsel %vm3924, %v4453, -inf
          %v4469 = vmax.f32 %v4464, %v4468
          %v4470 = vmax.f32 %v4466, %v4467
          %v4471 = vmax.f32 %v4469, %v4465
          %v4472 = vmax.f32 %v4470, %v4471
          %v4473 = vrot.slane %v4472, 4
          %v4474 = vmax.f32 %v4472, %v4473
          %v4475 = vrot.slane %v4474, 2
          %v4476 = vmax.f32 %v4474, %v4475
          %v4477 = vrot.slane %v4476, 1
          %v4478 = vmax.f32 %v4476, %v4477
          %v4479 = vsub.f32 %v4435, %v4478
          %v4480 = vsub.f32 %v4436, %v4478
          %v4481 = vsub.f32 %v4437, %v4478
          %v4482 = vsub.f32 %v4438, %v4478
          %v4483 = vsub.f32 %v4439, %v4478
          %v4484 = vsub.f32 %v4440, %v4478
          %v4485 = vsub.f32 %v4441, %v4478
          %v4486 = vsub.f32 %v4442, %v4478
          %v4487 = vsub.f32 %v4443, %v4478
          %v4488 = vsub.f32 %v4444, %v4478
          %v4489 = vsub.f32 %v4445, %v4478
          %v4490 = vsub.f32 %v4446, %v4478
          %v4491 = vsub.f32 %v4447, %v4478
          %v4492 = vsub.f32 %v4448, %v4478
          %v4493 = vsub.f32 %v4449, %v4478
          %v4494 = vsub.f32 %v4450, %v4478
          %v4495 = vsub.f32 %v4451, %v4478
          %v4496 = vsub.f32 %v4452, %v4478
          %v4497 = vsub.f32 %v4453, %v4478
          %v4498 = vmul.f32 %v4479, 1.442695
          %v4499 = vpow.pop %v4498
          %v4500 = vmul.f32 %v4480, 1.442695
          %v4501 = vpow.pop %v4500
          %v4502 = vmul.f32 %v4481, 1.442695
          %v4503 = vpow.pop %v4502
          %v4504 = vmul.f32 %v4482, 1.442695
          %v4505 = vpow.pop %v4504
          %v4506 = vmul.f32 %v4483, 1.442695
          %v4507 = vpow.pop %v4506
          %v4508 = vmul.f32 %v4484, 1.442695
          %v4509 = vpow.pop %v4508
          %v4510 = vmul.f32 %v4485, 1.442695
          %v4511 = vpow.pop %v4510
          %v4512 = vmul.f32 %v4486, 1.442695
          %v4513 = vpow.pop %v4512
          %v4514 = vmul.f32 %v4487, 1.442695
          %v4515 = vpow.pop %v4514
          %v4516 = vmul.f32 %v4488, 1.442695
          %v4517 = vpow.pop %v4516
          %v4518 = vmul.f32 %v4489, 1.442695
          %v4519 = vpow.pop %v4518
          %v4520 = vmul.f32 %v4490, 1.442695
          %v4521 = vpow.pop %v4520
          %v4522 = vmul.f32 %v4491, 1.442695
          %v4523 = vpow.pop %v4522
          %v4524 = vmul.f32 %v4492, 1.442695
          %v4525 = vpow.pop %v4524
          %v4526 = vmul.f32 %v4493, 1.442695
          %v4527 = vpow.pop %v4526
          %v4528 = vmul.f32 %v4494, 1.442695
          %v4529 = vpow.pop %v4528
          %v4530 = vmul.f32 %v4495, 1.442695
          %v4531 = vpow.pop %v4530
          %v4532 = vmul.f32 %v4496, 1.442695
          %v4533 = vpow.pop %v4532
          %v4534 = vmul.f32 %v4497, 1.442695
          %v4535 = vpow.pop %v4534
          %v4536 = vmul.f32 %v4132, %v4499
          %v4537 = vmul.f32 %v4134, %v4499
          %v4538 = vmul.f32 %v4136, %v4501
          %v4539 = vmul.f32 %v4138, %v4501
          %v4540 = vmul.f32 %v4140, %v4503
          %v4541 = vmul.f32 %v4142, %v4503
          %v4542 = vmul.f32 %v4144, %v4505
          %v4543 = vmul.f32 %v4146, %v4505
          %v4544 = vmul.f32 %v4148, %v4507
          %v4545 = vmul.f32 %v4150, %v4507
          %v4546 = vmul.f32 %v4152, %v4509
          %v4547 = vmul.f32 %v4154, %v4509
          %v4548 = vmul.f32 %v4156, %v4511
          %v4549 = vmul.f32 %v4158, %v4511
          %v4550 = vmul.f32 %v4160, %v4513
          %v4551 = vmul.f32 %v4162, %v4513
          %v4552 = vmul.f32 %v4164, %v4515
          %v4553 = vmul.f32 %v4166, %v4515
          %v4554 = vmul.f32 %v4168, %v4517
          %v4555 = vmul.f32 %v4170, %v4517
          %v4556 = vmul.f32 %v4172, %v4519
          %v4557 = vmul.f32 %v4174, %v4519
          %v4558 = vmul.f32 %v4176, %v4521
          %v4559 = vmul.f32 %v4178, %v4521
          %v4560 = vmul.f32 %v4180, %v4523
          %v4561 = vmul.f32 %v4182, %v4523
          %v4562 = vmul.f32 %v4184, %v4525
          %v4563 = vmul.f32 %v4186, %v4525
          %v4564 = vmul.f32 %v4188, %v4527
          %v4565 = vmul.f32 %v4190, %v4527
          %v4566 = vmul.f32 %v4192, %v4529
          %v4567 = vmul.f32 %v4194, %v4529
          %v4568 = vmul.f32 %v4196, %v4531
          %v4569 = vmul.f32 %v4198, %v4531
          %v4570 = vmul.f32 %v4200, %v4533
          %v4571 = vmul.f32 %v4202, %v4533
          %v4572 = vmul.f32 %v4204, %v4535
          %v4573 = vmul.f32 %v4206, %v4535
          %v4574 = vadd.f32 %v4536, %v4538
          %v4575 = vadd.f32 %v4574, %v4540
          %v4576 = vadd.f32 %v4575, %v4542
          %v4577 = vadd.f32 %v4576, %v4544
          %v4578 = vadd.f32 %v4577, %v4546
          %v4579 = vadd.f32 %v4578, %v4548
          %v4580 = vadd.f32 %v4579, %v4550
          %v4581 = vadd.f32 %v4580, %v4552
          %v4582 = vadd.f32 %v4581, %v4554
          %v4583 = vadd.f32 %v4582, %v4556
          %v4584 = vadd.f32 %v4583, %v4558
          %v4585 = vadd.f32 %v4584, %v4560
          %v4586 = vadd.f32 %v4585, %v4562
          %v4587 = vadd.f32 %v4586, %v4564
          %v4588 = vadd.f32 %v4587, %v4566
          %v4589 = vadd.f32 %v4588, %v4568
          %v4590 = vadd.f32 %v4589, %v4570
          %v4591 = vsel %vm3924, %v4572, 0.0
          %v4592 = vadd.f32 %v4590, %v4591
          %v4593 = vrot.slane %v4592, 4
          %v4594 = vadd.f32 %v4592, %v4593
          %v4595 = vrot.slane %v4594, 2
          %v4596 = vadd.f32 %v4594, %v4595
          %v4597 = vrot.slane %v4596, 1
          %v4598 = vadd.f32 %v4596, %v4597
          %v4599 = vsel %vm2465, %v4537, 0.0
          %v4600 = vsel %vm2465, %v4539, 0.0
          %v4601 = vadd.f32 %v4599, %v4600
          %v4602 = vsel %vm2465, %v4541, 0.0
          %v4603 = vadd.f32 %v4601, %v4602
          %v4604 = vsel %vm2465, %v4543, 0.0
          %v4605 = vadd.f32 %v4603, %v4604
          %v4606 = vsel %vm2465, %v4545, 0.0
          %v4607 = vadd.f32 %v4605, %v4606
          %v4608 = vsel %vm2465, %v4547, 0.0
          %v4609 = vadd.f32 %v4607, %v4608
          %v4610 = vsel %vm2465, %v4549, 0.0
          %v4611 = vadd.f32 %v4609, %v4610
          %v4612 = vsel %vm2465, %v4551, 0.0
          %v4613 = vadd.f32 %v4611, %v4612
          %v4614 = vsel %vm2465, %v4553, 0.0
          %v4615 = vadd.f32 %v4613, %v4614
          %v4616 = vsel %vm2465, %v4555, 0.0
          %v4617 = vadd.f32 %v4615, %v4616
          %v4618 = vsel %vm2465, %v4557, 0.0
          %v4619 = vadd.f32 %v4617, %v4618
          %v4620 = vsel %vm2465, %v4559, 0.0
          %v4621 = vadd.f32 %v4619, %v4620
          %v4622 = vsel %vm2465, %v4561, 0.0
          %v4623 = vadd.f32 %v4621, %v4622
          %v4624 = vsel %vm2465, %v4563, 0.0
          %v4625 = vadd.f32 %v4623, %v4624
          %v4626 = vsel %vm2465, %v4565, 0.0
          %v4627 = vadd.f32 %v4625, %v4626
          %v4628 = vsel %vm2465, %v4567, 0.0
          %v4629 = vadd.f32 %v4627, %v4628
          %v4630 = vsel %vm2465, %v4569, 0.0
          %v4631 = vadd.f32 %v4629, %v4630
          %v4632 = vsel %vm2465, %v4571, 0.0
          %v4633 = vadd.f32 %v4631, %v4632
          %v4634 = vsel %vm3926, %v4573, 0.0
          %v4635 = vadd.f32 %v4633, %v4634
          %v4636 = vrot.slane %v4635, 4
          %v4637 = vadd.f32 %v4635, %v4636
          %v4638 = vrot.slane %v4637, 2
          %v4639 = vadd.f32 %v4637, %v4638
          %v4640 = vrot.slane %v4639, 1
          %v4641 = vadd.f32 %v4639, %v4640
          %v4642 = vadd.f32 %v3954, %v4478
          %v4643 = vadd.f32 %v3978, %v4478
          %v4644 = vlog2.pop %v4598
          %v4645 = vmul.f32 %v4644, 0.6931472
          %v4646 = vlog2.pop %v4641
          %v4647 = vmul.f32 %v4646, 0.6931472
          %v4648 = vadd.f32 %v4642, %v4645
          %v4649 = vadd.f32 %v4643, %v4647
          %v4650 = vsub.f32 %v3850, %v4648
          %v4651 = vsub.f32 %v3851, %v4649
          %v4652 = vsel %vm2465, %v4651, -inf
          %v4653 = vmax.f32 %v4650, %v4652
          %4654 = vmax.xlane.f32.xlu0 %v4653
          %v4655 = vpop.xlane.xlu0 %4654
          %v4656 = vsub.f32 %v4650, %v4655
          %v4657 = vsub.f32 %v4651, %v4655
          %v4658 = vmul.f32 %v4656, 1.442695
          %v4659 = vpow.pop %v4658
          %v4660 = vmul.f32 %v4657, 1.442695
          %v4661 = vpow.pop %v4660
          %v4662 = vmul.f32 %v4018, %v4659
          %v4663 = vmul.f32 %v4020, %v4661
          %v4664 = vmul.f32 %v4022, %v4659
          %v4665 = vmul.f32 %v4024, %v4661
          %v4666 = vmul.f32 %v4026, %v4659
          %v4667 = vmul.f32 %v4028, %v4661
          %v4668 = vmul.f32 %v4030, %v4659
          %v4669 = vmul.f32 %v4032, %v4661
          %v4670 = vmul.f32 %v4034, %v4659
          %v4671 = vmul.f32 %v4036, %v4661
          %v4672 = vmul.f32 %v4038, %v4659
          %v4673 = vmul.f32 %v4040, %v4661
          %v4674 = vmul.f32 %v4042, %v4659
          %v4675 = vmul.f32 %v4044, %v4661
          %v4676 = vmul.f32 %v4046, %v4659
          %v4677 = vmul.f32 %v4048, %v4661
          %v4678 = vmul.f32 %v4050, %v4659
          %v4679 = vmul.f32 %v4052, %v4661
          %v4680 = vmul.f32 %v4054, %v4659
          %v4681 = vmul.f32 %v4056, %v4661
          %v4682 = vmul.f32 %v4058, %v4659
          %v4683 = vmul.f32 %v4060, %v4661
          %v4684 = vmul.f32 %v4062, %v4659
          %v4685 = vmul.f32 %v4064, %v4661
          %v4686 = vmul.f32 %v4066, %v4659
          %v4687 = vmul.f32 %v4068, %v4661
          %v4688 = vmul.f32 %v4070, %v4659
          %v4689 = vmul.f32 %v4072, %v4661
          %v4690 = vmul.f32 %v4074, %v4659
          %v4691 = vmul.f32 %v4076, %v4661
          %v4692 = vmul.f32 %v4078, %v4659
          %v4693 = vmul.f32 %v4080, %v4661
          %v4694 = vmul.f32 %v4082, %v4659
          %v4695 = vmul.f32 %v4084, %v4661
          %v4696 = vmul.f32 %v4086, %v4659
          %v4697 = vmul.f32 %v4088, %v4661
          %v4698 = vmul.f32 %v4090, %v4659
          %v4699 = vmul.f32 %v4092, %v4661
          %v4700 = vsel %vm2465, %v4663, 0.0
          %v4701 = vadd.f32 %v4662, %v4700
          %4702 = vadd.xlane.f32.xlu0 %v4701
          %v4703 = vpop.xlane.xlu0 %4702
          %v4704 = vsel %vm2465, %v4665, 0.0
          %v4705 = vadd.f32 %v4664, %v4704
          %4706 = vadd.xlane.f32.xlu0 %v4705
          %v4707 = vpop.xlane.xlu0 %4706
          %v4708 = vsel %vm2465, %v4667, 0.0
          %v4709 = vadd.f32 %v4666, %v4708
          %4710 = vadd.xlane.f32.xlu0 %v4709
          %v4711 = vpop.xlane.xlu0 %4710
          %v4712 = vsel %vm2465, %v4669, 0.0
          %v4713 = vadd.f32 %v4668, %v4712
          %4714 = vadd.xlane.f32.xlu0 %v4713
          %v4715 = vpop.xlane.xlu0 %4714
          %v4716 = vsel %vm2465, %v4671, 0.0
          %v4717 = vadd.f32 %v4670, %v4716
          %4718 = vadd.xlane.f32.xlu0 %v4717
          %v4719 = vpop.xlane.xlu0 %4718
          %v4720 = vsel %vm2465, %v4673, 0.0
          %v4721 = vadd.f32 %v4672, %v4720
          %4722 = vadd.xlane.f32.xlu0 %v4721
          %v4723 = vpop.xlane.xlu0 %4722
          %v4724 = vsel %vm2465, %v4675, 0.0
          %v4725 = vadd.f32 %v4674, %v4724
          %4726 = vadd.xlane.f32.xlu0 %v4725
          %v4727 = vpop.xlane.xlu0 %4726
          %v4728 = vsel %vm2465, %v4677, 0.0
          %v4729 = vadd.f32 %v4676, %v4728
          %4730 = vadd.xlane.f32.xlu0 %v4729
          %v4731 = vpop.xlane.xlu0 %4730
          %v4732 = vsel %vm2465, %v4679, 0.0
          %v4733 = vadd.f32 %v4678, %v4732
          %4734 = vadd.xlane.f32.xlu0 %v4733
          %v4735 = vpop.xlane.xlu0 %4734
          %v4736 = vsel %vm2465, %v4681, 0.0
          %v4737 = vadd.f32 %v4680, %v4736
          %4738 = vadd.xlane.f32.xlu0 %v4737
          %v4739 = vpop.xlane.xlu0 %4738
          %v4740 = vsel %vm2465, %v4683, 0.0
          %v4741 = vadd.f32 %v4682, %v4740
          %4742 = vadd.xlane.f32.xlu0 %v4741
          %v4743 = vpop.xlane.xlu0 %4742
          %v4744 = vsel %vm2465, %v4685, 0.0
          %v4745 = vadd.f32 %v4684, %v4744
          %4746 = vadd.xlane.f32.xlu0 %v4745
          %v4747 = vpop.xlane.xlu0 %4746
          %v4748 = vsel %vm2465, %v4687, 0.0
          %v4749 = vadd.f32 %v4686, %v4748
          %4750 = vadd.xlane.f32.xlu0 %v4749
          %v4751 = vpop.xlane.xlu0 %4750
          %v4752 = vsel %vm2465, %v4689, 0.0
          %v4753 = vadd.f32 %v4688, %v4752
          %4754 = vadd.xlane.f32.xlu0 %v4753
          %v4755 = vpop.xlane.xlu0 %4754
          %v4756 = vsel %vm2465, %v4691, 0.0
          %v4757 = vadd.f32 %v4690, %v4756
          %4758 = vadd.xlane.f32.xlu0 %v4757
          %v4759 = vpop.xlane.xlu0 %4758
          %v4760 = vsel %vm2465, %v4693, 0.0
          %v4761 = vadd.f32 %v4692, %v4760
          %4762 = vadd.xlane.f32.xlu0 %v4761
          %v4763 = vpop.xlane.xlu0 %4762
          %v4764 = vsel %vm2465, %v4695, 0.0
          %v4765 = vadd.f32 %v4694, %v4764
          %4766 = vadd.xlane.f32.xlu0 %v4765
          %v4767 = vpop.xlane.xlu0 %4766
          %v4768 = vsel %vm2465, %v4697, 0.0
          %v4769 = vadd.f32 %v4696, %v4768
          %4770 = vadd.xlane.f32.xlu0 %v4769
          %v4771 = vpop.xlane.xlu0 %4770
          %v4772 = vsel %vm3924, %v4698, 0.0
          %v4773 = vsel %vm3926, %v4699, 0.0
          %v4774 = vadd.f32 %v4772, %v4773
          %4775 = vadd.xlane.f32.xlu0 %v4774
          %v4776 = vpop.xlane.xlu0 %4775
          %v4777 = vadd.f32 %v3855, %v4655
          %v4778 = vadd.f32 %v3859, %v4655
          %v4779 = vadd.f32 %v3863, %v4655
          %v4780 = vadd.f32 %v3867, %v4655
          %v4781 = vadd.f32 %v3871, %v4655
          %v4782 = vadd.f32 %v3875, %v4655
          %v4783 = vadd.f32 %v3879, %v4655
          %v4784 = vadd.f32 %v3883, %v4655
          %v4785 = vadd.f32 %v3887, %v4655
          %v4786 = vadd.f32 %v3891, %v4655
          %v4787 = vadd.f32 %v3895, %v4655
          %v4788 = vadd.f32 %v3899, %v4655
          %v4789 = vadd.f32 %v3903, %v4655
          %v4790 = vadd.f32 %v3907, %v4655
          %v4791 = vadd.f32 %v3911, %v4655
          %v4792 = vadd.f32 %v3915, %v4655
          %v4793 = vadd.f32 %v3919, %v4655
          %v4794 = vadd.f32 %v3923, %v4655
          %v4795 = vadd.f32 %v3930, %v4655
          %v4796 = vlog2.pop %v4703
          %v4797 = vmul.f32 %v4796, 0.6931472
          %v4798 = vlog2.pop %v4707
          %v4799 = vmul.f32 %v4798, 0.6931472
          %v4800 = vlog2.pop %v4711
          %v4801 = vmul.f32 %v4800, 0.6931472
          %v4802 = vlog2.pop %v4715
          %v4803 = vmul.f32 %v4802, 0.6931472
          %v4804 = vlog2.pop %v4719
          %v4805 = vmul.f32 %v4804, 0.6931472
          %v4806 = vlog2.pop %v4723
          %v4807 = vmul.f32 %v4806, 0.6931472
          %v4808 = vlog2.pop %v4727
          %v4809 = vmul.f32 %v4808, 0.6931472
          %v4810 = vlog2.pop %v4731
          %v4811 = vmul.f32 %v4810, 0.6931472
          %v4812 = vlog2.pop %v4735
          %v4813 = vmul.f32 %v4812, 0.6931472
          %v4814 = vlog2.pop %v4739
          %v4815 = vmul.f32 %v4814, 0.6931472
          %v4816 = vlog2.pop %v4743
          %v4817 = vmul.f32 %v4816, 0.6931472
          %v4818 = vlog2.pop %v4747
          %v4819 = vmul.f32 %v4818, 0.6931472
          %v4820 = vlog2.pop %v4751
          %v4821 = vmul.f32 %v4820, 0.6931472
          %v4822 = vlog2.pop %v4755
          %v4823 = vmul.f32 %v4822, 0.6931472
          %v4824 = vlog2.pop %v4759
          %v4825 = vmul.f32 %v4824, 0.6931472
          %v4826 = vlog2.pop %v4763
          %v4827 = vmul.f32 %v4826, 0.6931472
          %v4828 = vlog2.pop %v4767
          %v4829 = vmul.f32 %v4828, 0.6931472
          %v4830 = vlog2.pop %v4771
          %v4831 = vmul.f32 %v4830, 0.6931472
          %v4832 = vlog2.pop %v4776
          %v4833 = vmul.f32 %v4832, 0.6931472
          %v4834 = vadd.f32 %v4777, %v4797
          %v4835 = vadd.f32 %v4778, %v4799
          %v4836 = vadd.f32 %v4779, %v4801
          %v4837 = vadd.f32 %v4780, %v4803
          %v4838 = vadd.f32 %v4781, %v4805
          %v4839 = vadd.f32 %v4782, %v4807
          %v4840 = vadd.f32 %v4783, %v4809
          %v4841 = vadd.f32 %v4784, %v4811
          %v4842 = vadd.f32 %v4785, %v4813
          %v4843 = vadd.f32 %v4786, %v4815
          %v4844 = vadd.f32 %v4787, %v4817
          %v4845 = vadd.f32 %v4788, %v4819
          %v4846 = vadd.f32 %v4789, %v4821
          %v4847 = vadd.f32 %v4790, %v4823
          %v4848 = vadd.f32 %v4791, %v4825
          %v4849 = vadd.f32 %v4792, %v4827
          %v4850 = vadd.f32 %v4793, %v4829
          %v4851 = vadd.f32 %v4794, %v4831
          %v4852 = vadd.f32 %v4795, %v4833
          %v4853 = vsub.f32 %v3829, %v4834
          %v4854 = vsub.f32 %v3830, %v4835
          %v4855 = vsub.f32 %v3831, %v4836
          %v4856 = vsub.f32 %v3832, %v4837
          %v4857 = vsub.f32 %v3833, %v4838
          %v4858 = vsub.f32 %v3834, %v4839
          %v4859 = vsub.f32 %v3835, %v4840
          %v4860 = vsub.f32 %v3836, %v4841
          %v4861 = vsub.f32 %v3837, %v4842
          %v4862 = vsub.f32 %v3838, %v4843
          %v4863 = vsub.f32 %v3839, %v4844
          %v4864 = vsub.f32 %v3840, %v4845
          %v4865 = vsub.f32 %v3841, %v4846
          %v4866 = vsub.f32 %v3842, %v4847
          %v4867 = vsub.f32 %v3843, %v4848
          %v4868 = vsub.f32 %v3844, %v4849
          %v4869 = vsub.f32 %v3845, %v4850
          %v4870 = vsub.f32 %v3846, %v4851
          %v4871 = vsub.f32 %v3847, %v4852
          %v4872 = vmax.f32 %v4853, %v4857
          %v4873 = vmax.f32 %v4854, %v4858
          %v4874 = vmax.f32 %v4855, %v4859
          %v4875 = vmax.f32 %v4856, %v4860
          %v4876 = vmax.f32 %v4872, %v4861
          %v4877 = vmax.f32 %v4873, %v4862
          %v4878 = vmax.f32 %v4874, %v4863
          %v4879 = vmax.f32 %v4875, %v4864
          %v4880 = vmax.f32 %v4876, %v4865
          %v4881 = vmax.f32 %v4877, %v4866
          %v4882 = vmax.f32 %v4878, %v4867
          %v4883 = vmax.f32 %v4879, %v4868
          %v4884 = vmax.f32 %v4880, %v4869
          %v4885 = vmax.f32 %v4881, %v4870
          %v4886 = vsel %vm3924, %v4871, -inf
          %v4887 = vmax.f32 %v4882, %v4886
          %v4888 = vmax.f32 %v4884, %v4885
          %v4889 = vmax.f32 %v4887, %v4883
          %v4890 = vmax.f32 %v4888, %v4889
          %v4891 = vrot.slane %v4890, 4
          %v4892 = vmax.f32 %v4890, %v4891
          %v4893 = vrot.slane %v4892, 2
          %v4894 = vmax.f32 %v4892, %v4893
          %v4895 = vrot.slane %v4894, 1
          %v4896 = vmax.f32 %v4894, %v4895
          %v4897 = vsub.f32 %v4853, %v4896
          %v4898 = vsub.f32 %v4854, %v4896
          %v4899 = vsub.f32 %v4855, %v4896
          %v4900 = vsub.f32 %v4856, %v4896
          %v4901 = vsub.f32 %v4857, %v4896
          %v4902 = vsub.f32 %v4858, %v4896
          %v4903 = vsub.f32 %v4859, %v4896
          %v4904 = vsub.f32 %v4860, %v4896
          %v4905 = vsub.f32 %v4861, %v4896
          %v4906 = vsub.f32 %v4862, %v4896
          %v4907 = vsub.f32 %v4863, %v4896
          %v4908 = vsub.f32 %v4864, %v4896
          %v4909 = vsub.f32 %v4865, %v4896
          %v4910 = vsub.f32 %v4866, %v4896
          %v4911 = vsub.f32 %v4867, %v4896
          %v4912 = vsub.f32 %v4868, %v4896
          %v4913 = vsub.f32 %v4869, %v4896
          %v4914 = vsub.f32 %v4870, %v4896
          %v4915 = vsub.f32 %v4871, %v4896
          %v4916 = vmul.f32 %v4897, 1.442695
          %v4917 = vpow.pop %v4916
          %v4918 = vmul.f32 %v4898, 1.442695
          %v4919 = vpow.pop %v4918
          %v4920 = vmul.f32 %v4899, 1.442695
          %v4921 = vpow.pop %v4920
          %v4922 = vmul.f32 %v4900, 1.442695
          %v4923 = vpow.pop %v4922
          %v4924 = vmul.f32 %v4901, 1.442695
          %v4925 = vpow.pop %v4924
          %v4926 = vmul.f32 %v4902, 1.442695
          %v4927 = vpow.pop %v4926
          %v4928 = vmul.f32 %v4903, 1.442695
          %v4929 = vpow.pop %v4928
          %v4930 = vmul.f32 %v4904, 1.442695
          %v4931 = vpow.pop %v4930
          %v4932 = vmul.f32 %v4905, 1.442695
          %v4933 = vpow.pop %v4932
          %v4934 = vmul.f32 %v4906, 1.442695
          %v4935 = vpow.pop %v4934
          %v4936 = vmul.f32 %v4907, 1.442695
          %v4937 = vpow.pop %v4936
          %v4938 = vmul.f32 %v4908, 1.442695
          %v4939 = vpow.pop %v4938
          %v4940 = vmul.f32 %v4909, 1.442695
          %v4941 = vpow.pop %v4940
          %v4942 = vmul.f32 %v4910, 1.442695
          %v4943 = vpow.pop %v4942
          %v4944 = vmul.f32 %v4911, 1.442695
          %v4945 = vpow.pop %v4944
          %v4946 = vmul.f32 %v4912, 1.442695
          %v4947 = vpow.pop %v4946
          %v4948 = vmul.f32 %v4913, 1.442695
          %v4949 = vpow.pop %v4948
          %v4950 = vmul.f32 %v4914, 1.442695
          %v4951 = vpow.pop %v4950
          %v4952 = vmul.f32 %v4915, 1.442695
          %v4953 = vpow.pop %v4952
          %v4954 = vmul.f32 %v4132, %v4917
          %v4955 = vmul.f32 %v4134, %v4917
          %v4956 = vmul.f32 %v4136, %v4919
          %v4957 = vmul.f32 %v4138, %v4919
          %v4958 = vmul.f32 %v4140, %v4921
          %v4959 = vmul.f32 %v4142, %v4921
          %v4960 = vmul.f32 %v4144, %v4923
          %v4961 = vmul.f32 %v4146, %v4923
          %v4962 = vmul.f32 %v4148, %v4925
          %v4963 = vmul.f32 %v4150, %v4925
          %v4964 = vmul.f32 %v4152, %v4927
          %v4965 = vmul.f32 %v4154, %v4927
          %v4966 = vmul.f32 %v4156, %v4929
          %v4967 = vmul.f32 %v4158, %v4929
          %v4968 = vmul.f32 %v4160, %v4931
          %v4969 = vmul.f32 %v4162, %v4931
          %v4970 = vmul.f32 %v4164, %v4933
          %v4971 = vmul.f32 %v4166, %v4933
          %v4972 = vmul.f32 %v4168, %v4935
          %v4973 = vmul.f32 %v4170, %v4935
          %v4974 = vmul.f32 %v4172, %v4937
          %v4975 = vmul.f32 %v4174, %v4937
          %v4976 = vmul.f32 %v4176, %v4939
          %v4977 = vmul.f32 %v4178, %v4939
          %v4978 = vmul.f32 %v4180, %v4941
          %v4979 = vmul.f32 %v4182, %v4941
          %v4980 = vmul.f32 %v4184, %v4943
          %v4981 = vmul.f32 %v4186, %v4943
          %v4982 = vmul.f32 %v4188, %v4945
          %v4983 = vmul.f32 %v4190, %v4945
          %v4984 = vmul.f32 %v4192, %v4947
          %v4985 = vmul.f32 %v4194, %v4947
          %v4986 = vmul.f32 %v4196, %v4949
          %v4987 = vmul.f32 %v4198, %v4949
          %v4988 = vmul.f32 %v4200, %v4951
          %v4989 = vmul.f32 %v4202, %v4951
          %v4990 = vmul.f32 %v4204, %v4953
          %v4991 = vmul.f32 %v4206, %v4953
          %v4992 = vadd.f32 %v4954, %v4956
          %v4993 = vadd.f32 %v4992, %v4958
          %v4994 = vadd.f32 %v4993, %v4960
          %v4995 = vadd.f32 %v4994, %v4962
          %v4996 = vadd.f32 %v4995, %v4964
          %v4997 = vadd.f32 %v4996, %v4966
          %v4998 = vadd.f32 %v4997, %v4968
          %v4999 = vadd.f32 %v4998, %v4970
          %v5000 = vadd.f32 %v4999, %v4972
          %v5001 = vadd.f32 %v5000, %v4974
          %v5002 = vadd.f32 %v5001, %v4976
          %v5003 = vadd.f32 %v5002, %v4978
          %v5004 = vadd.f32 %v5003, %v4980
          %v5005 = vadd.f32 %v5004, %v4982
          %v5006 = vadd.f32 %v5005, %v4984
          %v5007 = vadd.f32 %v5006, %v4986
          %v5008 = vadd.f32 %v5007, %v4988
          %v5009 = vsel %vm3924, %v4990, 0.0
          %v5010 = vadd.f32 %v5008, %v5009
          %v5011 = vrot.slane %v5010, 4
          %v5012 = vadd.f32 %v5010, %v5011
          %v5013 = vrot.slane %v5012, 2
          %v5014 = vadd.f32 %v5012, %v5013
          %v5015 = vrot.slane %v5014, 1
          %v5016 = vadd.f32 %v5014, %v5015
          %v5017 = vsel %vm2465, %v4955, 0.0
          %v5018 = vsel %vm2465, %v4957, 0.0
          %v5019 = vadd.f32 %v5017, %v5018
          %v5020 = vsel %vm2465, %v4959, 0.0
          %v5021 = vadd.f32 %v5019, %v5020
          %v5022 = vsel %vm2465, %v4961, 0.0
          %v5023 = vadd.f32 %v5021, %v5022
          %v5024 = vsel %vm2465, %v4963, 0.0
          %v5025 = vadd.f32 %v5023, %v5024
          %v5026 = vsel %vm2465, %v4965, 0.0
          %v5027 = vadd.f32 %v5025, %v5026
          %v5028 = vsel %vm2465, %v4967, 0.0
          %v5029 = vadd.f32 %v5027, %v5028
          %v5030 = vsel %vm2465, %v4969, 0.0
          %v5031 = vadd.f32 %v5029, %v5030
          %v5032 = vsel %vm2465, %v4971, 0.0
          %v5033 = vadd.f32 %v5031, %v5032
          %v5034 = vsel %vm2465, %v4973, 0.0
          %v5035 = vadd.f32 %v5033, %v5034
          %v5036 = vsel %vm2465, %v4975, 0.0
          %v5037 = vadd.f32 %v5035, %v5036
          %v5038 = vsel %vm2465, %v4977, 0.0
          %v5039 = vadd.f32 %v5037, %v5038
          %v5040 = vsel %vm2465, %v4979, 0.0
          %v5041 = vadd.f32 %v5039, %v5040
          %v5042 = vsel %vm2465, %v4981, 0.0
          %v5043 = vadd.f32 %v5041, %v5042
          %v5044 = vsel %vm2465, %v4983, 0.0
          %v5045 = vadd.f32 %v5043, %v5044
          %v5046 = vsel %vm2465, %v4985, 0.0
          %v5047 = vadd.f32 %v5045, %v5046
          %v5048 = vsel %vm2465, %v4987, 0.0
          %v5049 = vadd.f32 %v5047, %v5048
          %v5050 = vsel %vm2465, %v4989, 0.0
          %v5051 = vadd.f32 %v5049, %v5050
          %v5052 = vsel %vm3926, %v4991, 0.0
          %v5053 = vadd.f32 %v5051, %v5052
          %v5054 = vrot.slane %v5053, 4
          %v5055 = vadd.f32 %v5053, %v5054
          %v5056 = vrot.slane %v5055, 2
          %v5057 = vadd.f32 %v5055, %v5056
          %v5058 = vrot.slane %v5057, 1
          %v5059 = vadd.f32 %v5057, %v5058
          %v5060 = vadd.f32 %v3954, %v4896
          %v5061 = vadd.f32 %v3978, %v4896
          %v5062 = vlog2.pop %v5016
          %v5063 = vmul.f32 %v5062, 0.6931472
          %v5064 = vlog2.pop %v5059
          %v5065 = vmul.f32 %v5064, 0.6931472
          %v5066 = vadd.f32 %v5060, %v5063
          %v5067 = vadd.f32 %v5061, %v5065
          %v5068 = vsub.f32 %v3850, %v5066
          %v5069 = vsub.f32 %v3851, %v5067
        $region53: #{second_layer_head.1} parent=47 // loop_footer
          %s4212 = sadd.s32 1, %s4208
        $region54: #{second_layer_head.1} parent=47 // loop_footer_branch
          %4207 = sbr.rel target = $region50
        $region55: #{second_layer_head.1} parent=47 // loop_exit
          _
        %v5070 = vsub.f32 %v4213, -5.6629605
        %v5071 = vsub.f32 %v4214, -5.6629605
        %v5072 = vsub.f32 %v4215, -5.6629605
        %v5073 = vsub.f32 %v4216, -5.6629605
        %v5074 = vsub.f32 %v4217, -5.6629605
        %v5075 = vsub.f32 %v4218, -5.6629605
        %v5076 = vsub.f32 %v4219, -5.6629605
        %v5077 = vsub.f32 %v4220, -5.6629605
        %v5078 = vsub.f32 %v4221, -5.6629605
        %v5079 = vsub.f32 %v4222, -5.6629605
        %v5080 = vsub.f32 %v4223, -5.6629605
        %v5081 = vsub.f32 %v4224, -5.6629605
        %v5082 = vsub.f32 %v4225, -5.6629605
        %v5083 = vsub.f32 %v4226, -5.6629605
        %v5084 = vsub.f32 %v4227, -5.6629605
        %v5085 = vsub.f32 %v4228, -5.6629605
        %v5086 = vsub.f32 %v4229, -5.6629605
        %v5087 = vsub.f32 %v4230, -5.6629605
        %v5088 = vsub.f32 %v4231, -5.6629605
        %v5089 = vsel %vm3810, 1, 0
        %v5090 = vsel %vm3811, 1, 0
        %v5091 = vsel %vm3812, 1, 0
        %v5092 = vsel %vm3813, 1, 0
        %v5093 = vsel %vm3814, 1, 0
        %v5094 = vsel %vm3815, 1, 0
        %v5095 = vsel %vm3816, 1, 0
        %v5096 = vsel %vm3817, 1, 0
        %v5097 = vsel %vm3818, 1, 0
        %v5098 = vsel %vm3819, 1, 0
        %v5099 = vsel %vm3820, 1, 0
        %v5100 = vsel %vm3821, 1, 0
        %v5101 = vsel %vm3822, 1, 0
        %v5102 = vsel %vm3823, 1, 0
        %v5103 = vsel %vm3824, 1, 0
        %v5104 = vsel %vm3825, 1, 0
        %v5105 = vsel %vm3826, 1, 0
        %v5106 = vsel %vm3827, 1, 0
        %v5107 = vsel %vm3828, 1, 0
        %v5108 = vcvt.s32.f32 %v5089
        %v5109 = vcvt.s32.f32 %v5090
        %v5110 = vcvt.s32.f32 %v5091
        %v5111 = vcvt.s32.f32 %v5092
        %v5112 = vcvt.s32.f32 %v5093
        %v5113 = vcvt.s32.f32 %v5094
        %v5114 = vcvt.s32.f32 %v5095
        %v5115 = vcvt.s32.f32 %v5096
        %v5116 = vcvt.s32.f32 %v5097
        %v5117 = vcvt.s32.f32 %v5098
        %v5118 = vcvt.s32.f32 %v5099
        %v5119 = vcvt.s32.f32 %v5100
        %v5120 = vcvt.s32.f32 %v5101
        %v5121 = vcvt.s32.f32 %v5102
        %v5122 = vcvt.s32.f32 %v5103
        %v5123 = vcvt.s32.f32 %v5104
        %v5124 = vcvt.s32.f32 %v5105
        %v5125 = vcvt.s32.f32 %v5106
        %v5126 = vcvt.s32.f32 %v5107
        %v5127 = vmul.f32 %v5108, 0.6931472
        %v5128 = vmul.f32 %v5109, 0.6931472
        %v5129 = vmul.f32 %v5110, 0.6931472
        %v5130 = vmul.f32 %v5111, 0.6931472
        %v5131 = vmul.f32 %v5112, 0.6931472
        %v5132 = vmul.f32 %v5113, 0.6931472
        %v5133 = vmul.f32 %v5114, 0.6931472
        %v5134 = vmul.f32 %v5115, 0.6931472
        %v5135 = vmul.f32 %v5116, 0.6931472
        %v5136 = vmul.f32 %v5117, 0.6931472
        %v5137 = vmul.f32 %v5118, 0.6931472
        %v5138 = vmul.f32 %v5119, 0.6931472
        %v5139 = vmul.f32 %v5120, 0.6931472
        %v5140 = vmul.f32 %v5121, 0.6931472
        %v5141 = vmul.f32 %v5122, 0.6931472
        %v5142 = vmul.f32 %v5123, 0.6931472
        %v5143 = vmul.f32 %v5124, 0.6931472
        %v5144 = vmul.f32 %v5125, 0.6931472
        %v5145 = vmul.f32 %v5126, 0.6931472
        %v5146 = vadd.f32 %v5070, %v5127
        %v5147 = vadd.f32 %v5071, %v5128
        %v5148 = vadd.f32 %v5072, %v5129
        %v5149 = vadd.f32 %v5073, %v5130
        %v5150 = vadd.f32 %v5074, %v5131
        %v5151 = vadd.f32 %v5075, %v5132
        %v5152 = vadd.f32 %v5076, %v5133
        %v5153 = vadd.f32 %v5077, %v5134
        %v5154 = vadd.f32 %v5078, %v5135
        %v5155 = vadd.f32 %v5079, %v5136
        %v5156 = vadd.f32 %v5080, %v5137
        %v5157 = vadd.f32 %v5081, %v5138
        %v5158 = vadd.f32 %v5082, %v5139
        %v5159 = vadd.f32 %v5083, %v5140
        %v5160 = vadd.f32 %v5084, %v5141
        %v5161 = vadd.f32 %v5085, %v5142
        %v5162 = vadd.f32 %v5086, %v5143
        %v5163 = vadd.f32 %v5087, %v5144
        %v5164 = vadd.f32 %v5088, %v5145
        %v5165 = vsel %vm3848, 1, 0
        %v5166 = vsel %vm3849, 1, 0
        %v5167 = vcvt.s32.f32 %v5165
        %v5168 = vcvt.s32.f32 %v5166
        %v5169 = vmul.f32 %v5167, 0.6931472
        %v5170 = vmul.f32 %v5168, 0.6931472
        %v5171 = vadd.f32 %v4232, %v5169
        %v5172 = vadd.f32 %v4233, %v5170
        %v5173 = vadd.f32 %v3749, %v5146
        %v5174 = vadd.f32 %v3750, %v5146
        %v5175 = vadd.f32 %v3751, %v5147
        %v5176 = vadd.f32 %v3752, %v5147
        %v5177 = vadd.f32 %v3753, %v5148
        %v5178 = vadd.f32 %v3754, %v5148
        %v5179 = vadd.f32 %v3755, %v5149
        %v5180 = vadd.f32 %v3756, %v5149
        %v5181 = vadd.f32 %v3757, %v5150
        %v5182 = vadd.f32 %v3758, %v5150
        %v5183 = vadd.f32 %v3759, %v5151
        %v5184 = vadd.f32 %v3760, %v5151
        %v5185 = vadd.f32 %v3761, %v5152
        %v5186 = vadd.f32 %v3762, %v5152
        %v5187 = vadd.f32 %v3763, %v5153
        %v5188 = vadd.f32 %v3764, %v5153
        %v5189 = vadd.f32 %v3765, %v5154
        %v5190 = vadd.f32 %v3766, %v5154
        %v5191 = vadd.f32 %v3767, %v5155
        %v5192 = vadd.f32 %v3768, %v5155
        %v5193 = vadd.f32 %v3769, %v5156
        %v5194 = vadd.f32 %v3770, %v5156
        %v5195 = vadd.f32 %v3771, %v5157
        %v5196 = vadd.f32 %v3772, %v5157
        %v5197 = vadd.f32 %v3773, %v5158
        %v5198 = vadd.f32 %v3774, %v5158
        %v5199 = vadd.f32 %v3775, %v5159
        %v5200 = vadd.f32 %v3776, %v5159
        %v5201 = vadd.f32 %v3777, %v5160
        %v5202 = vadd.f32 %v3778, %v5160
        %v5203 = vadd.f32 %v3779, %v5161
        %v5204 = vadd.f32 %v3780, %v5161
        %v5205 = vadd.f32 %v3781, %v5162
        %v5206 = vadd.f32 %v3782, %v5162
        %v5207 = vadd.f32 %v3783, %v5163
        %v5208 = vadd.f32 %v3784, %v5163
        %v5209 = vadd.f32 %v3785, %v5164
        %v5210 = vadd.f32 %v3786, %v5164
        %v5211 = vadd.f32 %v5173, %v5171
        %v5212 = vadd.f32 %v5174, %v5172
        %v5213 = vadd.f32 %v5175, %v5171
        %v5214 = vadd.f32 %v5176, %v5172
        %v5215 = vadd.f32 %v5177, %v5171
        %v5216 = vadd.f32 %v5178, %v5172
        %v5217 = vadd.f32 %v5179, %v5171
        %v5218 = vadd.f32 %v5180, %v5172
        %v5219 = vadd.f32 %v5181, %v5171
        %v5220 = vadd.f32 %v5182, %v5172
        %v5221 = vadd.f32 %v5183, %v5171
        %v5222 = vadd.f32 %v5184, %v5172
        %v5223 = vadd.f32 %v5185, %v5171
        %v5224 = vadd.f32 %v5186, %v5172
        %v5225 = vadd.f32 %v5187, %v5171
        %v5226 = vadd.f32 %v5188, %v5172
        %v5227 = vadd.f32 %v5189, %v5171
        %v5228 = vadd.f32 %v5190, %v5172
        %v5229 = vadd.f32 %v5191, %v5171
        %v5230 = vadd.f32 %v5192, %v5172
        %v5231 = vadd.f32 %v5193, %v5171
        %v5232 = vadd.f32 %v5194, %v5172
        %v5233 = vadd.f32 %v5195, %v5171
        %v5234 = vadd.f32 %v5196, %v5172
        %v5235 = vadd.f32 %v5197, %v5171
        %v5236 = vadd.f32 %v5198, %v5172
        %v5237 = vadd.f32 %v5199, %v5171
        %v5238 = vadd.f32 %v5200, %v5172
        %v5239 = vadd.f32 %v5201, %v5171
        %v5240 = vadd.f32 %v5202, %v5172
        %v5241 = vadd.f32 %v5203, %v5171
        %v5242 = vadd.f32 %v5204, %v5172
        %v5243 = vadd.f32 %v5205, %v5171
        %v5244 = vadd.f32 %v5206, %v5172
        %v5245 = vadd.f32 %v5207, %v5171
        %v5246 = vadd.f32 %v5208, %v5172
        %v5247 = vadd.f32 %v5209, %v5171
        %v5248 = vadd.f32 %v5210, %v5172
        %5249 = vst [vmem:[%s366] sm:$0xff] %v5211
        %5250 = vst.msk [vmem:[%s366 + $0x8] sm:$0xff] %vm2465, %v5212
        %5251 = vst [vmem:[%s366 + $0x10] sm:$0xff] %v5213
        %5252 = vst.msk [vmem:[%s366 + $0x18] sm:$0xff] %vm2465, %v5214
        %5253 = vst [vmem:[%s366 + $0x20] sm:$0xff] %v5215
        %5254 = vst.msk [vmem:[%s366 + $0x28] sm:$0xff] %vm2465, %v5216
        %5255 = vst [vmem:[%s366 + $0x30] sm:$0xff] %v5217
        %5256 = vst.msk [vmem:[%s366 + $0x38] sm:$0xff] %vm2465, %v5218
        %5257 = vst [vmem:[%s366 + $0x40] sm:$0xff] %v5219
        %5258 = vst.msk [vmem:[%s366 + $0x48] sm:$0xff] %vm2465, %v5220
        %5259 = vst [vmem:[%s366 + $0x50] sm:$0xff] %v5221
        %5260 = vst.msk [vmem:[%s366 + $0x58] sm:$0xff] %vm2465, %v5222
        %5261 = vst [vmem:[%s366 + $0x60] sm:$0xff] %v5223
        %5262 = vst.msk [vmem:[%s366 + $0x68] sm:$0xff] %vm2465, %v5224
        %5263 = vst [vmem:[%s366 + $0x70] sm:$0xff] %v5225
        %5264 = vst.msk [vmem:[%s366 + $0x78] sm:$0xff] %vm2465, %v5226
        %5265 = vst [vmem:[%s366 + $0x80] sm:$0xff] %v5227
        %5266 = vst.msk [vmem:[%s366 + $0x88] sm:$0xff] %vm2465, %v5228
        %5267 = vst [vmem:[%s366 + $0x90] sm:$0xff] %v5229
        %5268 = vst.msk [vmem:[%s366 + $0x98] sm:$0xff] %vm2465, %v5230
        %5269 = vst [vmem:[%s366 + $0xa0] sm:$0xff] %v5231
        %5270 = vst.msk [vmem:[%s366 + $0xa8] sm:$0xff] %vm2465, %v5232
        %5271 = vst [vmem:[%s366 + $0xb0] sm:$0xff] %v5233
        %5272 = vst.msk [vmem:[%s366 + $0xb8] sm:$0xff] %vm2465, %v5234
        %5273 = vst [vmem:[%s366 + $0xc0] sm:$0xff] %v5235
        %5274 = vst.msk [vmem:[%s366 + $0xc8] sm:$0xff] %vm2465, %v5236
        %5275 = vst [vmem:[%s366 + $0xd0] sm:$0xff] %v5237
        %5276 = vst.msk [vmem:[%s366 + $0xd8] sm:$0xff] %vm2465, %v5238
        %5277 = vst [vmem:[%s366 + $0xe0] sm:$0xff] %v5239
        %5278 = vst.msk [vmem:[%s366 + $0xe8] sm:$0xff] %vm2465, %v5240
        %5279 = vst [vmem:[%s366 + $0xf0] sm:$0xff] %v5241
        %5280 = vst.msk [vmem:[%s366 + $0xf8] sm:$0xff] %vm2465, %v5242
        %5281 = vst [vmem:[%s366 + $0x100] sm:$0xff] %v5243
        %5282 = vst.msk [vmem:[%s366 + $0x108] sm:$0xff] %vm2465, %v5244
        %5283 = vst [vmem:[%s366 + $0x110] sm:$0xff] %v5245
        %5284 = vst.msk [vmem:[%s366 + $0x118] sm:$0xff] %vm2465, %v5246
        %5285 = vst [vmem:[%s366 + $0x120] sm:$0x1] %v5247
        %5286 = vst.msk [vmem:[%s366 + $0x128] sm:$0x1] %vm3926, %v5248
        %p5287 = scmp.lt.s32.totalorder %s21, 1
        %s5288 = scalar_select %p5287, %s21, 1
        %s5289 = smul.addr %s5288, 38
        %s5290 = smul.addr %s5289, 8
        %s5291 = scalar_lea.vmem %s7, %s5290
        %s5292 = sand.u32 %s212, 1
        %s5293 = sand.u32 %s212, 1
        %s5294 = smul.addr %s5293, 1056
        %s5295 = scalar_lea.vmem [#allocation2], %s5294
        %p5296 = scmp.lt.s32.totalorder %s21, 1
        %s5297 = scalar_select %p5296, %s21, 1
        %s5298 = smul.addr %s5297, 2
        %s5299 = smul.addr %s5298, 4
        %s5300 = scalar_lea.vmem %s9, %s5299
        // Predicated region
        $region56: #{second_layer_head.1} parent=47 // pred_check
          %p5301 = pneg %p196
        $region57: #{second_layer_head.1} parent=47 // pred_check_branch
          %5303 = sbr.rel (%p5301) target = $region59
        $region58: #{second_layer_head.1} parent=47 // pred_region
          _
        $region59: #{second_layer_head.1} parent=47 // pred_fallthru
          _
        // Predicated region
        $region60: #{second_layer_head.1} parent=47 // pred_check
          %p5304 = pneg %p222
        $region61: #{second_layer_head.1} parent=47 // pred_check_branch
          %5306 = sbr.rel (%p5304) target = $region63
        $region62: #{second_layer_head.1} parent=47 // pred_region
          %s5307 = smul.addr %s21, 66
          %s5308 = smul.addr %s5307, 8
          %s5309 = scalar_lea.vmem %s8, %s5308
          // Predicated region
          $region64: #{second_layer_head.1} parent=62 // pred_check
            _
          $region65: #{second_layer_head.1} parent=62 // pred_check_branch
            %5311 = sbr.rel (0) target = $region67
          $region66: #{second_layer_head.1} parent=62 // pred_region
            // Predicated region
            $region68: #{second_layer_head.1} parent=66 // pred_check
              _
            $region69: #{second_layer_head.1} parent=66 // pred_check_branch
              %5313 = sbr.rel (0) target = $region71
            $region70: #{second_layer_head.1} parent=66 // pred_region
              loop: start=0, step=1, limit=1
              $region72: #{second_layer_head.1} parent=70 // loop_pre_header
                _
              $region73: #{second_layer_head.1} parent=70 // loop_header
                %s5315 = sphi 0, %s5319
                %p5316 = scmp.ge.s32.totalorder %s5315, 1
                %s5320 = sphi %s5295, %s5295
                %s5321 = sphi %s5309, %s5309
              $region74: #{second_layer_head.1} parent=70 // loop_header_branch
                %5318 = sbr.rel (%p5316) target = $region78
              $region75: #{second_layer_head.1} parent=70 // loop_body
                %v5322 = vld [vmem:[%s5320] sm:$0xff]
                %5323 = vst [vmem:[%s5321] sm:$0xff] %v5322
                %v5324 = vld [vmem:[%s5320 + $0x8] sm:$0xff]
                %5325 = vst [vmem:[%s5321 + $0x8] sm:$0xff] %v5324
                %v5326 = vld [vmem:[%s5320 + $0x10] sm:$0xff]
                %5327 = vst [vmem:[%s5321 + $0x10] sm:$0xff] %v5326
                %v5328 = vld [vmem:[%s5320 + $0x18] sm:$0xff]
                %5329 = vst [vmem:[%s5321 + $0x18] sm:$0xff] %v5328
                %v5330 = vld [vmem:[%s5320 + $0x20] sm:$0xff]
                %5331 = vst [vmem:[%s5321 + $0x20] sm:$0xff] %v5330
                %v5332 = vld [vmem:[%s5320 + $0x28] sm:$0xff]
                %5333 = vst [vmem:[%s5321 + $0x28] sm:$0xff] %v5332
                %v5334 = vld [vmem:[%s5320 + $0x30] sm:$0xff]
                %5335 = vst [vmem:[%s5321 + $0x30] sm:$0xff] %v5334
                %v5336 = vld [vmem:[%s5320 + $0x38] sm:$0xff]
                %5337 = vst [vmem:[%s5321 + $0x38] sm:$0xff] %v5336
                %v5338 = vld [vmem:[%s5320 + $0x40] sm:$0xff]
                %5339 = vst [vmem:[%s5321 + $0x40] sm:$0xff] %v5338
                %v5340 = vld [vmem:[%s5320 + $0x48] sm:$0xff]
                %5341 = vst [vmem:[%s5321 + $0x48] sm:$0xff] %v5340
                %v5342 = vld [vmem:[%s5320 + $0x50] sm:$0xff]
                %5343 = vst [vmem:[%s5321 + $0x50] sm:$0xff] %v5342
                %v5344 = vld [vmem:[%s5320 + $0x58] sm:$0xff]
                %5345 = vst [vmem:[%s5321 + $0x58] sm:$0xff] %v5344
                %v5346 = vld [vmem:[%s5320 + $0x60] sm:$0xff]
                %5347 = vst [vmem:[%s5321 + $0x60] sm:$0xff] %v5346
                %v5348 = vld [vmem:[%s5320 + $0x68] sm:$0xff]
                %5349 = vst [vmem:[%s5321 + $0x68] sm:$0xff] %v5348
                %v5350 = vld [vmem:[%s5320 + $0x70] sm:$0xff]
                %5351 = vst [vmem:[%s5321 + $0x70] sm:$0xff] %v5350
                %v5352 = vld [vmem:[%s5320 + $0x78] sm:$0xff]
                %5353 = vst [vmem:[%s5321 + $0x78] sm:$0xff] %v5352
                %v5354 = vld [vmem:[%s5320 + $0x80] sm:$0xff]
                %5355 = vst [vmem:[%s5321 + $0x80] sm:$0xff] %v5354
                %v5356 = vld [vmem:[%s5320 + $0x88] sm:$0xff]
                %5357 = vst [vmem:[%s5321 + $0x88] sm:$0xff] %v5356
                %v5358 = vld [vmem:[%s5320 + $0x90] sm:$0xff]
                %5359 = vst [vmem:[%s5321 + $0x90] sm:$0xff] %v5358
                %v5360 = vld [vmem:[%s5320 + $0x98] sm:$0xff]
                %5361 = vst [vmem:[%s5321 + $0x98] sm:$0xff] %v5360
                %v5362 = vld [vmem:[%s5320 + $0xa0] sm:$0xff]
                %5363 = vst [vmem:[%s5321 + $0xa0] sm:$0xff] %v5362
                %v5364 = vld [vmem:[%s5320 + $0xa8] sm:$0xff]
                %5365 = vst [vmem:[%s5321 + $0xa8] sm:$0xff] %v5364
                %v5366 = vld [vmem:[%s5320 + $0xb0] sm:$0xff]
                %5367 = vst [vmem:[%s5321 + $0xb0] sm:$0xff] %v5366
                %v5368 = vld [vmem:[%s5320 + $0xb8] sm:$0xff]
                %5369 = vst [vmem:[%s5321 + $0xb8] sm:$0xff] %v5368
                %v5370 = vld [vmem:[%s5320 + $0xc0] sm:$0xff]
                %5371 = vst [vmem:[%s5321 + $0xc0] sm:$0xff] %v5370
                %v5372 = vld [vmem:[%s5320 + $0xc8] sm:$0xff]
                %5373 = vst [vmem:[%s5321 + $0xc8] sm:$0xff] %v5372
                %v5374 = vld [vmem:[%s5320 + $0xd0] sm:$0xff]
                %5375 = vst [vmem:[%s5321 + $0xd0] sm:$0xff] %v5374
                %v5376 = vld [vmem:[%s5320 + $0xd8] sm:$0xff]
                %5377 = vst [vmem:[%s5321 + $0xd8] sm:$0xff] %v5376
                %v5378 = vld [vmem:[%s5320 + $0xe0] sm:$0xff]
                %5379 = vst [vmem:[%s5321 + $0xe0] sm:$0xff] %v5378
                %v5380 = vld [vmem:[%s5320 + $0xe8] sm:$0xff]
                %5381 = vst [vmem:[%s5321 + $0xe8] sm:$0xff] %v5380
                %v5382 = vld [vmem:[%s5320 + $0xf0] sm:$0xff]
                %5383 = vst [vmem:[%s5321 + $0xf0] sm:$0xff] %v5382
                %v5384 = vld [vmem:[%s5320 + $0xf8] sm:$0xff]
                %5385 = vst [vmem:[%s5321 + $0xf8] sm:$0xff] %v5384
                %v5386 = vld [vmem:[%s5320 + $0x100] sm:$0xff]
                %5387 = vst [vmem:[%s5321 + $0x100] sm:$0xff] %v5386
                %v5388 = vld [vmem:[%s5320 + $0x108] sm:$0xff]
                %5389 = vst [vmem:[%s5321 + $0x108] sm:$0xff] %v5388
                %v5390 = vld [vmem:[%s5320 + $0x110] sm:$0xff]
                %5391 = vst [vmem:[%s5321 + $0x110] sm:$0xff] %v5390
                %v5392 = vld [vmem:[%s5320 + $0x118] sm:$0xff]
                %5393 = vst [vmem:[%s5321 + $0x118] sm:$0xff] %v5392
                %v5394 = vld [vmem:[%s5320 + $0x120] sm:$0xff]
                %5395 = vst [vmem:[%s5321 + $0x120] sm:$0xff] %v5394
                %v5396 = vld [vmem:[%s5320 + $0x128] sm:$0xff]
                %5397 = vst [vmem:[%s5321 + $0x128] sm:$0xff] %v5396
                %v5398 = vld [vmem:[%s5320 + $0x130] sm:$0xff]
                %5399 = vst [vmem:[%s5321 + $0x130] sm:$0xff] %v5398
                %v5400 = vld [vmem:[%s5320 + $0x138] sm:$0xff]
                %5401 = vst [vmem:[%s5321 + $0x138] sm:$0xff] %v5400
                %v5402 = vld [vmem:[%s5320 + $0x140] sm:$0xff]
                %5403 = vst [vmem:[%s5321 + $0x140] sm:$0xff] %v5402
                %v5404 = vld [vmem:[%s5320 + $0x148] sm:$0xff]
                %5405 = vst [vmem:[%s5321 + $0x148] sm:$0xff] %v5404
                %v5406 = vld [vmem:[%s5320 + $0x150] sm:$0xff]
                %5407 = vst [vmem:[%s5321 + $0x150] sm:$0xff] %v5406
                %v5408 = vld [vmem:[%s5320 + $0x158] sm:$0xff]
                %5409 = vst [vmem:[%s5321 + $0x158] sm:$0xff] %v5408
                %v5410 = vld [vmem:[%s5320 + $0x160] sm:$0xff]
                %5411 = vst [vmem:[%s5321 + $0x160] sm:$0xff] %v5410
                %v5412 = vld [vmem:[%s5320 + $0x168] sm:$0xff]
                %5413 = vst [vmem:[%s5321 + $0x168] sm:$0xff] %v5412
                %v5414 = vld [vmem:[%s5320 + $0x170] sm:$0xff]
                %5415 = vst [vmem:[%s5321 + $0x170] sm:$0xff] %v5414
                %v5416 = vld [vmem:[%s5320 + $0x178] sm:$0xff]
                %5417 = vst [vmem:[%s5321 + $0x178] sm:$0xff] %v5416
                %v5418 = vld [vmem:[%s5320 + $0x180] sm:$0xff]
                %5419 = vst [vmem:[%s5321 + $0x180] sm:$0xff] %v5418
                %v5420 = vld [vmem:[%s5320 + $0x188] sm:$0xff]
                %5421 = vst [vmem:[%s5321 + $0x188] sm:$0xff] %v5420
                %v5422 = vld [vmem:[%s5320 + $0x190] sm:$0xff]
                %5423 = vst [vmem:[%s5321 + $0x190] sm:$0xff] %v5422
                %v5424 = vld [vmem:[%s5320 + $0x198] sm:$0xff]
                %5425 = vst [vmem:[%s5321 + $0x198] sm:$0xff] %v5424
                %v5426 = vld [vmem:[%s5320 + $0x1a0] sm:$0xff]
                %5427 = vst [vmem:[%s5321 + $0x1a0] sm:$0xff] %v5426
                %v5428 = vld [vmem:[%s5320 + $0x1a8] sm:$0xff]
                %5429 = vst [vmem:[%s5321 + $0x1a8] sm:$0xff] %v5428
                %v5430 = vld [vmem:[%s5320 + $0x1b0] sm:$0xff]
                %5431 = vst [vmem:[%s5321 + $0x1b0] sm:$0xff] %v5430
                %v5432 = vld [vmem:[%s5320 + $0x1b8] sm:$0xff]
                %5433 = vst [vmem:[%s5321 + $0x1b8] sm:$0xff] %v5432
                %v5434 = vld [vmem:[%s5320 + $0x1c0] sm:$0xff]
                %5435 = vst [vmem:[%s5321 + $0x1c0] sm:$0xff] %v5434
                %v5436 = vld [vmem:[%s5320 + $0x1c8] sm:$0xff]
                %5437 = vst [vmem:[%s5321 + $0x1c8] sm:$0xff] %v5436
                %v5438 = vld [vmem:[%s5320 + $0x1d0] sm:$0xff]
                %5439 = vst [vmem:[%s5321 + $0x1d0] sm:$0xff] %v5438
                %v5440 = vld [vmem:[%s5320 + $0x1d8] sm:$0xff]
                %5441 = vst [vmem:[%s5321 + $0x1d8] sm:$0xff] %v5440
                %v5442 = vld [vmem:[%s5320 + $0x1e0] sm:$0xff]
                %5443 = vst [vmem:[%s5321 + $0x1e0] sm:$0xff] %v5442
                %v5444 = vld [vmem:[%s5320 + $0x1e8] sm:$0xff]
                %5445 = vst [vmem:[%s5321 + $0x1e8] sm:$0xff] %v5444
                %v5446 = vld [vmem:[%s5320 + $0x1f0] sm:$0xff]
                %5447 = vst [vmem:[%s5321 + $0x1f0] sm:$0xff] %v5446
                %v5448 = vld [vmem:[%s5320 + $0x1f8] sm:$0xff]
                %5449 = vst [vmem:[%s5321 + $0x1f8] sm:$0xff] %v5448
                %v5450 = vld [vmem:[%s5320 + $0x200] sm:$0xff]
                %5451 = vst [vmem:[%s5321 + $0x200] sm:$0xff] %v5450
                %v5452 = vld [vmem:[%s5320 + $0x208] sm:$0xff]
                %5453 = vst [vmem:[%s5321 + $0x208] sm:$0xff] %v5452
                %v5454 = vld [vmem:[%s5320 + $0x210] sm:$0xff]
                %5455 = vst [vmem:[%s5321 + $0x420] sm:$0xff] %v5454
                %v5456 = vld [vmem:[%s5320 + $0x218] sm:$0xff]
                %5457 = vst [vmem:[%s5321 + $0x428] sm:$0xff] %v5456
                %v5458 = vld [vmem:[%s5320 + $0x220] sm:$0xff]
                %5459 = vst [vmem:[%s5321 + $0x430] sm:$0xff] %v5458
                %v5460 = vld [vmem:[%s5320 + $0x228] sm:$0xff]
                %5461 = vst [vmem:[%s5321 + $0x438] sm:$0xff] %v5460
                %v5462 = vld [vmem:[%s5320 + $0x230] sm:$0xff]
                %5463 = vst [vmem:[%s5321 + $0x440] sm:$0xff] %v5462
                %v5464 = vld [vmem:[%s5320 + $0x238] sm:$0xff]
                %5465 = vst [vmem:[%s5321 + $0x448] sm:$0xff] %v5464
                %v5466 = vld [vmem:[%s5320 + $0x240] sm:$0xff]
                %5467 = vst [vmem:[%s5321 + $0x450] sm:$0xff] %v5466
                %v5468 = vld [vmem:[%s5320 + $0x248] sm:$0xff]
                %5469 = vst [vmem:[%s5321 + $0x458] sm:$0xff] %v5468
                %v5470 = vld [vmem:[%s5320 + $0x250] sm:$0xff]
                %5471 = vst [vmem:[%s5321 + $0x460] sm:$0xff] %v5470
                %v5472 = vld [vmem:[%s5320 + $0x258] sm:$0xff]
                %5473 = vst [vmem:[%s5321 + $0x468] sm:$0xff] %v5472
                %v5474 = vld [vmem:[%s5320 + $0x260] sm:$0xff]
                %5475 = vst [vmem:[%s5321 + $0x470] sm:$0xff] %v5474
                %v5476 = vld [vmem:[%s5320 + $0x268] sm:$0xff]
                %5477 = vst [vmem:[%s5321 + $0x478] sm:$0xff] %v5476
                %v5478 = vld [vmem:[%s5320 + $0x270] sm:$0xff]
                %5479 = vst [vmem:[%s5321 + $0x480] sm:$0xff] %v5478
                %v5480 = vld [vmem:[%s5320 + $0x278] sm:$0xff]
                %5481 = vst [vmem:[%s5321 + $0x488] sm:$0xff] %v5480
                %v5482 = vld [vmem:[%s5320 + $0x280] sm:$0xff]
                %5483 = vst [vmem:[%s5321 + $0x490] sm:$0xff] %v5482
                %v5484 = vld [vmem:[%s5320 + $0x288] sm:$0xff]
                %5485 = vst [vmem:[%s5321 + $0x498] sm:$0xff] %v5484
                %v5486 = vld [vmem:[%s5320 + $0x290] sm:$0xff]
                %5487 = vst [vmem:[%s5321 + $0x4a0] sm:$0xff] %v5486
                %v5488 = vld [vmem:[%s5320 + $0x298] sm:$0xff]
                %5489 = vst [vmem:[%s5321 + $0x4a8] sm:$0xff] %v5488
                %v5490 = vld [vmem:[%s5320 + $0x2a0] sm:$0xff]
                %5491 = vst [vmem:[%s5321 + $0x4b0] sm:$0xff] %v5490
                %v5492 = vld [vmem:[%s5320 + $0x2a8] sm:$0xff]
                %5493 = vst [vmem:[%s5321 + $0x4b8] sm:$0xff] %v5492
                %v5494 = vld [vmem:[%s5320 + $0x2b0] sm:$0xff]
                %5495 = vst [vmem:[%s5321 + $0x4c0] sm:$0xff] %v5494
                %v5496 = vld [vmem:[%s5320 + $0x2b8] sm:$0xff]
                %5497 = vst [vmem:[%s5321 + $0x4c8] sm:$0xff] %v5496
                %v5498 = vld [vmem:[%s5320 + $0x2c0] sm:$0xff]
                %5499 = vst [vmem:[%s5321 + $0x4d0] sm:$0xff] %v5498
                %v5500 = vld [vmem:[%s5320 + $0x2c8] sm:$0xff]
                %5501 = vst [vmem:[%s5321 + $0x4d8] sm:$0xff] %v5500
                %v5502 = vld [vmem:[%s5320 + $0x2d0] sm:$0xff]
                %5503 = vst [vmem:[%s5321 + $0x4e0] sm:$0xff] %v5502
                %v5504 = vld [vmem:[%s5320 + $0x2d8] sm:$0xff]
                %5505 = vst [vmem:[%s5321 + $0x4e8] sm:$0xff] %v5504
                %v5506 = vld [vmem:[%s5320 + $0x2e0] sm:$0xff]
                %5507 = vst [vmem:[%s5321 + $0x4f0] sm:$0xff] %v5506
                %v5508 = vld [vmem:[%s5320 + $0x2e8] sm:$0xff]
                %5509 = vst [vmem:[%s5321 + $0x4f8] sm:$0xff] %v5508
                %v5510 = vld [vmem:[%s5320 + $0x2f0] sm:$0xff]
                %5511 = vst [vmem:[%s5321 + $0x500] sm:$0xff] %v5510
                %v5512 = vld [vmem:[%s5320 + $0x2f8] sm:$0xff]
                %5513 = vst [vmem:[%s5321 + $0x508] sm:$0xff] %v5512
                %v5514 = vld [vmem:[%s5320 + $0x300] sm:$0xff]
                %5515 = vst [vmem:[%s5321 + $0x510] sm:$0xff] %v5514
                %v5516 = vld [vmem:[%s5320 + $0x308] sm:$0xff]
                %5517 = vst [vmem:[%s5321 + $0x518] sm:$0xff] %v5516
                %v5518 = vld [vmem:[%s5320 + $0x310] sm:$0xff]
                %5519 = vst [vmem:[%s5321 + $0x520] sm:$0xff] %v5518
                %v5520 = vld [vmem:[%s5320 + $0x318] sm:$0xff]
                %5521 = vst [vmem:[%s5321 + $0x528] sm:$0xff] %v5520
                %v5522 = vld [vmem:[%s5320 + $0x320] sm:$0xff]
                %5523 = vst [vmem:[%s5321 + $0x530] sm:$0xff] %v5522
                %v5524 = vld [vmem:[%s5320 + $0x328] sm:$0xff]
                %5525 = vst [vmem:[%s5321 + $0x538] sm:$0xff] %v5524
                %v5526 = vld [vmem:[%s5320 + $0x330] sm:$0xff]
                %5527 = vst [vmem:[%s5321 + $0x540] sm:$0xff] %v5526
                %v5528 = vld [vmem:[%s5320 + $0x338] sm:$0xff]
                %5529 = vst [vmem:[%s5321 + $0x548] sm:$0xff] %v5528
                %v5530 = vld [vmem:[%s5320 + $0x340] sm:$0xff]
                %5531 = vst [vmem:[%s5321 + $0x550] sm:$0xff] %v5530
                %v5532 = vld [vmem:[%s5320 + $0x348] sm:$0xff]
                %5533 = vst [vmem:[%s5321 + $0x558] sm:$0xff] %v5532
                %v5534 = vld [vmem:[%s5320 + $0x350] sm:$0xff]
                %5535 = vst [vmem:[%s5321 + $0x560] sm:$0xff] %v5534
                %v5536 = vld [vmem:[%s5320 + $0x358] sm:$0xff]
                %5537 = vst [vmem:[%s5321 + $0x568] sm:$0xff] %v5536
                %v5538 = vld [vmem:[%s5320 + $0x360] sm:$0xff]
                %5539 = vst [vmem:[%s5321 + $0x570] sm:$0xff] %v5538
                %v5540 = vld [vmem:[%s5320 + $0x368] sm:$0xff]
                %5541 = vst [vmem:[%s5321 + $0x578] sm:$0xff] %v5540
                %v5542 = vld [vmem:[%s5320 + $0x370] sm:$0xff]
                %5543 = vst [vmem:[%s5321 + $0x580] sm:$0xff] %v5542
                %v5544 = vld [vmem:[%s5320 + $0x378] sm:$0xff]
                %5545 = vst [vmem:[%s5321 + $0x588] sm:$0xff] %v5544
                %v5546 = vld [vmem:[%s5320 + $0x380] sm:$0xff]
                %5547 = vst [vmem:[%s5321 + $0x590] sm:$0xff] %v5546
                %v5548 = vld [vmem:[%s5320 + $0x388] sm:$0xff]
                %5549 = vst [vmem:[%s5321 + $0x598] sm:$0xff] %v5548
                %v5550 = vld [vmem:[%s5320 + $0x390] sm:$0xff]
                %5551 = vst [vmem:[%s5321 + $0x5a0] sm:$0xff] %v5550
                %v5552 = vld [vmem:[%s5320 + $0x398] sm:$0xff]
                %5553 = vst [vmem:[%s5321 + $0x5a8] sm:$0xff] %v5552
                %v5554 = vld [vmem:[%s5320 + $0x3a0] sm:$0xff]
                %5555 = vst [vmem:[%s5321 + $0x5b0] sm:$0xff] %v5554
                %v5556 = vld [vmem:[%s5320 + $0x3a8] sm:$0xff]
                %5557 = vst [vmem:[%s5321 + $0x5b8] sm:$0xff] %v5556
                %v5558 = vld [vmem:[%s5320 + $0x3b0] sm:$0xff]
                %5559 = vst [vmem:[%s5321 + $0x5c0] sm:$0xff] %v5558
                %v5560 = vld [vmem:[%s5320 + $0x3b8] sm:$0xff]
                %5561 = vst [vmem:[%s5321 + $0x5c8] sm:$0xff] %v5560
                %v5562 = vld [vmem:[%s5320 + $0x3c0] sm:$0xff]
                %5563 = vst [vmem:[%s5321 + $0x5d0] sm:$0xff] %v5562
                %v5564 = vld [vmem:[%s5320 + $0x3c8] sm:$0xff]
                %5565 = vst [vmem:[%s5321 + $0x5d8] sm:$0xff] %v5564
                %v5566 = vld [vmem:[%s5320 + $0x3d0] sm:$0xff]
                %5567 = vst [vmem:[%s5321 + $0x5e0] sm:$0xff] %v5566
                %v5568 = vld [vmem:[%s5320 + $0x3d8] sm:$0xff]
                %5569 = vst [vmem:[%s5321 + $0x5e8] sm:$0xff] %v5568
                %v5570 = vld [vmem:[%s5320 + $0x3e0] sm:$0xff]
                %5571 = vst [vmem:[%s5321 + $0x5f0] sm:$0xff] %v5570
                %v5572 = vld [vmem:[%s5320 + $0x3e8] sm:$0xff]
                %5573 = vst [vmem:[%s5321 + $0x5f8] sm:$0xff] %v5572
                %v5574 = vld [vmem:[%s5320 + $0x3f0] sm:$0xff]
                %5575 = vst [vmem:[%s5321 + $0x600] sm:$0xff] %v5574
                %v5576 = vld [vmem:[%s5320 + $0x3f8] sm:$0xff]
                %5577 = vst [vmem:[%s5321 + $0x608] sm:$0xff] %v5576
                %v5578 = vld [vmem:[%s5320 + $0x400] sm:$0xff]
                %5579 = vst [vmem:[%s5321 + $0x610] sm:$0xff] %v5578
                %v5580 = vld [vmem:[%s5320 + $0x408] sm:$0xff]
                %5581 = vst [vmem:[%s5321 + $0x618] sm:$0xff] %v5580
                %v5582 = vld [vmem:[%s5320 + $0x410] sm:$0xff]
                %5583 = vst [vmem:[%s5321 + $0x620] sm:$0xff] %v5582
                %v5584 = vld [vmem:[%s5320 + $0x418] sm:$0xff]
                %5585 = vst [vmem:[%s5321 + $0x628] sm:$0xff] %v5584
              $region76: #{second_layer_head.1} parent=70 // loop_footer
                %s5319 = sadd.s32 1, %s5315
              $region77: #{second_layer_head.1} parent=70 // loop_footer_branch
                %5314 = sbr.rel target = $region73
              $region78: #{second_layer_head.1} parent=70 // loop_exit
                _
            $region71: #{second_layer_head.1} parent=66 // pred_fallthru
              _
            // Predicated region
            $region79: #{second_layer_head.1} parent=66 // pred_check
              _
            $region80: #{second_layer_head.1} parent=66 // pred_check_branch
              %5587 = sbr.rel target = $region82
            $region81: #{second_layer_head.1} parent=66 // pred_region
              _
            $region82: #{second_layer_head.1} parent=66 // pred_fallthru
              _
          $region67: #{second_layer_head.1} parent=62 // pred_fallthru
            _
          %5588 = vnop
        $region63: #{second_layer_head.1} parent=47 // pred_fallthru
          _
        // Predicated region
        $region83: #{second_layer_head.1} parent=47 // pred_check
          %p5589 = pneg %p248
        $region84: #{second_layer_head.1} parent=47 // pred_check_branch
          %5591 = sbr.rel (%p5589) target = $region86
        $region85: #{second_layer_head.1} parent=47 // pred_region
          _
        $region86: #{second_layer_head.1} parent=47 // pred_fallthru
          _
      $region48: #{second_layer_head.1} parent=5 // pred_fallthru
        _
      %p5592 = scmp.le.s32.totalorder 2, %s16
      // Predicated region
      $region87: #{second_layer_head.1} parent=5 // pred_check
        %p5593 = pneg %p5592
      $region88: #{second_layer_head.1} parent=5 // pred_check_branch
        %5595 = sbr.rel (%p5593) target = $region90
      $region89: #{second_layer_head.1} parent=5 // pred_region
        %s5596 = ssub.s32 %s16, 2
        // Predicated region
        $region91: #{second_layer_head.1} parent=89 // pred_check
          %p5597 = pneg %p202
        $region92: #{second_layer_head.1} parent=89 // pred_check_branch
          %5599 = sbr.rel (%p5597) target = $region94
        $region93: #{second_layer_head.1} parent=89 // pred_region
          %p5600 = scmp.lt.s32.totalorder %s22, 1
          %s5601 = scalar_select %p5600, %s22, 1
          %s5602 = smul.addr %s5601, 38
          %s5603 = smul.addr %s5602, 8
          %s5604 = scalar_lea.vmem %s7, %s5603
        $region94: #{second_layer_head.1} parent=89 // pred_fallthru
          _
        // Predicated region
        $region95: #{second_layer_head.1} parent=89 // pred_check
          %p5605 = pneg %p228
        $region96: #{second_layer_head.1} parent=89 // pred_check_branch
          %5607 = sbr.rel (%p5605) target = $region98
        $region97: #{second_layer_head.1} parent=89 // pred_region
          %s5608 = sand.u32 %s213, 1
          %s5609 = sand.u32 %s213, 1
          %s5610 = smul.addr %s5609, 1056
          %s5611 = scalar_lea.vmem [#allocation2], %s5610
        $region98: #{second_layer_head.1} parent=89 // pred_fallthru
          _
        // Predicated region
        $region99: #{second_layer_head.1} parent=89 // pred_check
          %p5612 = pneg %p254
        $region100: #{second_layer_head.1} parent=89 // pred_check_branch
          %5614 = sbr.rel (%p5612) target = $region102
        $region101: #{second_layer_head.1} parent=89 // pred_region
          %p5615 = scmp.lt.s32.totalorder %s22, 1
          %s5616 = scalar_select %p5615, %s22, 1
          %s5617 = smul.addr %s5616, 2
          %s5618 = smul.addr %s5617, 4
          %s5619 = scalar_lea.vmem %s9, %s5618
        $region102: #{second_layer_head.1} parent=89 // pred_fallthru
          _
      $region90: #{second_layer_head.1} parent=5 // pred_fallthru
        _
    $region6: #{second_layer_head.1} parent=1 // loop_footer
      %s20 = sadd.s32 1, %s16
    $region7: #{second_layer_head.1} parent=1 // loop_footer_branch
      %15 = sbr.rel target = $region3
    $region8: #{second_layer_head.1} parent=1 // loop_exit
      _

</llo_original>
